<compile_context>
chip_gen: v5e
topology: v5e:2x2
jax: 0.10.0
libtpu: 0.0.40
codegen_flags: <defaults>
</compile_context>

<pallas_src>
import functools

import jax
import jax.numpy as jnp
from jax.experimental import pallas as pl
from jax.experimental.pallas import tpu as pltpu

LANE = 128


def _round_up(x, m):
    return (x + m - 1) // m * m


# ------------------------------ fused kernel --------------------------------

def _fused_bottleneck_kernel(x_ref, w1_ref, b1_ref, wc_ref, bc_ref, o_ref, *,
                             s, t_rows, w_out, c_in_p, c_out_p, use_id_conv,
                             matmul_dtype):
    """One (batch, output-row-tile) step.

    x_ref : (s*s, t_rows+QR, w_out+QR, c_in_p)  space-to-depth cells of the
            zero-padded input tile, x_ref[a*s+b, i, j, :] == xpad[i*s+a, j*s+b, :]
    w1_ref: (9, c_in_p, c_in_p)      conv1 tap matrices (bf16)
    wc_ref: (s*s, K, c_out_p)        merged conv2[+identity] tap matrices,
                                     K = 2*c_in_p if use_id_conv else c_in_p
    b1_ref: (1, c_in_p)  f32         conv1 bias
    bc_ref: (1, c_out_p) f32         conv2 bias (+ identity bias, pre-summed)
    o_ref : (t_rows, w_out, c_out_p) f32
    """
    m = t_rows * w_out
    b1 = b1_ref[...]
    bc = bc_ref[...]
    acc_out = jnp.zeros((m, c_out_p), jnp.float32)

    # Loop over the s*s positions of conv2's receptive cell (fully unrolled).
    for dh in range(s):
        for dw in range(s):
            # ---- conv1 (3x3, pad 1) at y1 positions (ro*s+dh, wo*s+dw) ----
            acc1 = jnp.zeros((m, c_in_p), jnp.float32)
            x_center = None
            for kh in range(3):
                for kw in range(3):
                    tr, tc = dh + kh, dw + kw
                    a, qa = tr % s, tr // s
                    b, qb = tc % s, tc // s
                    # contiguous static slice -> (t_rows, w_out, c_in_p)
                    xs = x_ref[a * s + b, qa:qa + t_rows, qb:qb + w_out, :]
                    xs = xs.reshape(m, c_in_p)
                    if kh == 1 and kw == 1:
                        x_center = xs          # == x[ro*s+dh, wo*s+dw, :]
                    acc1 = acc1 + jnp.dot(xs, w1_ref[kh * 3 + kw],
                                          preferred_element_type=jnp.float32)
            y1 = jnp.maximum(acc1 + b1, 0.0)   # relu(conv1), f32

            # ---- conv2 tap (dh,dw), identity conv merged along K ----
            if use_id_conv:
                lhs = jnp.concatenate([y1.astype(matmul_dtype), x_center],
                                      axis=-1)
            else:
                lhs = y1.astype(matmul_dtype)
            acc_out = acc_out + jnp.dot(lhs, wc_ref[dh * s + dw],
                                        preferred_element_type=jnp.float32)
            if not use_id_conv:
                # stride == 1: identity is X itself (requires Cin == Cout).
                acc_out = acc_out + x_center.astype(jnp.float32)

    out = jnp.maximum(acc_out + bc, 0.0)
    o_ref[...] = out.reshape(t_rows, w_out, c_out_p)


# ----------------------------- wrapper helpers -------------------------------

def _conv_tap_matrices(w_oihw, c_in_p, c_out_p):
    """PyTorch (Cout, Cin, KH, KW) -> (KH*KW, c_in_p, c_out_p), zero-padded f32."""
    c_out, c_in, kh, kw = w_oihw.shape
    w = jnp.transpose(w_oihw, (2, 3, 1, 0)).reshape(kh * kw, c_in, c_out)
    return jnp.pad(w.astype(jnp.float32),
                   ((0, 0), (0, c_in_p - c_in), (0, c_out_p - c_out)))


def _pad_bias(b, c_p):
    return jnp.pad(b.astype(jnp.float32), (0, c_p - b.shape[0])).reshape(1, c_p)


def _pick_row_tile(h_out, w_out, j_cells, c_in_p, c_out_p, s, in_itemsize,
                   vmem_budget_bytes):
    """Largest divisor of h_out whose double-buffered tiles fit the VMEM budget.

    Budget default is conservative so it fits the default scoped VMEM on every
    generation (v5e 16 MiB, v6e 32 MiB) and v7x's smaller 64 MiB physical VMEM;
    resident weights are tiny (<1 MiB) and are not double-buffered.
    """
    qr = 2 if s == 1 else 1
    s2 = s * s
    best = 1
    for cand in range(1, h_out + 1):
        if h_out % cand:
            continue
        x_tile = s2 * (cand + qr) * j_cells * c_in_p * in_itemsize
        o_tile = cand * w_out * c_out_p * 4
        if 2 * (x_tile + o_tile) <= vmem_budget_bytes:   # 2-deep pipelining
            best = cand
    return best


# ------------------------------ forward pass ---------------------------------

@functools.partial(jax.jit,
                   static_argnames=("stride", "matmul_dtype",
                                    "vmem_budget_bytes"))
def bottle_neck_forward(x_nchw, params, *, stride, matmul_dtype=jnp.bfloat16,
                        vmem_budget_bytes=8 * 1024 * 1024):
    """x_nchw: (N, Cin, H, W) float32. Returns NCHW float32 output."""
    w1, b1 = params["conv1_w"], params["conv1_b"]      # (Cin,Cin,3,3), (Cin,)
    w2, b2 = params["conv2_w"], params["conv2_b"]      # (Cout,Cin,s,s), (Cout,)
    s = int(stride)
    n, c_in, h, w = x_nchw.shape
    c_out = w2.shape[0]
    assert h % s == 0 and w % s == 0, "H and W must be divisible by stride"
    h_out, w_out = h // s, w // s
    use_id_conv = (s != 1)
    if not use_id_conv:
        assert c_in == c_out, "stride==1 residual add requires Cin == Cout"

    c_in_p = _round_up(c_in, LANE)      # lane-dense K / conv1 output channels
    c_out_p = _round_up(c_out, LANE)    # lane-dense output stores

    # ---- weight / bias prep (done once by XLA; weights stay VMEM-resident) ----
    w1m = _conv_tap_matrices(w1, c_in_p, c_in_p).astype(matmul_dtype)
    b1p = _pad_bias(b1, c_in_p)
    w2m = _conv_tap_matrices(w2, c_in_p, c_out_p)
    if use_id_conv:
        wim = _conv_tap_matrices(params["id_w"], c_in_p, c_out_p)
        wcm = jnp.concatenate([w2m, wim], axis=1).astype(matmul_dtype)
        bcp = _pad_bias(b2, c_out_p) + _pad_bias(params["id_b"], c_out_p)
    else:
        wcm = w2m.astype(matmul_dtype)
        bcp = _pad_bias(b2, c_out_p)

    # ---- activation prep: NHWC, pad channels, halo pad, space-to-depth cells ----
    xc = jnp.transpose(x_nchw, (0, 2, 3, 1)).astype(jnp.float32)
    xc = jnp.pad(xc, ((0, 0), (0, 0), (0, 0), (0, c_in_p - c_in)))
    qr = 2 if s == 1 else 1                              # tap reach in cell units
    xp = jnp.pad(xc, ((0, 0), (1, qr * s - 1), (1, qr * s - 1), (0, 0)))
    i_tot, j_tot = (h + qr * s) // s, (w + qr * s) // s  # = h_out+qr, w_out+qr
    cells = xp.reshape(n, i_tot, s, j_tot, s, c_in_p)
    cells = cells.transpose(0, 2, 4, 1, 3, 5)            # (n, a, b, i, j, c)

    t_rows = _pick_row_tile(h_out, w_out, j_tot, c_in_p, c_out_p, s,
                            jnp.dtype(matmul_dtype).itemsize, vmem_budget_bytes)
    n_t = h_out // t_rows
    i_tile = t_rows + qr
    # Row-tile gather (duplicates only the 1-2 halo cell-rows per tile).
    # TODO(synk): a manual-DMA (pl.ANY) halo fetch could avoid this duplication.
    idx = (jnp.arange(n_t) * t_rows)[:, None] + jnp.arange(i_tile)[None, :]
    x_tiles = cells[:, :, :, idx]                        # (n, a, b, n_t, i_tile, j, c)
    x_tiles = x_tiles.transpose(0, 3, 1, 2, 4, 5, 6).reshape(
        n * n_t, s * s, i_tile, j_tot, c_in_p).astype(matmul_dtype)

    kernel = functools.partial(
        _fused_bottleneck_kernel, s=s, t_rows=t_rows, w_out=w_out,
        c_in_p=c_in_p, c_out_p=c_out_p, use_id_conv=use_id_conv,
        matmul_dtype=matmul_dtype)

    out = pl.pallas_call(
        kernel,
        out_shape=jax.ShapeDtypeStruct((n, h_out, w_out, c_out_p), jnp.float32),
        grid=(n, n_t),
        in_specs=[
            # activation tile: one (batch, row-tile) block per grid step
            pl.BlockSpec((None, s * s, i_tile, j_tot, c_in_p),
                         lambda bi, ri: (bi * n_t + ri, 0, 0, 0, 0)),
            # weights / biases: full arrays, constant index_map -> VMEM-resident
            pl.BlockSpec(w1m.shape, lambda bi, ri: (0, 0, 0)),
            pl.BlockSpec(b1p.shape, lambda bi, ri: (0, 0)),
            pl.BlockSpec(wcm.shape, lambda bi, ri: (0, 0, 0)),
            pl.BlockSpec(bcp.shape, lambda bi, ri: (0, 0)),
        ],
        out_specs=pl.BlockSpec((None, t_rows, w_out, c_out_p),
                               lambda bi, ri: (bi, ri, 0, 0)),
        compiler_params=pltpu.CompilerParams(
            dimension_semantics=("parallel", "parallel")),
    )(x_tiles, w1m, b1p, wcm, bcp)

    out = out[..., :c_out]                               # drop lane padding
    return jnp.transpose(out, (0, 3, 1, 2))              # back to NCHW


# ------------------------------- reference -----------------------------------

def _bottle_neck_reference(x, params, stride):
    """Pure-JAX reference (lax.conv, NCHW, f32) mirroring the PyTorch forward."""
    dn = ("NCHW", "OIHW", "NCHW")

    def conv(x, w, b, strd, pad):
        y = jax.lax.conv_general_dilated(x, w, (strd, strd), pad,
                                         dimension_numbers=dn)
        return y + b.reshape(1, -1, 1, 1)

    identity = x
    if stride != 1:
        identity = conv(x, params["id_w"], params["id_b"], stride, "VALID")
    y = jax.nn.relu(conv(x, params["conv1_w"], params["conv1_b"], 1,
                         [(1, 1), (1, 1)]))
    y = conv(y, params["conv2_w"], params["conv2_b"], stride, "VALID")
    return jax.nn.relu(y + identity)


def _init_params(key, in_channels, out_channels, stride):
    ks = jax.random.split(key, 6)
    scale = 0.1
    params = {
        "conv1_w": scale * jax.random.normal(
            ks[0], (in_channels, in_channels, 3, 3), jnp.float32),
        "conv1_b": scale * jax.random.normal(ks[1], (in_channels,), jnp.float32),
        "conv2_w": scale * jax.random.normal(
            ks[2], (out_channels, in_channels, stride, stride), jnp.float32),
        "conv2_b": scale * jax.random.normal(ks[3], (out_channels,), jnp.float32),
    }
    if stride != 1:
        params["id_w"] = scale * jax.random.normal(
            ks[4], (out_channels, in_channels, stride, stride), jnp.float32)
        params["id_b"] = scale * jax.random.normal(
            ks[5], (out_channels,), jnp.float32)
    return params


# ---------------------------------- main --------------------------------------

if __name__ == "__main__":
    key = jax.random.PRNGKey(0)
    k_x1, k_p1, k_x2, k_p2 = jax.random.split(key, 4)

    # bf16 matmul operands with f32 accumulation -> loosened tolerance (~1e-2).
    TOL = 3e-2

    # Case 1: stride=2 downsample path (identity conv), Cin=4 -> Cout=8, 16x16.
    N, Cin, Cout, H, W, stride = 2, 4, 8, 16, 16, 2
    x = jax.random.normal(k_x1, (N, Cin, H, W), jnp.float32)
    params = _init_params(k_p1, Cin, Cout, stride)
    out = jax.block_until_ready(bottle_neck_forward(x, params, stride=stride))
    ref = _bottle_neck_reference(x, params, stride)
    assert out.shape == (N, Cout, H // stride, W // stride), out.shape
    assert jnp.allclose(out, ref, atol=TOL, rtol=TOL), \
        float(jnp.max(jnp.abs(out - ref)))

    # Case 2: stride=1 pass-through residual path, Cin == Cout = 4, 16x16.
    N, Cin, Cout, H, W, stride = 2, 4, 4, 16, 16, 1
    x = jax.random.normal(k_x2, (N, Cin, H, W), jnp.float32)
    params = _init_params(k_p2, Cin, Cout, stride)
    out = jax.block_until_ready(bottle_neck_forward(x, params, stride=stride))
    ref = _bottle_neck_reference(x, params, stride)
    assert out.shape == (N, Cout, H, W), out.shape
    assert jnp.allclose(out, ref, atol=TOL, rtol=TOL), \
        float(jnp.max(jnp.abs(out - ref)))

    print("KERNEL_OK")
</pallas_src>

<mosaic_0001>
module attributes {stable_mosaic.version = 11 : i64} {
  func.func @_fused_bottleneck_kernel(%arg0: i32, %arg1: i32, %arg2: memref<1x4x9x9x128xbf16, #tpu.memory_space<vmem>>, %arg3: memref<9x128x128xbf16, #tpu.memory_space<vmem>>, %arg4: memref<1x128xf32, #tpu.memory_space<vmem>>, %arg5: memref<4x256x128xbf16, #tpu.memory_space<vmem>>, %arg6: memref<1x128xf32, #tpu.memory_space<vmem>>, %arg7: memref<1x8x8x128xf32, #tpu.memory_space<vmem>>) attributes {dimension_semantics = [#tpu.dimension_semantics<parallel>, #tpu.dimension_semantics<parallel>], iteration_bounds = array<i64: 2, 1>, scalar_prefetch = 0 : i64, scratch_operands = 0 : i64, tpu.core_type = #tpu.core_type<tc>, window_params = [{transform_indices = @transform_0, window_bounds = array<i64: 1, 4, 9, 9, 128>}, {pipeline_mode = #tpu.pipeline_mode<synchronous>, transform_indices = @transform_1, window_bounds = array<i64: 9, 128, 128>}, {pipeline_mode = #tpu.pipeline_mode<synchronous>, transform_indices = @transform_2, window_bounds = array<i64: 1, 128>}, {pipeline_mode = #tpu.pipeline_mode<synchronous>, transform_indices = @transform_3, window_bounds = array<i64: 4, 256, 128>}, {pipeline_mode = #tpu.pipeline_mode<synchronous>, transform_indices = @transform_4, window_bounds = array<i64: 1, 128>}, {transform_indices = @transform_5, window_bounds = array<i64: 1, 8, 8, 128>}]} {
    %c0 = arith.constant 0 : index
    %c0_0 = arith.constant 0 : index
    %0 = vector.load %arg4[%c0, %c0_0] : memref<1x128xf32, #tpu.memory_space<vmem>>, vector<1x128xf32>
    %c0_1 = arith.constant 0 : index
    %c0_2 = arith.constant 0 : index
    %1 = vector.load %arg6[%c0_1, %c0_2] : memref<1x128xf32, #tpu.memory_space<vmem>>, vector<1x128xf32>
    %cst = arith.constant 0.000000e+00 : f32
    %2 = vector.broadcast %cst : f32 to vector<64x128xf32>
    %cst_3 = arith.constant 0.000000e+00 : f32
    %3 = vector.broadcast %cst_3 : f32 to vector<64x128xf32>
    %c0_4 = arith.constant 0 : index
    %c0_5 = arith.constant 0 : index
    %c0_6 = arith.constant 0 : index
    %c0_7 = arith.constant 0 : index
    %c0_8 = arith.constant 0 : index
    %4 = vector.load %arg2[%c0_4, %c0_5, %c0_6, %c0_7, %c0_8] : memref<1x4x9x9x128xbf16, #tpu.memory_space<vmem>>, vector<1x1x8x8x128xbf16>
    %5 = vector.shape_cast %4 : vector<1x1x8x8x128xbf16> to vector<8x8x128xbf16>
    %6 = vector.shape_cast %5 : vector<8x8x128xbf16> to vector<64x128xbf16>
    %c0_9 = arith.constant 0 : index
    %c0_10 = arith.constant 0 : index
    %c0_11 = arith.constant 0 : index
    %7 = vector.load %arg3[%c0_9, %c0_10, %c0_11] : memref<9x128x128xbf16, #tpu.memory_space<vmem>>, vector<1x128x128xbf16>
    %8 = vector.shape_cast %7 : vector<1x128x128xbf16> to vector<128x128xbf16>
    %cst_12 = arith.constant dense<0.000000e+00> : vector<64x128xf32>
    %9 = tpu.matmul %6, %8, %cst_12 {dimension_numbers = #tpu.dot_dimension_numbers<[1], [0], [0], [1], [0, 0, 1, 1], [], []>} : vector<64x128xbf16>, vector<128x128xbf16>, vector<64x128xf32> -> vector<64x128xf32>
    %10 = arith.addf %3, %9 : vector<64x128xf32>
    %c0_13 = arith.constant 0 : index
    %c1 = arith.constant 1 : index
    %c0_14 = arith.constant 0 : index
    %c0_15 = arith.constant 0 : index
    %c0_16 = arith.constant 0 : index
    %11 = vector.load %arg2[%c0_13, %c1, %c0_14, %c0_15, %c0_16] : memref<1x4x9x9x128xbf16, #tpu.memory_space<vmem>>, vector<1x1x8x8x128xbf16>
    %12 = vector.shape_cast %11 : vector<1x1x8x8x128xbf16> to vector<8x8x128xbf16>
    %13 = vector.shape_cast %12 : vector<8x8x128xbf16> to vector<64x128xbf16>
    %c1_17 = arith.constant 1 : index
    %c0_18 = arith.constant 0 : index
    %c0_19 = arith.constant 0 : index
    %14 = vector.load %arg3[%c1_17, %c0_18, %c0_19] : memref<9x128x128xbf16, #tpu.memory_space<vmem>>, vector<1x128x128xbf16>
    %15 = vector.shape_cast %14 : vector<1x128x128xbf16> to vector<128x128xbf16>
    %cst_20 = arith.constant dense<0.000000e+00> : vector<64x128xf32>
    %16 = tpu.matmul %13, %15, %cst_20 {dimension_numbers = #tpu.dot_dimension_numbers<[1], [0], [0], [1], [0, 0, 1, 1], [], []>} : vector<64x128xbf16>, vector<128x128xbf16>, vector<64x128xf32> -> vector<64x128xf32>
    %17 = arith.addf %10, %16 : vector<64x128xf32>
    %c0_21 = arith.constant 0 : index
    %c0_22 = arith.constant 0 : index
    %c0_23 = arith.constant 0 : index
    %c1_24 = arith.constant 1 : index
    %c0_25 = arith.constant 0 : index
    %18 = vector.load %arg2[%c0_21, %c0_22, %c0_23, %c1_24, %c0_25] : memref<1x4x9x9x128xbf16, #tpu.memory_space<vmem>>, vector<1x1x8x8x128xbf16>
    %19 = vector.shape_cast %18 : vector<1x1x8x8x128xbf16> to vector<8x8x128xbf16>
    %20 = vector.shape_cast %19 : vector<8x8x128xbf16> to vector<64x128xbf16>
    %c2 = arith.constant 2 : index
    %c0_26 = arith.constant 0 : index
    %c0_27 = arith.constant 0 : index
    %21 = vector.load %arg3[%c2, %c0_26, %c0_27] : memref<9x128x128xbf16, #tpu.memory_space<vmem>>, vector<1x128x128xbf16>
    %22 = vector.shape_cast %21 : vector<1x128x128xbf16> to vector<128x128xbf16>
    %cst_28 = arith.constant dense<0.000000e+00> : vector<64x128xf32>
    %23 = tpu.matmul %20, %22, %cst_28 {dimension_numbers = #tpu.dot_dimension_numbers<[1], [0], [0], [1], [0, 0, 1, 1], [], []>} : vector<64x128xbf16>, vector<128x128xbf16>, vector<64x128xf32> -> vector<64x128xf32>
    %24 = arith.addf %17, %23 : vector<64x128xf32>
    %c0_29 = arith.constant 0 : index
    %c2_30 = arith.constant 2 : index
    %c0_31 = arith.constant 0 : index
    %c0_32 = arith.constant 0 : index
    %c0_33 = arith.constant 0 : index
    %25 = vector.load %arg2[%c0_29, %c2_30, %c0_31, %c0_32, %c0_33] : memref<1x4x9x9x128xbf16, #tpu.memory_space<vmem>>, vector<1x1x8x8x128xbf16>
    %26 = vector.shape_cast %25 : vector<1x1x8x8x128xbf16> to vector<8x8x128xbf16>
    %27 = vector.shape_cast %26 : vector<8x8x128xbf16> to vector<64x128xbf16>
    %c3 = arith.constant 3 : index
    %c0_34 = arith.constant 0 : index
    %c0_35 = arith.constant 0 : index
    %28 = vector.load %arg3[%c3, %c0_34, %c0_35] : memref<9x128x128xbf16, #tpu.memory_space<vmem>>, vector<1x128x128xbf16>
    %29 = vector.shape_cast %28 : vector<1x128x128xbf16> to vector<128x128xbf16>
    %cst_36 = arith.constant dense<0.000000e+00> : vector<64x128xf32>
    %30 = tpu.matmul %27, %29, %cst_36 {dimension_numbers = #tpu.dot_dimension_numbers<[1], [0], [0], [1], [0, 0, 1, 1], [], []>} : vector<64x128xbf16>, vector<128x128xbf16>, vector<64x128xf32> -> vector<64x128xf32>
    %31 = arith.addf %24, %30 : vector<64x128xf32>
    %c0_37 = arith.constant 0 : index
    %c3_38 = arith.constant 3 : index
    %c0_39 = arith.constant 0 : index
    %c0_40 = arith.constant 0 : index
    %c0_41 = arith.constant 0 : index
    %32 = vector.load %arg2[%c0_37, %c3_38, %c0_39, %c0_40, %c0_41] : memref<1x4x9x9x128xbf16, #tpu.memory_space<vmem>>, vector<1x1x8x8x128xbf16>
    %33 = vector.shape_cast %32 : vector<1x1x8x8x128xbf16> to vector<8x8x128xbf16>
    %34 = vector.shape_cast %33 : vector<8x8x128xbf16> to vector<64x128xbf16>
    %c4 = arith.constant 4 : index
    %c0_42 = arith.constant 0 : index
    %c0_43 = arith.constant 0 : index
    %35 = vector.load %arg3[%c4, %c0_42, %c0_43] : memref<9x128x128xbf16, #tpu.memory_space<vmem>>, vector<1x128x128xbf16>
    %36 = vector.shape_cast %35 : vector<1x128x128xbf16> to vector<128x128xbf16>
    %cst_44 = arith.constant dense<0.000000e+00> : vector<64x128xf32>
    %37 = tpu.matmul %34, %36, %cst_44 {dimension_numbers = #tpu.dot_dimension_numbers<[1], [0], [0], [1], [0, 0, 1, 1], [], []>} : vector<64x128xbf16>, vector<128x128xbf16>, vector<64x128xf32> -> vector<64x128xf32>
    %38 = arith.addf %31, %37 : vector<64x128xf32>
    %c0_45 = arith.constant 0 : index
    %c2_46 = arith.constant 2 : index
    %c0_47 = arith.constant 0 : index
    %c1_48 = arith.constant 1 : index
    %c0_49 = arith.constant 0 : index
    %39 = vector.load %arg2[%c0_45, %c2_46, %c0_47, %c1_48, %c0_49] : memref<1x4x9x9x128xbf16, #tpu.memory_space<vmem>>, vector<1x1x8x8x128xbf16>
    %40 = vector.shape_cast %39 : vector<1x1x8x8x128xbf16> to vector<8x8x128xbf16>
    %41 = vector.shape_cast %40 : vector<8x8x128xbf16> to vector<64x128xbf16>
    %c5 = arith.constant 5 : index
    %c0_50 = arith.constant 0 : index
    %c0_51 = arith.constant 0 : index
    %42 = vector.load %arg3[%c5, %c0_50, %c0_51] : memref<9x128x128xbf16, #tpu.memory_space<vmem>>, vector<1x128x128xbf16>
    %43 = vector.shape_cast %42 : vector<1x128x128xbf16> to vector<128x128xbf16>
    %cst_52 = arith.constant dense<0.000000e+00> : vector<64x128xf32>
    %44 = tpu.matmul %41, %43, %cst_52 {dimension_numbers = #tpu.dot_dimension_numbers<[1], [0], [0], [1], [0, 0, 1, 1], [], []>} : vector<64x128xbf16>, vector<128x128xbf16>, vector<64x128xf32> -> vector<64x128xf32>
    %45 = arith.addf %38, %44 : vector<64x128xf32>
    %c0_53 = arith.constant 0 : index
    %c0_54 = arith.constant 0 : index
    %c1_55 = arith.constant 1 : index
    %c0_56 = arith.constant 0 : index
    %c0_57 = arith.constant 0 : index
    %46 = vector.load %arg2[%c0_53, %c0_54, %c1_55, %c0_56, %c0_57] : memref<1x4x9x9x128xbf16, #tpu.memory_space<vmem>>, vector<1x1x8x8x128xbf16>
    %47 = vector.shape_cast %46 : vector<1x1x8x8x128xbf16> to vector<8x8x128xbf16>
    %48 = vector.shape_cast %47 : vector<8x8x128xbf16> to vector<64x128xbf16>
    %c6 = arith.constant 6 : index
    %c0_58 = arith.constant 0 : index
    %c0_59 = arith.constant 0 : index
    %49 = vector.load %arg3[%c6, %c0_58, %c0_59] : memref<9x128x128xbf16, #tpu.memory_space<vmem>>, vector<1x128x128xbf16>
    %50 = vector.shape_cast %49 : vector<1x128x128xbf16> to vector<128x128xbf16>
    %cst_60 = arith.constant dense<0.000000e+00> : vector<64x128xf32>
    %51 = tpu.matmul %48, %50, %cst_60 {dimension_numbers = #tpu.dot_dimension_numbers<[1], [0], [0], [1], [0, 0, 1, 1], [], []>} : vector<64x128xbf16>, vector<128x128xbf16>, vector<64x128xf32> -> vector<64x128xf32>
    %52 = arith.addf %45, %51 : vector<64x128xf32>
    %c0_61 = arith.constant 0 : index
    %c1_62 = arith.constant 1 : index
    %c1_63 = arith.constant 1 : index
    %c0_64 = arith.constant 0 : index
    %c0_65 = arith.constant 0 : index
    %53 = vector.load %arg2[%c0_61, %c1_62, %c1_63, %c0_64, %c0_65] : memref<1x4x9x9x128xbf16, #tpu.memory_space<vmem>>, vector<1x1x8x8x128xbf16>
    %54 = vector.shape_cast %53 : vector<1x1x8x8x128xbf16> to vector<8x8x128xbf16>
    %55 = vector.shape_cast %54 : vector<8x8x128xbf16> to vector<64x128xbf16>
    %c7 = arith.constant 7 : index
    %c0_66 = arith.constant 0 : index
    %c0_67 = arith.constant 0 : index
    %56 = vector.load %arg3[%c7, %c0_66, %c0_67] : memref<9x128x128xbf16, #tpu.memory_space<vmem>>, vector<1x128x128xbf16>
    %57 = vector.shape_cast %56 : vector<1x128x128xbf16> to vector<128x128xbf16>
    %cst_68 = arith.constant dense<0.000000e+00> : vector<64x128xf32>
    %58 = tpu.matmul %55, %57, %cst_68 {dimension_numbers = #tpu.dot_dimension_numbers<[1], [0], [0], [1], [0, 0, 1, 1], [], []>} : vector<64x128xbf16>, vector<128x128xbf16>, vector<64x128xf32> -> vector<64x128xf32>
    %59 = arith.addf %52, %58 : vector<64x128xf32>
    %c0_69 = arith.constant 0 : index
    %c0_70 = arith.constant 0 : index
    %c1_71 = arith.constant 1 : index
    %c1_72 = arith.constant 1 : index
    %c0_73 = arith.constant 0 : index
    %60 = vector.load %arg2[%c0_69, %c0_70, %c1_71, %c1_72, %c0_73] : memref<1x4x9x9x128xbf16, #tpu.memory_space<vmem>>, vector<1x1x8x8x128xbf16>
    %61 = vector.shape_cast %60 : vector<1x1x8x8x128xbf16> to vector<8x8x128xbf16>
    %62 = vector.shape_cast %61 : vector<8x8x128xbf16> to vector<64x128xbf16>
    %c8 = arith.constant 8 : index
    %c0_74 = arith.constant 0 : index
    %c0_75 = arith.constant 0 : index
    %63 = vector.load %arg3[%c8, %c0_74, %c0_75] : memref<9x128x128xbf16, #tpu.memory_space<vmem>>, vector<1x128x128xbf16>
    %64 = vector.shape_cast %63 : vector<1x128x128xbf16> to vector<128x128xbf16>
    %cst_76 = arith.constant dense<0.000000e+00> : vector<64x128xf32>
    %65 = tpu.matmul %62, %64, %cst_76 {dimension_numbers = #tpu.dot_dimension_numbers<[1], [0], [0], [1], [0, 0, 1, 1], [], []>} : vector<64x128xbf16>, vector<128x128xbf16>, vector<64x128xf32> -> vector<64x128xf32>
    %66 = arith.addf %59, %65 : vector<64x128xf32>
    %67 = vector.broadcast %0 : vector<1x128xf32> to vector<64x128xf32>
    %68 = arith.addf %66, %67 : vector<64x128xf32>
    %cst_77 = arith.constant 0.000000e+00 : f32
    %69 = vector.broadcast %cst_77 : f32 to vector<64x128xf32>
    %70 = arith.maximumf %68, %69 : vector<64x128xf32>
    %71 = arith.truncf %70 : vector<64x128xf32> to vector<64x128xbf16>
    %72 = tpu.concatenate %71, %34 in 1 : vector<64x128xbf16>, vector<64x128xbf16> -> vector<64x256xbf16>
    %c0_78 = arith.constant 0 : index
    %c0_79 = arith.constant 0 : index
    %c0_80 = arith.constant 0 : index
    %73 = vector.load %arg5[%c0_78, %c0_79, %c0_80] : memref<4x256x128xbf16, #tpu.memory_space<vmem>>, vector<1x256x128xbf16>
    %74 = vector.shape_cast %73 : vector<1x256x128xbf16> to vector<256x128xbf16>
    %cst_81 = arith.constant dense<0.000000e+00> : vector<64x128xf32>
    %75 = tpu.matmul %72, %74, %cst_81 {dimension_numbers = #tpu.dot_dimension_numbers<[1], [0], [0], [1], [0, 0, 1, 1], [], []>} : vector<64x256xbf16>, vector<256x128xbf16>, vector<64x128xf32> -> vector<64x128xf32>
    %76 = arith.addf %2, %75 : vector<64x128xf32>
    %cst_82 = arith.constant 0.000000e+00 : f32
    %77 = vector.broadcast %cst_82 : f32 to vector<64x128xf32>
    %c0_83 = arith.constant 0 : index
    %c1_84 = arith.constant 1 : index
    %c0_85 = arith.constant 0 : index
    %c0_86 = arith.constant 0 : index
    %c0_87 = arith.constant 0 : index
    %78 = vector.load %arg2[%c0_83, %c1_84, %c0_85, %c0_86, %c0_87] : memref<1x4x9x9x128xbf16, #tpu.memory_space<vmem>>, vector<1x1x8x8x128xbf16>
    %79 = vector.shape_cast %78 : vector<1x1x8x8x128xbf16> to vector<8x8x128xbf16>
    %80 = vector.shape_cast %79 : vector<8x8x128xbf16> to vector<64x128xbf16>
    %c0_88 = arith.constant 0 : index
    %c0_89 = arith.constant 0 : index
    %c0_90 = arith.constant 0 : index
    %81 = vector.load %arg3[%c0_88, %c0_89, %c0_90] : memref<9x128x128xbf16, #tpu.memory_space<vmem>>, vector<1x128x128xbf16>
    %82 = vector.shape_cast %81 : vector<1x128x128xbf16> to vector<128x128xbf16>
    %cst_91 = arith.constant dense<0.000000e+00> : vector<64x128xf32>
    %83 = tpu.matmul %80, %82, %cst_91 {dimension_numbers = #tpu.dot_dimension_numbers<[1], [0], [0], [1], [0, 0, 1, 1], [], []>} : vector<64x128xbf16>, vector<128x128xbf16>, vector<64x128xf32> -> vector<64x128xf32>
    %84 = arith.addf %77, %83 : vector<64x128xf32>
    %c0_92 = arith.constant 0 : index
    %c0_93 = arith.constant 0 : index
    %c0_94 = arith.constant 0 : index
    %c1_95 = arith.constant 1 : index
    %c0_96 = arith.constant 0 : index
    %85 = vector.load %arg2[%c0_92, %c0_93, %c0_94, %c1_95, %c0_96] : memref<1x4x9x9x128xbf16, #tpu.memory_space<vmem>>, vector<1x1x8x8x128xbf16>
    %86 = vector.shape_cast %85 : vector<1x1x8x8x128xbf16> to vector<8x8x128xbf16>
    %87 = vector.shape_cast %86 : vector<8x8x128xbf16> to vector<64x128xbf16>
    %c1_97 = arith.constant 1 : index
    %c0_98 = arith.constant 0 : index
    %c0_99 = arith.constant 0 : index
    %88 = vector.load %arg3[%c1_97, %c0_98, %c0_99] : memref<9x128x128xbf16, #tpu.memory_space<vmem>>, vector<1x128x128xbf16>
    %89 = vector.shape_cast %88 : vector<1x128x128xbf16> to vector<128x128xbf16>
    %cst_100 = arith.constant dense<0.000000e+00> : vector<64x128xf32>
    %90 = tpu.matmul %87, %89, %cst_100 {dimension_numbers = #tpu.dot_dimension_numbers<[1], [0], [0], [1], [0, 0, 1, 1], [], []>} : vector<64x128xbf16>, vector<128x128xbf16>, vector<64x128xf32> -> vector<64x128xf32>
    %91 = arith.addf %84, %90 : vector<64x128xf32>
    %c0_101 = arith.constant 0 : index
    %c1_102 = arith.constant 1 : index
    %c0_103 = arith.constant 0 : index
    %c1_104 = arith.constant 1 : index
    %c0_105 = arith.constant 0 : index
    %92 = vector.load %arg2[%c0_101, %c1_102, %c0_103, %c1_104, %c0_105] : memref<1x4x9x9x128xbf16, #tpu.memory_space<vmem>>, vector<1x1x8x8x128xbf16>
    %93 = vector.shape_cast %92 : vector<1x1x8x8x128xbf16> to vector<8x8x128xbf16>
    %94 = vector.shape_cast %93 : vector<8x8x128xbf16> to vector<64x128xbf16>
    %c2_106 = arith.constant 2 : index
    %c0_107 = arith.constant 0 : index
    %c0_108 = arith.constant 0 : index
    %95 = vector.load %arg3[%c2_106, %c0_107, %c0_108] : memref<9x128x128xbf16, #tpu.memory_space<vmem>>, vector<1x128x128xbf16>
    %96 = vector.shape_cast %95 : vector<1x128x128xbf16> to vector<128x128xbf16>
    %cst_109 = arith.constant dense<0.000000e+00> : vector<64x128xf32>
    %97 = tpu.matmul %94, %96, %cst_109 {dimension_numbers = #tpu.dot_dimension_numbers<[1], [0], [0], [1], [0, 0, 1, 1], [], []>} : vector<64x128xbf16>, vector<128x128xbf16>, vector<64x128xf32> -> vector<64x128xf32>
    %98 = arith.addf %91, %97 : vector<64x128xf32>
    %c0_110 = arith.constant 0 : index
    %c3_111 = arith.constant 3 : index
    %c0_112 = arith.constant 0 : index
    %c0_113 = arith.constant 0 : index
    %c0_114 = arith.constant 0 : index
    %99 = vector.load %arg2[%c0_110, %c3_111, %c0_112, %c0_113, %c0_114] : memref<1x4x9x9x128xbf16, #tpu.memory_space<vmem>>, vector<1x1x8x8x128xbf16>
    %100 = vector.shape_cast %99 : vector<1x1x8x8x128xbf16> to vector<8x8x128xbf16>
    %101 = vector.shape_cast %100 : vector<8x8x128xbf16> to vector<64x128xbf16>
    %c3_115 = arith.constant 3 : index
    %c0_116 = arith.constant 0 : index
    %c0_117 = arith.constant 0 : index
    %102 = vector.load %arg3[%c3_115, %c0_116, %c0_117] : memref<9x128x128xbf16, #tpu.memory_space<vmem>>, vector<1x128x128xbf16>
    %103 = vector.shape_cast %102 : vector<1x128x128xbf16> to vector<128x128xbf16>
    %cst_118 = arith.constant dense<0.000000e+00> : vector<64x128xf32>
    %104 = tpu.matmul %101, %103, %cst_118 {dimension_numbers = #tpu.dot_dimension_numbers<[1], [0], [0], [1], [0, 0, 1, 1], [], []>} : vector<64x128xbf16>, vector<128x128xbf16>, vector<64x128xf32> -> vector<64x128xf32>
    %105 = arith.addf %98, %104 : vector<64x128xf32>
    %c0_119 = arith.constant 0 : index
    %c2_120 = arith.constant 2 : index
    %c0_121 = arith.constant 0 : index
    %c1_122 = arith.constant 1 : index
    %c0_123 = arith.constant 0 : index
    %106 = vector.load %arg2[%c0_119, %c2_120, %c0_121, %c1_122, %c0_123] : memref<1x4x9x9x128xbf16, #tpu.memory_space<vmem>>, vector<1x1x8x8x128xbf16>
    %107 = vector.shape_cast %106 : vector<1x1x8x8x128xbf16> to vector<8x8x128xbf16>
    %108 = vector.shape_cast %107 : vector<8x8x128xbf16> to vector<64x128xbf16>
    %c4_124 = arith.constant 4 : index
    %c0_125 = arith.constant 0 : index
    %c0_126 = arith.constant 0 : index
    %109 = vector.load %arg3[%c4_124, %c0_125, %c0_126] : memref<9x128x128xbf16, #tpu.memory_space<vmem>>, vector<1x128x128xbf16>
    %110 = vector.shape_cast %109 : vector<1x128x128xbf16> to vector<128x128xbf16>
    %cst_127 = arith.constant dense<0.000000e+00> : vector<64x128xf32>
    %111 = tpu.matmul %108, %110, %cst_127 {dimension_numbers = #tpu.dot_dimension_numbers<[1], [0], [0], [1], [0, 0, 1, 1], [], []>} : vector<64x128xbf16>, vector<128x128xbf16>, vector<64x128xf32> -> vector<64x128xf32>
    %112 = arith.addf %105, %111 : vector<64x128xf32>
    %c0_128 = arith.constant 0 : index
    %c3_129 = arith.constant 3 : index
    %c0_130 = arith.constant 0 : index
    %c1_131 = arith.constant 1 : index
    %c0_132 = arith.constant 0 : index
    %113 = vector.load %arg2[%c0_128, %c3_129, %c0_130, %c1_131, %c0_132] : memref<1x4x9x9x128xbf16, #tpu.memory_space<vmem>>, vector<1x1x8x8x128xbf16>
    %114 = vector.shape_cast %113 : vector<1x1x8x8x128xbf16> to vector<8x8x128xbf16>
    %115 = vector.shape_cast %114 : vector<8x8x128xbf16> to vector<64x128xbf16>
    %c5_133 = arith.constant 5 : index
    %c0_134 = arith.constant 0 : index
    %c0_135 = arith.constant 0 : index
    %116 = vector.load %arg3[%c5_133, %c0_134, %c0_135] : memref<9x128x128xbf16, #tpu.memory_space<vmem>>, vector<1x128x128xbf16>
    %117 = vector.shape_cast %116 : vector<1x128x128xbf16> to vector<128x128xbf16>
    %cst_136 = arith.constant dense<0.000000e+00> : vector<64x128xf32>
    %118 = tpu.matmul %115, %117, %cst_136 {dimension_numbers = #tpu.dot_dimension_numbers<[1], [0], [0], [1], [0, 0, 1, 1], [], []>} : vector<64x128xbf16>, vector<128x128xbf16>, vector<64x128xf32> -> vector<64x128xf32>
    %119 = arith.addf %112, %118 : vector<64x128xf32>
    %c0_137 = arith.constant 0 : index
    %c1_138 = arith.constant 1 : index
    %c1_139 = arith.constant 1 : index
    %c0_140 = arith.constant 0 : index
    %c0_141 = arith.constant 0 : index
    %120 = vector.load %arg2[%c0_137, %c1_138, %c1_139, %c0_140, %c0_141] : memref<1x4x9x9x128xbf16, #tpu.memory_space<vmem>>, vector<1x1x8x8x128xbf16>
    %121 = vector.shape_cast %120 : vector<1x1x8x8x128xbf16> to vector<8x8x128xbf16>
    %122 = vector.shape_cast %121 : vector<8x8x128xbf16> to vector<64x128xbf16>
    %c6_142 = arith.constant 6 : index
    %c0_143 = arith.constant 0 : index
    %c0_144 = arith.constant 0 : index
    %123 = vector.load %arg3[%c6_142, %c0_143, %c0_144] : memref<9x128x128xbf16, #tpu.memory_space<vmem>>, vector<1x128x128xbf16>
    %124 = vector.shape_cast %123 : vector<1x128x128xbf16> to vector<128x128xbf16>
    %cst_145 = arith.constant dense<0.000000e+00> : vector<64x128xf32>
    %125 = tpu.matmul %122, %124, %cst_145 {dimension_numbers = #tpu.dot_dimension_numbers<[1], [0], [0], [1], [0, 0, 1, 1], [], []>} : vector<64x128xbf16>, vector<128x128xbf16>, vector<64x128xf32> -> vector<64x128xf32>
    %126 = arith.addf %119, %125 : vector<64x128xf32>
    %c0_146 = arith.constant 0 : index
    %c0_147 = arith.constant 0 : index
    %c1_148 = arith.constant 1 : index
    %c1_149 = arith.constant 1 : index
    %c0_150 = arith.constant 0 : index
    %127 = vector.load %arg2[%c0_146, %c0_147, %c1_148, %c1_149, %c0_150] : memref<1x4x9x9x128xbf16, #tpu.memory_space<vmem>>, vector<1x1x8x8x128xbf16>
    %128 = vector.shape_cast %127 : vector<1x1x8x8x128xbf16> to vector<8x8x128xbf16>
    %129 = vector.shape_cast %128 : vector<8x8x128xbf16> to vector<64x128xbf16>
    %c7_151 = arith.constant 7 : index
    %c0_152 = arith.constant 0 : index
    %c0_153 = arith.constant 0 : index
    %130 = vector.load %arg3[%c7_151, %c0_152, %c0_153] : memref<9x128x128xbf16, #tpu.memory_space<vmem>>, vector<1x128x128xbf16>
    %131 = vector.shape_cast %130 : vector<1x128x128xbf16> to vector<128x128xbf16>
    %cst_154 = arith.constant dense<0.000000e+00> : vector<64x128xf32>
    %132 = tpu.matmul %129, %131, %cst_154 {dimension_numbers = #tpu.dot_dimension_numbers<[1], [0], [0], [1], [0, 0, 1, 1], [], []>} : vector<64x128xbf16>, vector<128x128xbf16>, vector<64x128xf32> -> vector<64x128xf32>
    %133 = arith.addf %126, %132 : vector<64x128xf32>
    %c0_155 = arith.constant 0 : index
    %c1_156 = arith.constant 1 : index
    %c1_157 = arith.constant 1 : index
    %c1_158 = arith.constant 1 : index
    %c0_159 = arith.constant 0 : index
    %134 = vector.load %arg2[%c0_155, %c1_156, %c1_157, %c1_158, %c0_159] : memref<1x4x9x9x128xbf16, #tpu.memory_space<vmem>>, vector<1x1x8x8x128xbf16>
    %135 = vector.shape_cast %134 : vector<1x1x8x8x128xbf16> to vector<8x8x128xbf16>
    %136 = vector.shape_cast %135 : vector<8x8x128xbf16> to vector<64x128xbf16>
    %c8_160 = arith.constant 8 : index
    %c0_161 = arith.constant 0 : index
    %c0_162 = arith.constant 0 : index
    %137 = vector.load %arg3[%c8_160, %c0_161, %c0_162] : memref<9x128x128xbf16, #tpu.memory_space<vmem>>, vector<1x128x128xbf16>
    %138 = vector.shape_cast %137 : vector<1x128x128xbf16> to vector<128x128xbf16>
    %cst_163 = arith.constant dense<0.000000e+00> : vector<64x128xf32>
    %139 = tpu.matmul %136, %138, %cst_163 {dimension_numbers = #tpu.dot_dimension_numbers<[1], [0], [0], [1], [0, 0, 1, 1], [], []>} : vector<64x128xbf16>, vector<128x128xbf16>, vector<64x128xf32> -> vector<64x128xf32>
    %140 = arith.addf %133, %139 : vector<64x128xf32>
    %141 = vector.broadcast %0 : vector<1x128xf32> to vector<64x128xf32>
    %142 = arith.addf %140, %141 : vector<64x128xf32>
    %cst_164 = arith.constant 0.000000e+00 : f32
    %143 = vector.broadcast %cst_164 : f32 to vector<64x128xf32>
    %144 = arith.maximumf %142, %143 : vector<64x128xf32>
    %145 = arith.truncf %144 : vector<64x128xf32> to vector<64x128xbf16>
    %146 = tpu.concatenate %145, %108 in 1 : vector<64x128xbf16>, vector<64x128xbf16> -> vector<64x256xbf16>
    %c1_165 = arith.constant 1 : index
    %c0_166 = arith.constant 0 : index
    %c0_167 = arith.constant 0 : index
    %147 = vector.load %arg5[%c1_165, %c0_166, %c0_167] : memref<4x256x128xbf16, #tpu.memory_space<vmem>>, vector<1x256x128xbf16>
    %148 = vector.shape_cast %147 : vector<1x256x128xbf16> to vector<256x128xbf16>
    %cst_168 = arith.constant dense<0.000000e+00> : vector<64x128xf32>
    %149 = tpu.matmul %146, %148, %cst_168 {dimension_numbers = #tpu.dot_dimension_numbers<[1], [0], [0], [1], [0, 0, 1, 1], [], []>} : vector<64x256xbf16>, vector<256x128xbf16>, vector<64x128xf32> -> vector<64x128xf32>
    %150 = arith.addf %76, %149 : vector<64x128xf32>
    %cst_169 = arith.constant 0.000000e+00 : f32
    %151 = vector.broadcast %cst_169 : f32 to vector<64x128xf32>
    %c0_170 = arith.constant 0 : index
    %c2_171 = arith.constant 2 : index
    %c0_172 = arith.constant 0 : index
    %c0_173 = arith.constant 0 : index
    %c0_174 = arith.constant 0 : index
    %152 = vector.load %arg2[%c0_170, %c2_171, %c0_172, %c0_173, %c0_174] : memref<1x4x9x9x128xbf16, #tpu.memory_space<vmem>>, vector<1x1x8x8x128xbf16>
    %153 = vector.shape_cast %152 : vector<1x1x8x8x128xbf16> to vector<8x8x128xbf16>
    %154 = vector.shape_cast %153 : vector<8x8x128xbf16> to vector<64x128xbf16>
    %c0_175 = arith.constant 0 : index
    %c0_176 = arith.constant 0 : index
    %c0_177 = arith.constant 0 : index
    %155 = vector.load %arg3[%c0_175, %c0_176, %c0_177] : memref<9x128x128xbf16, #tpu.memory_space<vmem>>, vector<1x128x128xbf16>
    %156 = vector.shape_cast %155 : vector<1x128x128xbf16> to vector<128x128xbf16>
    %cst_178 = arith.constant dense<0.000000e+00> : vector<64x128xf32>
    %157 = tpu.matmul %154, %156, %cst_178 {dimension_numbers = #tpu.dot_dimension_numbers<[1], [0], [0], [1], [0, 0, 1, 1], [], []>} : vector<64x128xbf16>, vector<128x128xbf16>, vector<64x128xf32> -> vector<64x128xf32>
    %158 = arith.addf %151, %157 : vector<64x128xf32>
    %c0_179 = arith.constant 0 : index
    %c3_180 = arith.constant 3 : index
    %c0_181 = arith.constant 0 : index
    %c0_182 = arith.constant 0 : index
    %c0_183 = arith.constant 0 : index
    %159 = vector.load %arg2[%c0_179, %c3_180, %c0_181, %c0_182, %c0_183] : memref<1x4x9x9x128xbf16, #tpu.memory_space<vmem>>, vector<1x1x8x8x128xbf16>
    %160 = vector.shape_cast %159 : vector<1x1x8x8x128xbf16> to vector<8x8x128xbf16>
    %161 = vector.shape_cast %160 : vector<8x8x128xbf16> to vector<64x128xbf16>
    %c1_184 = arith.constant 1 : index
    %c0_185 = arith.constant 0 : index
    %c0_186 = arith.constant 0 : index
    %162 = vector.load %arg3[%c1_184, %c0_185, %c0_186] : memref<9x128x128xbf16, #tpu.memory_space<vmem>>, vector<1x128x128xbf16>
    %163 = vector.shape_cast %162 : vector<1x128x128xbf16> to vector<128x128xbf16>
    %cst_187 = arith.constant dense<0.000000e+00> : vector<64x128xf32>
    %164 = tpu.matmul %161, %163, %cst_187 {dimension_numbers = #tpu.dot_dimension_numbers<[1], [0], [0], [1], [0, 0, 1, 1], [], []>} : vector<64x128xbf16>, vector<128x128xbf16>, vector<64x128xf32> -> vector<64x128xf32>
    %165 = arith.addf %158, %164 : vector<64x128xf32>
    %c0_188 = arith.constant 0 : index
    %c2_189 = arith.constant 2 : index
    %c0_190 = arith.constant 0 : index
    %c1_191 = arith.constant 1 : index
    %c0_192 = arith.constant 0 : index
    %166 = vector.load %arg2[%c0_188, %c2_189, %c0_190, %c1_191, %c0_192] : memref<1x4x9x9x128xbf16, #tpu.memory_space<vmem>>, vector<1x1x8x8x128xbf16>
    %167 = vector.shape_cast %166 : vector<1x1x8x8x128xbf16> to vector<8x8x128xbf16>
    %168 = vector.shape_cast %167 : vector<8x8x128xbf16> to vector<64x128xbf16>
    %c2_193 = arith.constant 2 : index
    %c0_194 = arith.constant 0 : index
    %c0_195 = arith.constant 0 : index
    %169 = vector.load %arg3[%c2_193, %c0_194, %c0_195] : memref<9x128x128xbf16, #tpu.memory_space<vmem>>, vector<1x128x128xbf16>
    %170 = vector.shape_cast %169 : vector<1x128x128xbf16> to vector<128x128xbf16>
    %cst_196 = arith.constant dense<0.000000e+00> : vector<64x128xf32>
    %171 = tpu.matmul %168, %170, %cst_196 {dimension_numbers = #tpu.dot_dimension_numbers<[1], [0], [0], [1], [0, 0, 1, 1], [], []>} : vector<64x128xbf16>, vector<128x128xbf16>, vector<64x128xf32> -> vector<64x128xf32>
    %172 = arith.addf %165, %171 : vector<64x128xf32>
    %c0_197 = arith.constant 0 : index
    %c0_198 = arith.constant 0 : index
    %c1_199 = arith.constant 1 : index
    %c0_200 = arith.constant 0 : index
    %c0_201 = arith.constant 0 : index
    %173 = vector.load %arg2[%c0_197, %c0_198, %c1_199, %c0_200, %c0_201] : memref<1x4x9x9x128xbf16, #tpu.memory_space<vmem>>, vector<1x1x8x8x128xbf16>
    %174 = vector.shape_cast %173 : vector<1x1x8x8x128xbf16> to vector<8x8x128xbf16>
    %175 = vector.shape_cast %174 : vector<8x8x128xbf16> to vector<64x128xbf16>
    %c3_202 = arith.constant 3 : index
    %c0_203 = arith.constant 0 : index
    %c0_204 = arith.constant 0 : index
    %176 = vector.load %arg3[%c3_202, %c0_203, %c0_204] : memref<9x128x128xbf16, #tpu.memory_space<vmem>>, vector<1x128x128xbf16>
    %177 = vector.shape_cast %176 : vector<1x128x128xbf16> to vector<128x128xbf16>
    %cst_205 = arith.constant dense<0.000000e+00> : vector<64x128xf32>
    %178 = tpu.matmul %175, %177, %cst_205 {dimension_numbers = #tpu.dot_dimension_numbers<[1], [0], [0], [1], [0, 0, 1, 1], [], []>} : vector<64x128xbf16>, vector<128x128xbf16>, vector<64x128xf32> -> vector<64x128xf32>
    %179 = arith.addf %172, %178 : vector<64x128xf32>
    %c0_206 = arith.constant 0 : index
    %c1_207 = arith.constant 1 : index
    %c1_208 = arith.constant 1 : index
    %c0_209 = arith.constant 0 : index
    %c0_210 = arith.constant 0 : index
    %180 = vector.load %arg2[%c0_206, %c1_207, %c1_208, %c0_209, %c0_210] : memref<1x4x9x9x128xbf16, #tpu.memory_space<vmem>>, vector<1x1x8x8x128xbf16>
    %181 = vector.shape_cast %180 : vector<1x1x8x8x128xbf16> to vector<8x8x128xbf16>
    %182 = vector.shape_cast %181 : vector<8x8x128xbf16> to vector<64x128xbf16>
    %c4_211 = arith.constant 4 : index
    %c0_212 = arith.constant 0 : index
    %c0_213 = arith.constant 0 : index
    %183 = vector.load %arg3[%c4_211, %c0_212, %c0_213] : memref<9x128x128xbf16, #tpu.memory_space<vmem>>, vector<1x128x128xbf16>
    %184 = vector.shape_cast %183 : vector<1x128x128xbf16> to vector<128x128xbf16>
    %cst_214 = arith.constant dense<0.000000e+00> : vector<64x128xf32>
    %185 = tpu.matmul %182, %184, %cst_214 {dimension_numbers = #tpu.dot_dimension_numbers<[1], [0], [0], [1], [0, 0, 1, 1], [], []>} : vector<64x128xbf16>, vector<128x128xbf16>, vector<64x128xf32> -> vector<64x128xf32>
    %186 = arith.addf %179, %185 : vector<64x128xf32>
    %c0_215 = arith.constant 0 : index
    %c0_216 = arith.constant 0 : index
    %c1_217 = arith.constant 1 : index
    %c1_218 = arith.constant 1 : index
    %c0_219 = arith.constant 0 : index
    %187 = vector.load %arg2[%c0_215, %c0_216, %c1_217, %c1_218, %c0_219] : memref<1x4x9x9x128xbf16, #tpu.memory_space<vmem>>, vector<1x1x8x8x128xbf16>
    %188 = vector.shape_cast %187 : vector<1x1x8x8x128xbf16> to vector<8x8x128xbf16>
    %189 = vector.shape_cast %188 : vector<8x8x128xbf16> to vector<64x128xbf16>
    %c5_220 = arith.constant 5 : index
    %c0_221 = arith.constant 0 : index
    %c0_222 = arith.constant 0 : index
    %190 = vector.load %arg3[%c5_220, %c0_221, %c0_222] : memref<9x128x128xbf16, #tpu.memory_space<vmem>>, vector<1x128x128xbf16>
    %191 = vector.shape_cast %190 : vector<1x128x128xbf16> to vector<128x128xbf16>
    %cst_223 = arith.constant dense<0.000000e+00> : vector<64x128xf32>
    %192 = tpu.matmul %189, %191, %cst_223 {dimension_numbers = #tpu.dot_dimension_numbers<[1], [0], [0], [1], [0, 0, 1, 1], [], []>} : vector<64x128xbf16>, vector<128x128xbf16>, vector<64x128xf32> -> vector<64x128xf32>
    %193 = arith.addf %186, %192 : vector<64x128xf32>
    %c0_224 = arith.constant 0 : index
    %c2_225 = arith.constant 2 : index
    %c1_226 = arith.constant 1 : index
    %c0_227 = arith.constant 0 : index
    %c0_228 = arith.constant 0 : index
    %194 = vector.load %arg2[%c0_224, %c2_225, %c1_226, %c0_227, %c0_228] : memref<1x4x9x9x128xbf16, #tpu.memory_space<vmem>>, vector<1x1x8x8x128xbf16>
    %195 = vector.shape_cast %194 : vector<1x1x8x8x128xbf16> to vector<8x8x128xbf16>
    %196 = vector.shape_cast %195 : vector<8x8x128xbf16> to vector<64x128xbf16>
    %c6_229 = arith.constant 6 : index
    %c0_230 = arith.constant 0 : index
    %c0_231 = arith.constant 0 : index
    %197 = vector.load %arg3[%c6_229, %c0_230, %c0_231] : memref<9x128x128xbf16, #tpu.memory_space<vmem>>, vector<1x128x128xbf16>
    %198 = vector.shape_cast %197 : vector<1x128x128xbf16> to vector<128x128xbf16>
    %cst_232 = arith.constant dense<0.000000e+00> : vector<64x128xf32>
    %199 = tpu.matmul %196, %198, %cst_232 {dimension_numbers = #tpu.dot_dimension_numbers<[1], [0], [0], [1], [0, 0, 1, 1], [], []>} : vector<64x128xbf16>, vector<128x128xbf16>, vector<64x128xf32> -> vector<64x128xf32>
    %200 = arith.addf %193, %199 : vector<64x128xf32>
    %c0_233 = arith.constant 0 : index
    %c3_234 = arith.constant 3 : index
    %c1_235 = arith.constant 1 : index
    %c0_236 = arith.constant 0 : index
    %c0_237 = arith.constant 0 : index
    %201 = vector.load %arg2[%c0_233, %c3_234, %c1_235, %c0_236, %c0_237] : memref<1x4x9x9x128xbf16, #tpu.memory_space<vmem>>, vector<1x1x8x8x128xbf16>
    %202 = vector.shape_cast %201 : vector<1x1x8x8x128xbf16> to vector<8x8x128xbf16>
    %203 = vector.shape_cast %202 : vector<8x8x128xbf16> to vector<64x128xbf16>
    %c7_238 = arith.constant 7 : index
    %c0_239 = arith.constant 0 : index
    %c0_240 = arith.constant 0 : index
    %204 = vector.load %arg3[%c7_238, %c0_239, %c0_240] : memref<9x128x128xbf16, #tpu.memory_space<vmem>>, vector<1x128x128xbf16>
    %205 = vector.shape_cast %204 : vector<1x128x128xbf16> to vector<128x128xbf16>
    %cst_241 = arith.constant dense<0.000000e+00> : vector<64x128xf32>
    %206 = tpu.matmul %203, %205, %cst_241 {dimension_numbers = #tpu.dot_dimension_numbers<[1], [0], [0], [1], [0, 0, 1, 1], [], []>} : vector<64x128xbf16>, vector<128x128xbf16>, vector<64x128xf32> -> vector<64x128xf32>
    %207 = arith.addf %200, %206 : vector<64x128xf32>
    %c0_242 = arith.constant 0 : index
    %c2_243 = arith.constant 2 : index
    %c1_244 = arith.constant 1 : index
    %c1_245 = arith.constant 1 : index
    %c0_246 = arith.constant 0 : index
    %208 = vector.load %arg2[%c0_242, %c2_243, %c1_244, %c1_245, %c0_246] : memref<1x4x9x9x128xbf16, #tpu.memory_space<vmem>>, vector<1x1x8x8x128xbf16>
    %209 = vector.shape_cast %208 : vector<1x1x8x8x128xbf16> to vector<8x8x128xbf16>
    %210 = vector.shape_cast %209 : vector<8x8x128xbf16> to vector<64x128xbf16>
    %c8_247 = arith.constant 8 : index
    %c0_248 = arith.constant 0 : index
    %c0_249 = arith.constant 0 : index
    %211 = vector.load %arg3[%c8_247, %c0_248, %c0_249] : memref<9x128x128xbf16, #tpu.memory_space<vmem>>, vector<1x128x128xbf16>
    %212 = vector.shape_cast %211 : vector<1x128x128xbf16> to vector<128x128xbf16>
    %cst_250 = arith.constant dense<0.000000e+00> : vector<64x128xf32>
    %213 = tpu.matmul %210, %212, %cst_250 {dimension_numbers = #tpu.dot_dimension_numbers<[1], [0], [0], [1], [0, 0, 1, 1], [], []>} : vector<64x128xbf16>, vector<128x128xbf16>, vector<64x128xf32> -> vector<64x128xf32>
    %214 = arith.addf %207, %213 : vector<64x128xf32>
    %215 = vector.broadcast %0 : vector<1x128xf32> to vector<64x128xf32>
    %216 = arith.addf %214, %215 : vector<64x128xf32>
    %cst_251 = arith.constant 0.000000e+00 : f32
    %217 = vector.broadcast %cst_251 : f32 to vector<64x128xf32>
    %218 = arith.maximumf %216, %217 : vector<64x128xf32>
    %219 = arith.truncf %218 : vector<64x128xf32> to vector<64x128xbf16>
    %220 = tpu.concatenate %219, %182 in 1 : vector<64x128xbf16>, vector<64x128xbf16> -> vector<64x256xbf16>
    %c2_252 = arith.constant 2 : index
    %c0_253 = arith.constant 0 : index
    %c0_254 = arith.constant 0 : index
    %221 = vector.load %arg5[%c2_252, %c0_253, %c0_254] : memref<4x256x128xbf16, #tpu.memory_space<vmem>>, vector<1x256x128xbf16>
    %222 = vector.shape_cast %221 : vector<1x256x128xbf16> to vector<256x128xbf16>
    %cst_255 = arith.constant dense<0.000000e+00> : vector<64x128xf32>
    %223 = tpu.matmul %220, %222, %cst_255 {dimension_numbers = #tpu.dot_dimension_numbers<[1], [0], [0], [1], [0, 0, 1, 1], [], []>} : vector<64x256xbf16>, vector<256x128xbf16>, vector<64x128xf32> -> vector<64x128xf32>
    %224 = arith.addf %150, %223 : vector<64x128xf32>
    %cst_256 = arith.constant 0.000000e+00 : f32
    %225 = vector.broadcast %cst_256 : f32 to vector<64x128xf32>
    %c0_257 = arith.constant 0 : index
    %c3_258 = arith.constant 3 : index
    %c0_259 = arith.constant 0 : index
    %c0_260 = arith.constant 0 : index
    %c0_261 = arith.constant 0 : index
    %226 = vector.load %arg2[%c0_257, %c3_258, %c0_259, %c0_260, %c0_261] : memref<1x4x9x9x128xbf16, #tpu.memory_space<vmem>>, vector<1x1x8x8x128xbf16>
    %227 = vector.shape_cast %226 : vector<1x1x8x8x128xbf16> to vector<8x8x128xbf16>
    %228 = vector.shape_cast %227 : vector<8x8x128xbf16> to vector<64x128xbf16>
    %c0_262 = arith.constant 0 : index
    %c0_263 = arith.constant 0 : index
    %c0_264 = arith.constant 0 : index
    %229 = vector.load %arg3[%c0_262, %c0_263, %c0_264] : memref<9x128x128xbf16, #tpu.memory_space<vmem>>, vector<1x128x128xbf16>
    %230 = vector.shape_cast %229 : vector<1x128x128xbf16> to vector<128x128xbf16>
    %cst_265 = arith.constant dense<0.000000e+00> : vector<64x128xf32>
    %231 = tpu.matmul %228, %230, %cst_265 {dimension_numbers = #tpu.dot_dimension_numbers<[1], [0], [0], [1], [0, 0, 1, 1], [], []>} : vector<64x128xbf16>, vector<128x128xbf16>, vector<64x128xf32> -> vector<64x128xf32>
    %232 = arith.addf %225, %231 : vector<64x128xf32>
    %c0_266 = arith.constant 0 : index
    %c2_267 = arith.constant 2 : index
    %c0_268 = arith.constant 0 : index
    %c1_269 = arith.constant 1 : index
    %c0_270 = arith.constant 0 : index
    %233 = vector.load %arg2[%c0_266, %c2_267, %c0_268, %c1_269, %c0_270] : memref<1x4x9x9x128xbf16, #tpu.memory_space<vmem>>, vector<1x1x8x8x128xbf16>
    %234 = vector.shape_cast %233 : vector<1x1x8x8x128xbf16> to vector<8x8x128xbf16>
    %235 = vector.shape_cast %234 : vector<8x8x128xbf16> to vector<64x128xbf16>
    %c1_271 = arith.constant 1 : index
    %c0_272 = arith.constant 0 : index
    %c0_273 = arith.constant 0 : index
    %236 = vector.load %arg3[%c1_271, %c0_272, %c0_273] : memref<9x128x128xbf16, #tpu.memory_space<vmem>>, vector<1x128x128xbf16>
    %237 = vector.shape_cast %236 : vector<1x128x128xbf16> to vector<128x128xbf16>
    %cst_274 = arith.constant dense<0.000000e+00> : vector<64x128xf32>
    %238 = tpu.matmul %235, %237, %cst_274 {dimension_numbers = #tpu.dot_dimension_numbers<[1], [0], [0], [1], [0, 0, 1, 1], [], []>} : vector<64x128xbf16>, vector<128x128xbf16>, vector<64x128xf32> -> vector<64x128xf32>
    %239 = arith.addf %232, %238 : vector<64x128xf32>
    %c0_275 = arith.constant 0 : index
    %c3_276 = arith.constant 3 : index
    %c0_277 = arith.constant 0 : index
    %c1_278 = arith.constant 1 : index
    %c0_279 = arith.constant 0 : index
    %240 = vector.load %arg2[%c0_275, %c3_276, %c0_277, %c1_278, %c0_279] : memref<1x4x9x9x128xbf16, #tpu.memory_space<vmem>>, vector<1x1x8x8x128xbf16>
    %241 = vector.shape_cast %240 : vector<1x1x8x8x128xbf16> to vector<8x8x128xbf16>
    %242 = vector.shape_cast %241 : vector<8x8x128xbf16> to vector<64x128xbf16>
    %c2_280 = arith.constant 2 : index
    %c0_281 = arith.constant 0 : index
    %c0_282 = arith.constant 0 : index
    %243 = vector.load %arg3[%c2_280, %c0_281, %c0_282] : memref<9x128x128xbf16, #tpu.memory_space<vmem>>, vector<1x128x128xbf16>
    %244 = vector.shape_cast %243 : vector<1x128x128xbf16> to vector<128x128xbf16>
    %cst_283 = arith.constant dense<0.000000e+00> : vector<64x128xf32>
    %245 = tpu.matmul %242, %244, %cst_283 {dimension_numbers = #tpu.dot_dimension_numbers<[1], [0], [0], [1], [0, 0, 1, 1], [], []>} : vector<64x128xbf16>, vector<128x128xbf16>, vector<64x128xf32> -> vector<64x128xf32>
    %246 = arith.addf %239, %245 : vector<64x128xf32>
    %c0_284 = arith.constant 0 : index
    %c1_285 = arith.constant 1 : index
    %c1_286 = arith.constant 1 : index
    %c0_287 = arith.constant 0 : index
    %c0_288 = arith.constant 0 : index
    %247 = vector.load %arg2[%c0_284, %c1_285, %c1_286, %c0_287, %c0_288] : memref<1x4x9x9x128xbf16, #tpu.memory_space<vmem>>, vector<1x1x8x8x128xbf16>
    %248 = vector.shape_cast %247 : vector<1x1x8x8x128xbf16> to vector<8x8x128xbf16>
    %249 = vector.shape_cast %248 : vector<8x8x128xbf16> to vector<64x128xbf16>
    %c3_289 = arith.constant 3 : index
    %c0_290 = arith.constant 0 : index
    %c0_291 = arith.constant 0 : index
    %250 = vector.load %arg3[%c3_289, %c0_290, %c0_291] : memref<9x128x128xbf16, #tpu.memory_space<vmem>>, vector<1x128x128xbf16>
    %251 = vector.shape_cast %250 : vector<1x128x128xbf16> to vector<128x128xbf16>
    %cst_292 = arith.constant dense<0.000000e+00> : vector<64x128xf32>
    %252 = tpu.matmul %249, %251, %cst_292 {dimension_numbers = #tpu.dot_dimension_numbers<[1], [0], [0], [1], [0, 0, 1, 1], [], []>} : vector<64x128xbf16>, vector<128x128xbf16>, vector<64x128xf32> -> vector<64x128xf32>
    %253 = arith.addf %246, %252 : vector<64x128xf32>
    %c0_293 = arith.constant 0 : index
    %c0_294 = arith.constant 0 : index
    %c1_295 = arith.constant 1 : index
    %c1_296 = arith.constant 1 : index
    %c0_297 = arith.constant 0 : index
    %254 = vector.load %arg2[%c0_293, %c0_294, %c1_295, %c1_296, %c0_297] : memref<1x4x9x9x128xbf16, #tpu.memory_space<vmem>>, vector<1x1x8x8x128xbf16>
    %255 = vector.shape_cast %254 : vector<1x1x8x8x128xbf16> to vector<8x8x128xbf16>
    %256 = vector.shape_cast %255 : vector<8x8x128xbf16> to vector<64x128xbf16>
    %c4_298 = arith.constant 4 : index
    %c0_299 = arith.constant 0 : index
    %c0_300 = arith.constant 0 : index
    %257 = vector.load %arg3[%c4_298, %c0_299, %c0_300] : memref<9x128x128xbf16, #tpu.memory_space<vmem>>, vector<1x128x128xbf16>
    %258 = vector.shape_cast %257 : vector<1x128x128xbf16> to vector<128x128xbf16>
    %cst_301 = arith.constant dense<0.000000e+00> : vector<64x128xf32>
    %259 = tpu.matmul %256, %258, %cst_301 {dimension_numbers = #tpu.dot_dimension_numbers<[1], [0], [0], [1], [0, 0, 1, 1], [], []>} : vector<64x128xbf16>, vector<128x128xbf16>, vector<64x128xf32> -> vector<64x128xf32>
    %260 = arith.addf %253, %259 : vector<64x128xf32>
    %c0_302 = arith.constant 0 : index
    %c1_303 = arith.constant 1 : index
    %c1_304 = arith.constant 1 : index
    %c1_305 = arith.constant 1 : index
    %c0_306 = arith.constant 0 : index
    %261 = vector.load %arg2[%c0_302, %c1_303, %c1_304, %c1_305, %c0_306] : memref<1x4x9x9x128xbf16, #tpu.memory_space<vmem>>, vector<1x1x8x8x128xbf16>
    %262 = vector.shape_cast %261 : vector<1x1x8x8x128xbf16> to vector<8x8x128xbf16>
    %263 = vector.shape_cast %262 : vector<8x8x128xbf16> to vector<64x128xbf16>
    %c5_307 = arith.constant 5 : index
    %c0_308 = arith.constant 0 : index
    %c0_309 = arith.constant 0 : index
    %264 = vector.load %arg3[%c5_307, %c0_308, %c0_309] : memref<9x128x128xbf16, #tpu.memory_space<vmem>>, vector<1x128x128xbf16>
    %265 = vector.shape_cast %264 : vector<1x128x128xbf16> to vector<128x128xbf16>
    %cst_310 = arith.constant dense<0.000000e+00> : vector<64x128xf32>
    %266 = tpu.matmul %263, %265, %cst_310 {dimension_numbers = #tpu.dot_dimension_numbers<[1], [0], [0], [1], [0, 0, 1, 1], [], []>} : vector<64x128xbf16>, vector<128x128xbf16>, vector<64x128xf32> -> vector<64x128xf32>
    %267 = arith.addf %260, %266 : vector<64x128xf32>
    %c0_311 = arith.constant 0 : index
    %c3_312 = arith.constant 3 : index
    %c1_313 = arith.constant 1 : index
    %c0_314 = arith.constant 0 : index
    %c0_315 = arith.constant 0 : index
    %268 = vector.load %arg2[%c0_311, %c3_312, %c1_313, %c0_314, %c0_315] : memref<1x4x9x9x128xbf16, #tpu.memory_space<vmem>>, vector<1x1x8x8x128xbf16>
    %269 = vector.shape_cast %268 : vector<1x1x8x8x128xbf16> to vector<8x8x128xbf16>
    %270 = vector.shape_cast %269 : vector<8x8x128xbf16> to vector<64x128xbf16>
    %c6_316 = arith.constant 6 : index
    %c0_317 = arith.constant 0 : index
    %c0_318 = arith.constant 0 : index
    %271 = vector.load %arg3[%c6_316, %c0_317, %c0_318] : memref<9x128x128xbf16, #tpu.memory_space<vmem>>, vector<1x128x128xbf16>
    %272 = vector.shape_cast %271 : vector<1x128x128xbf16> to vector<128x128xbf16>
    %cst_319 = arith.constant dense<0.000000e+00> : vector<64x128xf32>
    %273 = tpu.matmul %270, %272, %cst_319 {dimension_numbers = #tpu.dot_dimension_numbers<[1], [0], [0], [1], [0, 0, 1, 1], [], []>} : vector<64x128xbf16>, vector<128x128xbf16>, vector<64x128xf32> -> vector<64x128xf32>
    %274 = arith.addf %267, %273 : vector<64x128xf32>
    %c0_320 = arith.constant 0 : index
    %c2_321 = arith.constant 2 : index
    %c1_322 = arith.constant 1 : index
    %c1_323 = arith.constant 1 : index
    %c0_324 = arith.constant 0 : index
    %275 = vector.load %arg2[%c0_320, %c2_321, %c1_322, %c1_323, %c0_324] : memref<1x4x9x9x128xbf16, #tpu.memory_space<vmem>>, vector<1x1x8x8x128xbf16>
    %276 = vector.shape_cast %275 : vector<1x1x8x8x128xbf16> to vector<8x8x128xbf16>
    %277 = vector.shape_cast %276 : vector<8x8x128xbf16> to vector<64x128xbf16>
    %c7_325 = arith.constant 7 : index
    %c0_326 = arith.constant 0 : index
    %c0_327 = arith.constant 0 : index
    %278 = vector.load %arg3[%c7_325, %c0_326, %c0_327] : memref<9x128x128xbf16, #tpu.memory_space<vmem>>, vector<1x128x128xbf16>
    %279 = vector.shape_cast %278 : vector<1x128x128xbf16> to vector<128x128xbf16>
    %cst_328 = arith.constant dense<0.000000e+00> : vector<64x128xf32>
    %280 = tpu.matmul %277, %279, %cst_328 {dimension_numbers = #tpu.dot_dimension_numbers<[1], [0], [0], [1], [0, 0, 1, 1], [], []>} : vector<64x128xbf16>, vector<128x128xbf16>, vector<64x128xf32> -> vector<64x128xf32>
    %281 = arith.addf %274, %280 : vector<64x128xf32>
    %c0_329 = arith.constant 0 : index
    %c3_330 = arith.constant 3 : index
    %c1_331 = arith.constant 1 : index
    %c1_332 = arith.constant 1 : index
    %c0_333 = arith.constant 0 : index
    %282 = vector.load %arg2[%c0_329, %c3_330, %c1_331, %c1_332, %c0_333] : memref<1x4x9x9x128xbf16, #tpu.memory_space<vmem>>, vector<1x1x8x8x128xbf16>
    %283 = vector.shape_cast %282 : vector<1x1x8x8x128xbf16> to vector<8x8x128xbf16>
    %284 = vector.shape_cast %283 : vector<8x8x128xbf16> to vector<64x128xbf16>
    %c8_334 = arith.constant 8 : index
    %c0_335 = arith.constant 0 : index
    %c0_336 = arith.constant 0 : index
    %285 = vector.load %arg3[%c8_334, %c0_335, %c0_336] : memref<9x128x128xbf16, #tpu.memory_space<vmem>>, vector<1x128x128xbf16>
    %286 = vector.shape_cast %285 : vector<1x128x128xbf16> to vector<128x128xbf16>
    %cst_337 = arith.constant dense<0.000000e+00> : vector<64x128xf32>
    %287 = tpu.matmul %284, %286, %cst_337 {dimension_numbers = #tpu.dot_dimension_numbers<[1], [0], [0], [1], [0, 0, 1, 1], [], []>} : vector<64x128xbf16>, vector<128x128xbf16>, vector<64x128xf32> -> vector<64x128xf32>
    %288 = arith.addf %281, %287 : vector<64x128xf32>
    %289 = vector.broadcast %0 : vector<1x128xf32> to vector<64x128xf32>
    %290 = arith.addf %288, %289 : vector<64x128xf32>
    %cst_338 = arith.constant 0.000000e+00 : f32
    %291 = vector.broadcast %cst_338 : f32 to vector<64x128xf32>
    %292 = arith.maximumf %290, %291 : vector<64x128xf32>
    %293 = arith.truncf %292 : vector<64x128xf32> to vector<64x128xbf16>
    %294 = tpu.concatenate %293, %256 in 1 : vector<64x128xbf16>, vector<64x128xbf16> -> vector<64x256xbf16>
    %c3_339 = arith.constant 3 : index
    %c0_340 = arith.constant 0 : index
    %c0_341 = arith.constant 0 : index
    %295 = vector.load %arg5[%c3_339, %c0_340, %c0_341] : memref<4x256x128xbf16, #tpu.memory_space<vmem>>, vector<1x256x128xbf16>
    %296 = vector.shape_cast %295 : vector<1x256x128xbf16> to vector<256x128xbf16>
    %cst_342 = arith.constant dense<0.000000e+00> : vector<64x128xf32>
    %297 = tpu.matmul %294, %296, %cst_342 {dimension_numbers = #tpu.dot_dimension_numbers<[1], [0], [0], [1], [0, 0, 1, 1], [], []>} : vector<64x256xbf16>, vector<256x128xbf16>, vector<64x128xf32> -> vector<64x128xf32>
    %298 = arith.addf %224, %297 : vector<64x128xf32>
    %299 = vector.broadcast %1 : vector<1x128xf32> to vector<64x128xf32>
    %300 = arith.addf %298, %299 : vector<64x128xf32>
    %cst_343 = arith.constant 0.000000e+00 : f32
    %301 = vector.broadcast %cst_343 : f32 to vector<64x128xf32>
    %302 = arith.maximumf %300, %301 : vector<64x128xf32>
    %303 = vector.shape_cast %302 : vector<64x128xf32> to vector<8x8x128xf32>
    %c0_344 = arith.constant 0 : index
    %c0_345 = arith.constant 0 : index
    %c0_346 = arith.constant 0 : index
    %c0_347 = arith.constant 0 : index
    %304 = vector.load %arg7[%c0_344, %c0_345, %c0_346, %c0_347] : memref<1x8x8x128xf32, #tpu.memory_space<vmem>>, vector<1x8x8x128xf32>
    %305 = vector.shape_cast %304 : vector<1x8x8x128xf32> to vector<8x8x128xf32>
    %306 = vector.shape_cast %303 : vector<8x8x128xf32> to vector<1x8x8x128xf32>
    tpu.vector_store %arg7[%c0_344, %c0_345, %c0_346, %c0_347], %306 {strides = array<i32>} : memref<1x8x8x128xf32, #tpu.memory_space<vmem>>, vector<1x8x8x128xf32>,
    return
  }
  func.func @transform_0(%arg0: i32, %arg1: i32) -> (i32, i32, i32, i32, i32) {
    %c1_i32 = arith.constant 1 : i32
    %0 = arith.muli %arg0, %c1_i32 : i32
    %1 = arith.addi %0, %arg1 : i32
    %c0_i32 = arith.constant 0 : i32
    %c0_i32_0 = arith.constant 0 : i32
    %c0_i32_1 = arith.constant 0 : i32
    %c0_i32_2 = arith.constant 0 : i32
    %c0_i32_3 = arith.constant 0 : i32
    return %1, %c0_i32, %c0_i32_0, %c0_i32_1, %c0_i32_2 : i32, i32, i32, i32, i32
  }
  func.func @transform_1(%arg0: i32, %arg1: i32) -> (i32, i32, i32) {
    %c0_i32 = arith.constant 0 : i32
    %c0_i32_0 = arith.constant 0 : i32
    %c0_i32_1 = arith.constant 0 : i32
    %c0_i32_2 = arith.constant 0 : i32
    return %c0_i32, %c0_i32_0, %c0_i32_1 : i32, i32, i32
  }
  func.func @transform_2(%arg0: i32, %arg1: i32) -> (i32, i32) {
    %c0_i32 = arith.constant 0 : i32
    %c0_i32_0 = arith.constant 0 : i32
    %c0_i32_1 = arith.constant 0 : i32
    return %c0_i32, %c0_i32_0 : i32, i32
  }
  func.func @transform_3(%arg0: i32, %arg1: i32) -> (i32, i32, i32) {
    %c0_i32 = arith.constant 0 : i32
    %c0_i32_0 = arith.constant 0 : i32
    %c0_i32_1 = arith.constant 0 : i32
    %c0_i32_2 = arith.constant 0 : i32
    return %c0_i32, %c0_i32_0, %c0_i32_1 : i32, i32, i32
  }
  func.func @transform_4(%arg0: i32, %arg1: i32) -> (i32, i32) {
    %c0_i32 = arith.constant 0 : i32
    %c0_i32_0 = arith.constant 0 : i32
    %c0_i32_1 = arith.constant 0 : i32
    return %c0_i32, %c0_i32_0 : i32, i32
  }
  func.func @transform_5(%arg0: i32, %arg1: i32) -> (i32, i32, i32, i32) {
    %c0_i32 = arith.constant 0 : i32
    %c0_i32_0 = arith.constant 0 : i32
    %c0_i32_1 = arith.constant 0 : i32
    return %arg0, %arg1, %c0_i32, %c0_i32_0 : i32, i32, i32, i32
  }
}

</mosaic_0001>

<llo_original>
// kernel: bottle_neck_forward.1
$region0: #{bottle_neck_forward.1}
  #allocation0 [shape = 'u32[]', space=smem, size = 0x4, offset = 0x4, fixed_abs, tag = 'smem constant byte address 0x4 - core index']
  #allocation1 [shape = 'u32[72,128]{1,0:T(1,128)}', space=vmem, size = 0x9000, scoped, tag = 'internal scratch']
  %s0 = inlined_call_operand.vmem [shape: bf16[2,4,9,9,128], index: 0, kind: input, shape index: {}]
  %s1 = inlined_call_operand.vmem [shape: bf16[9,128,128], index: 1, kind: input, shape index: {}]
  %s2 = inlined_call_operand.vmem [shape: f32[1,128], index: 2, kind: input, shape index: {}]
  %s3 = inlined_call_operand.vmem [shape: bf16[4,256,128], index: 3, kind: input, shape index: {}]
  %s4 = inlined_call_operand.vmem [shape: f32[1,128], index: 4, kind: input, shape index: {}]
  %s5 = inlined_call_operand.vmem [shape: f32[2,8,8,128], index: 5, kind: output, shape index: {}]
  %s6 = sld [smem:[#allocation0]]
  $region53: #{bottle_neck_forward.1} parent=0
    _
  %s8 = ssub.s32 1, %s6
  %s9 = scalar_select 0, %s8, %s6
  loop: start=0, step=1, limit=4
  $region2: #{bottle_neck_forward.1} parent=0 // loop_pre_header
    _
  $region3: #{bottle_neck_forward.1} parent=0 // loop_header
    %s11 = sphi 0, %s15
    %p12 = scmp.ge.s32.totalorder %s11, 4
    %s18 = sphi 0, %s30
    %s19 = sphi 0, %s26
    %s20 = sphi 0, %s18
    %s21 = sphi 0, %s19
    %s22 = sphi 0, %s20
    %s23 = sphi 0, %s21
    %s35 = sphi 0, %s37
    %s38 = sphi 0, %s35
    %s39 = sphi 0, %s38
    %s55 = sphi 0, %s39
    %s59 = sphi 0, %s59
    %s61 = sphi 0, %s59
    %s62 = sphi 0, %s61
    %s76 = sphi 0, %s62
    %s80 = sphi 0, %s80
    %s82 = sphi 0, %s80
    %s83 = sphi 0, %s82
    %s97 = sphi 0, %s83
    %s101 = sphi 0, %s101
    %s103 = sphi 0, %s101
    %s104 = sphi 0, %s103
    %s118 = sphi 0, %s104
    %s122 = sphi 0, %s122
    %s124 = sphi 0, %s122
    %s125 = sphi 0, %s124
    %s139 = sphi 0, %s125
    %s147 = sphi 0, %s149
    %s150 = sphi 0, %s147
    %s151 = sphi 0, %s150
    %s167 = sphi 0, %s151
  $region4: #{bottle_neck_forward.1} parent=0 // loop_header_branch
    %14 = sbr.rel (%p12) target = $region8
  $region5: #{bottle_neck_forward.1} parent=0 // loop_body
    %s16 = ssub.s32 %s11, 1
    %s17 = ssub.s32 %s11, 2
    %s24 = sadd.s32 1, %s19
    %p25 = scmp.ge.s32.totalorder %s24, 1
    %s26 = scalar_select %p25, 0, %s24
    %s27 = sadd.s32 1, %s18
    %s28 = scalar_select %p25, %s27, %s18
    %p29 = scmp.ge.s32.totalorder %s28, 2
    %s30 = scalar_select %p29, 0, %s28
    %s31 = sadd.s32 %s18, %s19
    %s32 = sadd.s32 %s30, %s26
    %s33 = ssub.s32 %s31, %s32
    %p34 = scmp.eq.s32.totalorder %s33, 0
    %s36 = sadd.s32 %s35, 1
    %s37 = scalar_select %p34, %s35, %s36
    %p40 = pneg %p34
    %p41 = scmp.eq.s32.totalorder %s11, 1
    %p42 = por %p40, %p41
    %p43 = scmp.ne.s32.totalorder %s35, %s38
    %p44 = scmp.eq.s32.totalorder %s11, 0
    %p45 = por %p43, %p44
    %p46 = scmp.ne.s32.totalorder %s35, %s38
    %p47 = scmp.eq.s32.totalorder %s16, 1
    %p48 = por %p46, %p47
    %p49 = scmp.ne.s32.totalorder %s38, %s39
    %p50 = scmp.eq.s32.totalorder %s16, 0
    %p51 = por %p49, %p50
    %p52 = scmp.ne.s32.totalorder %s38, %s39
    %p53 = scmp.eq.s32.totalorder %s17, 1
    %p54 = por %p52, %p53
    %p56 = scmp.ne.s32.totalorder %s39, %s55
    %p57 = scmp.eq.s32.totalorder %s17, 0
    %p58 = por %p56, %p57
    %s60 = sadd.s32 %s59, 1
    %p63 = scmp.eq.s32.totalorder %s11, 1
    %p64 = scmp.ne.s32.totalorder %s59, %s61
    %p65 = scmp.eq.s32.totalorder %s11, 0
    %p66 = por %p64, %p65
    %p67 = scmp.ne.s32.totalorder %s59, %s61
    %p68 = scmp.eq.s32.totalorder %s16, 1
    %p69 = por %p67, %p68
    %p70 = scmp.ne.s32.totalorder %s61, %s62
    %p71 = scmp.eq.s32.totalorder %s16, 0
    %p72 = por %p70, %p71
    %p73 = scmp.ne.s32.totalorder %s61, %s62
    %p74 = scmp.eq.s32.totalorder %s17, 1
    %p75 = por %p73, %p74
    %p77 = scmp.ne.s32.totalorder %s62, %s76
    %p78 = scmp.eq.s32.totalorder %s17, 0
    %p79 = por %p77, %p78
    %s81 = sadd.s32 %s80, 1
    %p84 = scmp.eq.s32.totalorder %s11, 1
    %p85 = scmp.ne.s32.totalorder %s80, %s82
    %p86 = scmp.eq.s32.totalorder %s11, 0
    %p87 = por %p85, %p86
    %p88 = scmp.ne.s32.totalorder %s80, %s82
    %p89 = scmp.eq.s32.totalorder %s16, 1
    %p90 = por %p88, %p89
    %p91 = scmp.ne.s32.totalorder %s82, %s83
    %p92 = scmp.eq.s32.totalorder %s16, 0
    %p93 = por %p91, %p92
    %p94 = scmp.ne.s32.totalorder %s82, %s83
    %p95 = scmp.eq.s32.totalorder %s17, 1
    %p96 = por %p94, %p95
    %p98 = scmp.ne.s32.totalorder %s83, %s97
    %p99 = scmp.eq.s32.totalorder %s17, 0
    %p100 = por %p98, %p99
    %s102 = sadd.s32 %s101, 1
    %p105 = scmp.eq.s32.totalorder %s11, 1
    %p106 = scmp.ne.s32.totalorder %s101, %s103
    %p107 = scmp.eq.s32.totalorder %s11, 0
    %p108 = por %p106, %p107
    %p109 = scmp.ne.s32.totalorder %s101, %s103
    %p110 = scmp.eq.s32.totalorder %s16, 1
    %p111 = por %p109, %p110
    %p112 = scmp.ne.s32.totalorder %s103, %s104
    %p113 = scmp.eq.s32.totalorder %s16, 0
    %p114 = por %p112, %p113
    %p115 = scmp.ne.s32.totalorder %s103, %s104
    %p116 = scmp.eq.s32.totalorder %s17, 1
    %p117 = por %p115, %p116
    %p119 = scmp.ne.s32.totalorder %s104, %s118
    %p120 = scmp.eq.s32.totalorder %s17, 0
    %p121 = por %p119, %p120
    %s123 = sadd.s32 %s122, 1
    %p126 = scmp.eq.s32.totalorder %s11, 1
    %p127 = scmp.ne.s32.totalorder %s122, %s124
    %p128 = scmp.eq.s32.totalorder %s11, 0
    %p129 = por %p127, %p128
    %p130 = scmp.ne.s32.totalorder %s122, %s124
    %p131 = scmp.eq.s32.totalorder %s16, 1
    %p132 = por %p130, %p131
    %p133 = scmp.ne.s32.totalorder %s124, %s125
    %p134 = scmp.eq.s32.totalorder %s16, 0
    %p135 = por %p133, %p134
    %p136 = scmp.ne.s32.totalorder %s124, %s125
    %p137 = scmp.eq.s32.totalorder %s17, 1
    %p138 = por %p136, %p137
    %p140 = scmp.ne.s32.totalorder %s125, %s139
    %p141 = scmp.eq.s32.totalorder %s17, 0
    %p142 = por %p140, %p141
    %s143 = ssub.s32 %s18, %s30
    %s144 = ssub.s32 %s19, %s26
    %s145 = sor.u32 %s143, %s144
    %p146 = scmp.eq.s32.totalorder %s145, 0
    %s148 = sadd.s32 %s147, 1
    %s149 = scalar_select %p146, %s147, %s148
    %p152 = pneg %p146
    %p153 = scmp.eq.s32.totalorder %s11, 1
    %p154 = por %p152, %p153
    %p155 = scmp.ne.s32.totalorder %s147, %s150
    %p156 = scmp.eq.s32.totalorder %s11, 0
    %p157 = por %p155, %p156
    %p158 = scmp.ne.s32.totalorder %s147, %s150
    %p159 = scmp.eq.s32.totalorder %s16, 1
    %p160 = por %p158, %p159
    %p161 = scmp.ne.s32.totalorder %s150, %s151
    %p162 = scmp.eq.s32.totalorder %s16, 0
    %p163 = por %p161, %p162
    %p164 = scmp.ne.s32.totalorder %s150, %s151
    %p165 = scmp.eq.s32.totalorder %s17, 1
    %p166 = por %p164, %p165
    %p168 = scmp.ne.s32.totalorder %s151, %s167
    %p169 = scmp.eq.s32.totalorder %s17, 0
    %p170 = por %p168, %p169
    %p171 = scmp.le.s32.totalorder 1, %s11
    %p172 = scmp.lt.s32.totalorder %s11, 3
    %p173 = pnand %p171, %p172
    %p174 = pneg %p173
    // Predicated region
    $region9: #{bottle_neck_forward.1} parent=5 // pred_check
      _
    $region10: #{bottle_neck_forward.1} parent=5 // pred_check_branch
      %176 = sbr.rel (%p173) target = $region12
    $region11: #{bottle_neck_forward.1} parent=5 // pred_region
      %s177 = ssub.s32 %s11, 1
      // Predicated region
      $region13: #{bottle_neck_forward.1} parent=11 // pred_check
        %p178 = pneg %p72
      $region14: #{bottle_neck_forward.1} parent=11 // pred_check_branch
        %180 = sbr.rel (%p178) target = $region16
      $region15: #{bottle_neck_forward.1} parent=11 // pred_region
        _
      $region16: #{bottle_neck_forward.1} parent=11 // pred_fallthru
        _
      // Predicated region
      $region17: #{bottle_neck_forward.1} parent=11 // pred_check
        %p181 = pneg %p93
      $region18: #{bottle_neck_forward.1} parent=11 // pred_check_branch
        %183 = sbr.rel (%p181) target = $region20
      $region19: #{bottle_neck_forward.1} parent=11 // pred_region
        _
      $region20: #{bottle_neck_forward.1} parent=11 // pred_fallthru
        _
      // Predicated region
      $region21: #{bottle_neck_forward.1} parent=11 // pred_check
        %p184 = pneg %p114
      $region22: #{bottle_neck_forward.1} parent=11 // pred_check_branch
        %186 = sbr.rel (%p184) target = $region24
      $region23: #{bottle_neck_forward.1} parent=11 // pred_region
        _
      $region24: #{bottle_neck_forward.1} parent=11 // pred_fallthru
        _
      // Predicated region
      $region25: #{bottle_neck_forward.1} parent=11 // pred_check
        %p187 = pneg %p135
      $region26: #{bottle_neck_forward.1} parent=11 // pred_check_branch
        %189 = sbr.rel (%p187) target = $region28
      $region27: #{bottle_neck_forward.1} parent=11 // pred_region
        _
      $region28: #{bottle_neck_forward.1} parent=11 // pred_fallthru
        _
    $region12: #{bottle_neck_forward.1} parent=5 // pred_fallthru
      _
    %p190 = scmp.lt.s32.totalorder %s11, 2
    // Predicated region
    $region29: #{bottle_neck_forward.1} parent=5 // pred_check
      %p191 = pneg %p190
    $region30: #{bottle_neck_forward.1} parent=5 // pred_check_branch
      %193 = sbr.rel (%p191) target = $region32
    $region31: #{bottle_neck_forward.1} parent=5 // pred_region
      // Predicated region
      $region33: #{bottle_neck_forward.1} parent=31 // pred_check
        %p194 = pneg %p45
      $region34: #{bottle_neck_forward.1} parent=31 // pred_check_branch
        %196 = sbr.rel (%p194) target = $region36
      $region35: #{bottle_neck_forward.1} parent=31 // pred_region
        %s197 = sadd.s32 %s18, %s19
        %p198 = scmp.lt.s32.totalorder %s197, 1
        %s199 = scalar_select %p198, %s197, 1
        %s200 = smul.addr %s199, 72
        %s201 = smul.addr %s200, 4
        %s202 = scalar_lea.vmem %s0, %s201
        %s203 = sadd.s32 %s18, %s19
      $region36: #{bottle_neck_forward.1} parent=31 // pred_fallthru
        _
    $region32: #{bottle_neck_forward.1} parent=5 // pred_fallthru
      _
    %p204 = scmp.le.s32.totalorder 1, %s11
    %p205 = scmp.lt.s32.totalorder %s11, 3
    %p206 = pnand %p204, %p205
    %p207 = pneg %p206
    // Predicated region
    $region37: #{bottle_neck_forward.1} parent=5 // pred_check
      _
    $region38: #{bottle_neck_forward.1} parent=5 // pred_check_branch
      %209 = sbr.rel (%p206) target = $region40
    $region39: #{bottle_neck_forward.1} parent=5 // pred_region
      %s210 = ssub.s32 %s11, 1
      %s211 = sadd.s32 %s20, %s21
      %p212 = scmp.lt.s32.totalorder %s211, 1
      %s213 = scalar_select %p212, %s211, 1
      %s214 = smul.addr %s213, 72
      %s215 = smul.addr %s214, 4
      %s216 = scalar_lea.vmem %s0, %s215
      %p217 = pneg %p51
      %p218 = pneg %p48
      %p219 = pneg %p72
      %p220 = pneg %p69
      %p221 = pneg %p93
      %p222 = pneg %p90
      %p223 = pneg %p114
      %p224 = pneg %p111
      %p225 = pneg %p135
      %p226 = pneg %p132
      %p227 = pneg %p163
      %p228 = pneg %p160
      %s229 = smul.u32 8, %s21
      %p230 = scmp.lt.s32.totalorder %s20, 1
      %s231 = scalar_select %p230, %s20, 1
      %p232 = scmp.lt.s32.totalorder %s229, 7
      %s233 = scalar_select %p232, %s229, 7
      %s234 = smul.addr %s231, 8
      %s235 = sadd.s32 %s233, %s234
      %s236 = smul.addr %s235, 8
      %s237 = scalar_lea.vmem %s5, %s236
      %s238 = sadd.s32 %s20, %s21
      %p239 = scmp.lt.s32.totalorder %s238, 1
      %s240 = scalar_select %p239, %s238, 1
      %s241 = smul.addr %s240, 72
      %s242 = smul.addr %s241, 4
      %s243 = scalar_lea.vmem %s0, %s242
      %s244 = sadd.s32 %s20, %s21
      %s245 = smul.u32 8, %s21
      %p246 = scmp.lt.s32.totalorder %s20, 1
      %s247 = scalar_select %p246, %s20, 1
      %p248 = scmp.lt.s32.totalorder %s245, 7
      %s249 = scalar_select %p248, %s245, 7
      %s250 = smul.addr %s247, 8
      %s251 = sadd.s32 %s249, %s250
      %s252 = smul.addr %s251, 8
      %s253 = scalar_lea.vmem %s5, %s252
      %s254 = smul.u32 8, %s21
      %v255 = vld [vmem:[%s2] sm:$0x1]
      %v256 = vld [vmem:[%s4] sm:$0x1]
      %v257 = vld [vmem:[%s243] sm:$0xf]
      %v258 = vld [vmem:[%s243 + $0x8] sm:$0xf]
      %v259 = vld [vmem:[%s243 + $0x10] sm:$0xf]
      %v260 = vld [vmem:[%s243 + $0x18] sm:$0xf]
      %v261 = vld [vmem:[%s243 + $0x20] sm:$0xf]
      %v262 = vld [vmem:[%s243 + $0x28] sm:$0xf]
      %v263 = vld [vmem:[%s243 + $0x30] sm:$0xf]
      %v264 = vld [vmem:[%s243 + $0x38] sm:$0xf]
      %v265 = vld [vmem:[%s1] sm:$0xf]
      %v266 = vld [vmem:[%s1 + $0x4] sm:$0xf]
      %v267 = vld [vmem:[%s1 + $0x8] sm:$0xf]
      %v268 = vld [vmem:[%s1 + $0xc] sm:$0xf]
      %v269 = vld [vmem:[%s1 + $0x10] sm:$0xf]
      %v270 = vld [vmem:[%s1 + $0x14] sm:$0xf]
      %v271 = vld [vmem:[%s1 + $0x18] sm:$0xf]
      %v272 = vld [vmem:[%s1 + $0x1c] sm:$0xf]
      %v273 = vld [vmem:[%s1 + $0x20] sm:$0xf]
      %v274 = vld [vmem:[%s1 + $0x24] sm:$0xf]
      %v275 = vld [vmem:[%s1 + $0x28] sm:$0xf]
      %v276 = vld [vmem:[%s1 + $0x2c] sm:$0xf]
      %v277 = vld [vmem:[%s1 + $0x30] sm:$0xf]
      %v278 = vld [vmem:[%s1 + $0x34] sm:$0xf]
      %v279 = vld [vmem:[%s1 + $0x38] sm:$0xf]
      %v280 = vld [vmem:[%s1 + $0x3c] sm:$0xf]
      %s281 = scalar_lea.vmem %s243, 72
      %v282 = vld [vmem:[%s281] sm:$0xf]
      %v283 = vld [vmem:[%s281 + $0x8] sm:$0xf]
      %v284 = vld [vmem:[%s281 + $0x10] sm:$0xf]
      %v285 = vld [vmem:[%s281 + $0x18] sm:$0xf]
      %v286 = vld [vmem:[%s281 + $0x20] sm:$0xf]
      %v287 = vld [vmem:[%s281 + $0x28] sm:$0xf]
      %v288 = vld [vmem:[%s281 + $0x30] sm:$0xf]
      %v289 = vld [vmem:[%s281 + $0x38] sm:$0xf]
      %s290 = scalar_lea.vmem %s1, 64
      %v291 = vld [vmem:[%s290] sm:$0xf]
      %v292 = vld [vmem:[%s290 + $0x4] sm:$0xf]
      %v293 = vld [vmem:[%s290 + $0x8] sm:$0xf]
      %v294 = vld [vmem:[%s290 + $0xc] sm:$0xf]
      %v295 = vld [vmem:[%s290 + $0x10] sm:$0xf]
      %v296 = vld [vmem:[%s290 + $0x14] sm:$0xf]
      %v297 = vld [vmem:[%s290 + $0x18] sm:$0xf]
      %v298 = vld [vmem:[%s290 + $0x1c] sm:$0xf]
      %v299 = vld [vmem:[%s290 + $0x20] sm:$0xf]
      %v300 = vld [vmem:[%s290 + $0x24] sm:$0xf]
      %v301 = vld [vmem:[%s290 + $0x28] sm:$0xf]
      %v302 = vld [vmem:[%s290 + $0x2c] sm:$0xf]
      %v303 = vld [vmem:[%s290 + $0x30] sm:$0xf]
      %v304 = vld [vmem:[%s290 + $0x34] sm:$0xf]
      %v305 = vld [vmem:[%s290 + $0x38] sm:$0xf]
      %v306 = vld [vmem:[%s290 + $0x3c] sm:$0xf]
      %v315 = vunpack.c.l.b16 %v282
      %v316 = vunpack.c.l.b16 %v283
      %v317 = vunpack.c.l.b16 %v284
      %v318 = vunpack.c.l.b16 %v285
      %v319 = vunpack.c.l.b16 %v286
      %v320 = vunpack.c.l.b16 %v287
      %v321 = vunpack.c.l.b16 %v288
      %v322 = vunpack.c.l.b16 %v289
      %v323 = vpack.c.b16 %v316, %v315
      %v324 = vpack.c.b16 %v318, %v317
      %v325 = vpack.c.b16 %v320, %v319
      %v326 = vpack.c.b16 %v322, %v321
      %v347 = vunpack.c.l.b16 %v291
      %v348 = vunpack.c.l.b16 %v292
      %v349 = vunpack.c.l.b16 %v293
      %v350 = vunpack.c.l.b16 %v294
      %v351 = vunpack.c.l.b16 %v295
      %v352 = vunpack.c.l.b16 %v296
      %v353 = vunpack.c.l.b16 %v297
      %v354 = vunpack.c.l.b16 %v298
      %v355 = vunpack.c.l.b16 %v299
      %v356 = vunpack.c.l.b16 %v300
      %v357 = vunpack.c.l.b16 %v301
      %v358 = vunpack.c.l.b16 %v302
      %v359 = vunpack.c.l.b16 %v303
      %v360 = vunpack.c.l.b16 %v304
      %v361 = vunpack.c.l.b16 %v305
      %v362 = vunpack.c.l.b16 %v306
      %v363 = vpack.c.b16 %v348, %v347
      %v364 = vpack.c.b16 %v350, %v349
      %v365 = vpack.c.b16 %v352, %v351
      %v366 = vpack.c.b16 %v354, %v353
      %v367 = vpack.c.b16 %v356, %v355
      %v368 = vpack.c.b16 %v358, %v357
      %v369 = vpack.c.b16 %v360, %v359
      %v370 = vpack.c.b16 %v362, %v361
      %379 = vmatpush.bf16.msra.mxu0 %v370
      %380 = vmatpush.bf16.msra.mxu0 %v369
      %381 = vmatpush.bf16.msra.mxu0 %v368
      %382 = vmatpush.bf16.msra.mxu0 %v367
      %383 = vmatpush.bf16.msra.mxu0 %v366
      %384 = vmatpush.bf16.msra.mxu0 %v365
      %385 = vmatpush.bf16.msra.mxu0 %v364
      %386 = vmatpush.bf16.msra.mxu0 %v363
      %387 = vmatmul.bf16.gmra.mxu0 %v323
      %v388 = vpop.f32.mrf.mxu0
      %v389 = vadd.f32 0.0, %v388
      %v390 = vpop.f32.mrf.mxu0
      %v391 = vadd.f32 0.0, %v390
      %392 = vmatmul.bf16.gmra.mxu0 %v324
      %v393 = vpop.f32.mrf.mxu0
      %v394 = vadd.f32 0.0, %v393
      %v395 = vpop.f32.mrf.mxu0
      %v396 = vadd.f32 0.0, %v395
      %397 = vmatmul.bf16.gmra.mxu0 %v325
      %v398 = vpop.f32.mrf.mxu0
      %v399 = vadd.f32 0.0, %v398
      %v400 = vpop.f32.mrf.mxu0
      %v401 = vadd.f32 0.0, %v400
      %402 = vmatmul.bf16.gmra.mxu0 %v326
      %v403 = vpop.f32.mrf.mxu0
      %v404 = vadd.f32 0.0, %v403
      %v405 = vpop.f32.mrf.mxu0
      %v406 = vadd.f32 0.0, %v405
      %407 = vdwg.mxu0
      %v416 = vunpack.c.l.b16 %v257
      %v417 = vunpack.c.l.b16 %v258
      %v418 = vunpack.c.l.b16 %v259
      %v419 = vunpack.c.l.b16 %v260
      %v420 = vunpack.c.l.b16 %v261
      %v421 = vunpack.c.l.b16 %v262
      %v422 = vunpack.c.l.b16 %v263
      %v423 = vunpack.c.l.b16 %v264
      %v424 = vpack.c.b16 %v417, %v416
      %v425 = vpack.c.b16 %v419, %v418
      %v426 = vpack.c.b16 %v421, %v420
      %v427 = vpack.c.b16 %v423, %v422
      %v448 = vunpack.c.l.b16 %v265
      %v449 = vunpack.c.l.b16 %v266
      %v450 = vunpack.c.l.b16 %v267
      %v451 = vunpack.c.l.b16 %v268
      %v452 = vunpack.c.l.b16 %v269
      %v453 = vunpack.c.l.b16 %v270
      %v454 = vunpack.c.l.b16 %v271
      %v455 = vunpack.c.l.b16 %v272
      %v456 = vunpack.c.l.b16 %v273
      %v457 = vunpack.c.l.b16 %v274
      %v458 = vunpack.c.l.b16 %v275
      %v459 = vunpack.c.l.b16 %v276
      %v460 = vunpack.c.l.b16 %v277
      %v461 = vunpack.c.l.b16 %v278
      %v462 = vunpack.c.l.b16 %v279
      %v463 = vunpack.c.l.b16 %v280
      %v464 = vpack.c.b16 %v449, %v448
      %v465 = vpack.c.b16 %v451, %v450
      %v466 = vpack.c.b16 %v453, %v452
      %v467 = vpack.c.b16 %v455, %v454
      %v468 = vpack.c.b16 %v457, %v456
      %v469 = vpack.c.b16 %v459, %v458
      %v470 = vpack.c.b16 %v461, %v460
      %v471 = vpack.c.b16 %v463, %v462
      %480 = vmatpush.bf16.msra.mxu0 %v471
      %481 = vmatpush.bf16.msra.mxu0 %v470
      %482 = vmatpush.bf16.msra.mxu0 %v469
      %483 = vmatpush.bf16.msra.mxu0 %v468
      %484 = vmatpush.bf16.msra.mxu0 %v467
      %485 = vmatpush.bf16.msra.mxu0 %v466
      %486 = vmatpush.bf16.msra.mxu0 %v465
      %487 = vmatpush.bf16.msra.mxu0 %v464
      %488 = vmatmul.bf16.gmra.mxu0 %v424
      %v489 = vpop.f32.mrf.mxu0
      %v490 = vadd.f32 %v389, %v489
      %v491 = vpop.f32.mrf.mxu0
      %v492 = vadd.f32 %v391, %v491
      %493 = vmatmul.bf16.gmra.mxu0 %v425
      %v494 = vpop.f32.mrf.mxu0
      %v495 = vadd.f32 %v394, %v494
      %v496 = vpop.f32.mrf.mxu0
      %v497 = vadd.f32 %v396, %v496
      %498 = vmatmul.bf16.gmra.mxu0 %v426
      %v499 = vpop.f32.mrf.mxu0
      %v500 = vadd.f32 %v399, %v499
      %v501 = vpop.f32.mrf.mxu0
      %v502 = vadd.f32 %v401, %v501
      %503 = vmatmul.bf16.gmra.mxu0 %v427
      %v504 = vpop.f32.mrf.mxu0
      %v505 = vadd.f32 %v404, %v504
      %v506 = vpop.f32.mrf.mxu0
      %v507 = vadd.f32 %v406, %v506
      %508 = vdwg.mxu0
      %v509 = vld [vmem:[%s243] sm:$0xf]
      %v510 = vld [vmem:[%s243 + $0x4] sm:$0x1]
      %v511 = vld [vmem:[%s243 + $0x8] sm:$0xf]
      %v512 = vld [vmem:[%s243 + $0xc] sm:$0x1]
      %v513 = vld [vmem:[%s243 + $0x10] sm:$0xf]
      %v514 = vld [vmem:[%s243 + $0x14] sm:$0x1]
      %v515 = vld [vmem:[%s243 + $0x18] sm:$0xf]
      %v516 = vld [vmem:[%s243 + $0x1c] sm:$0x1]
      %v517 = vld [vmem:[%s243 + $0x20] sm:$0xf]
      %v518 = vld [vmem:[%s243 + $0x24] sm:$0x1]
      %v519 = vld [vmem:[%s243 + $0x28] sm:$0xf]
      %v520 = vld [vmem:[%s243 + $0x2c] sm:$0x1]
      %v521 = vld [vmem:[%s243 + $0x30] sm:$0xf]
      %v522 = vld [vmem:[%s243 + $0x34] sm:$0x1]
      %v523 = vld [vmem:[%s243 + $0x38] sm:$0xf]
      %v524 = vld [vmem:[%s243 + $0x3c] sm:$0x1]
      %vm525 = vsmask.f32 3328
      %vm526 = vsmask.f32 7440
      %vm527 = vmor %vm525, %vm526
      %v529 = vshrl.u32 %v509, 16
      %v531 = vrot.slane %v529, 4
      %v532 = vshll.u32 %v509, 16
      %v534 = vrot.slane %v532, 5
      %v535 = vor.u32 %v531, %v534
      %v536 = vrot.slane %v535, 4
      %v538 = vshll.u32 %v510, 16
      %v540 = vrot.slane %v538, 5
      %v541 = vsel %vm527, %v536, %v540
      %v543 = vshrl.u32 %v511, 16
      %v545 = vrot.slane %v543, 4
      %v546 = vshll.u32 %v511, 16
      %v548 = vrot.slane %v546, 5
      %v549 = vor.u32 %v545, %v548
      %v550 = vrot.slane %v549, 4
      %v552 = vshll.u32 %v512, 16
      %v554 = vrot.slane %v552, 5
      %v555 = vsel %vm527, %v550, %v554
      %v557 = vshrl.u32 %v513, 16
      %v559 = vrot.slane %v557, 4
      %v560 = vshll.u32 %v513, 16
      %v562 = vrot.slane %v560, 5
      %v563 = vor.u32 %v559, %v562
      %v564 = vrot.slane %v563, 4
      %v566 = vshll.u32 %v514, 16
      %v568 = vrot.slane %v566, 5
      %v569 = vsel %vm527, %v564, %v568
      %v571 = vshrl.u32 %v515, 16
      %v573 = vrot.slane %v571, 4
      %v574 = vshll.u32 %v515, 16
      %v576 = vrot.slane %v574, 5
      %v577 = vor.u32 %v573, %v576
      %v578 = vrot.slane %v577, 4
      %v580 = vshll.u32 %v516, 16
      %v582 = vrot.slane %v580, 5
      %v583 = vsel %vm527, %v578, %v582
      %v585 = vshrl.u32 %v517, 16
      %v587 = vrot.slane %v585, 4
      %v588 = vshll.u32 %v517, 16
      %v590 = vrot.slane %v588, 5
      %v591 = vor.u32 %v587, %v590
      %v592 = vrot.slane %v591, 4
      %v594 = vshll.u32 %v518, 16
      %v596 = vrot.slane %v594, 5
      %v597 = vsel %vm527, %v592, %v596
      %v599 = vshrl.u32 %v519, 16
      %v601 = vrot.slane %v599, 4
      %v602 = vshll.u32 %v519, 16
      %v604 = vrot.slane %v602, 5
      %v605 = vor.u32 %v601, %v604
      %v606 = vrot.slane %v605, 4
      %v608 = vshll.u32 %v520, 16
      %v610 = vrot.slane %v608, 5
      %v611 = vsel %vm527, %v606, %v610
      %v613 = vshrl.u32 %v521, 16
      %v615 = vrot.slane %v613, 4
      %v616 = vshll.u32 %v521, 16
      %v618 = vrot.slane %v616, 5
      %v619 = vor.u32 %v615, %v618
      %v620 = vrot.slane %v619, 4
      %v622 = vshll.u32 %v522, 16
      %v624 = vrot.slane %v622, 5
      %v625 = vsel %vm527, %v620, %v624
      %v627 = vshrl.u32 %v523, 16
      %v629 = vrot.slane %v627, 4
      %v630 = vshll.u32 %v523, 16
      %v632 = vrot.slane %v630, 5
      %v633 = vor.u32 %v629, %v632
      %v634 = vrot.slane %v633, 4
      %v636 = vshll.u32 %v524, 16
      %v638 = vrot.slane %v636, 5
      %v639 = vsel %vm527, %v634, %v638
      %s640 = scalar_lea.vmem %s1, 128
      %v641 = vld [vmem:[%s640] sm:$0xf]
      %v642 = vld [vmem:[%s640 + $0x4] sm:$0xf]
      %v643 = vld [vmem:[%s640 + $0x8] sm:$0xf]
      %v644 = vld [vmem:[%s640 + $0xc] sm:$0xf]
      %v645 = vld [vmem:[%s640 + $0x10] sm:$0xf]
      %v646 = vld [vmem:[%s640 + $0x14] sm:$0xf]
      %v647 = vld [vmem:[%s640 + $0x18] sm:$0xf]
      %v648 = vld [vmem:[%s640 + $0x1c] sm:$0xf]
      %v649 = vld [vmem:[%s640 + $0x20] sm:$0xf]
      %v650 = vld [vmem:[%s640 + $0x24] sm:$0xf]
      %v651 = vld [vmem:[%s640 + $0x28] sm:$0xf]
      %v652 = vld [vmem:[%s640 + $0x2c] sm:$0xf]
      %v653 = vld [vmem:[%s640 + $0x30] sm:$0xf]
      %v654 = vld [vmem:[%s640 + $0x34] sm:$0xf]
      %v655 = vld [vmem:[%s640 + $0x38] sm:$0xf]
      %v656 = vld [vmem:[%s640 + $0x3c] sm:$0xf]
      %v657 = vunpack.c.l.b16 %v541
      %v658 = vunpack.c.l.b16 %v555
      %v659 = vunpack.c.l.b16 %v569
      %v660 = vunpack.c.l.b16 %v583
      %v661 = vunpack.c.l.b16 %v597
      %v662 = vunpack.c.l.b16 %v611
      %v663 = vunpack.c.l.b16 %v625
      %v664 = vunpack.c.l.b16 %v639
      %v665 = vpack.c.b16 %v658, %v657
      %v666 = vpack.c.b16 %v660, %v659
      %v667 = vpack.c.b16 %v662, %v661
      %v668 = vpack.c.b16 %v664, %v663
      %v689 = vunpack.c.l.b16 %v641
      %v690 = vunpack.c.l.b16 %v642
      %v691 = vunpack.c.l.b16 %v643
      %v692 = vunpack.c.l.b16 %v644
      %v693 = vunpack.c.l.b16 %v645
      %v694 = vunpack.c.l.b16 %v646
      %v695 = vunpack.c.l.b16 %v647
      %v696 = vunpack.c.l.b16 %v648
      %v697 = vunpack.c.l.b16 %v649
      %v698 = vunpack.c.l.b16 %v650
      %v699 = vunpack.c.l.b16 %v651
      %v700 = vunpack.c.l.b16 %v652
      %v701 = vunpack.c.l.b16 %v653
      %v702 = vunpack.c.l.b16 %v654
      %v703 = vunpack.c.l.b16 %v655
      %v704 = vunpack.c.l.b16 %v656
      %v705 = vpack.c.b16 %v690, %v689
      %v706 = vpack.c.b16 %v692, %v691
      %v707 = vpack.c.b16 %v694, %v693
      %v708 = vpack.c.b16 %v696, %v695
      %v709 = vpack.c.b16 %v698, %v697
      %v710 = vpack.c.b16 %v700, %v699
      %v711 = vpack.c.b16 %v702, %v701
      %v712 = vpack.c.b16 %v704, %v703
      %721 = vmatpush.bf16.msra.mxu0 %v712
      %722 = vmatpush.bf16.msra.mxu0 %v711
      %723 = vmatpush.bf16.msra.mxu0 %v710
      %724 = vmatpush.bf16.msra.mxu0 %v709
      %725 = vmatpush.bf16.msra.mxu0 %v708
      %726 = vmatpush.bf16.msra.mxu0 %v707
      %727 = vmatpush.bf16.msra.mxu0 %v706
      %728 = vmatpush.bf16.msra.mxu0 %v705
      %729 = vmatmul.bf16.gmra.mxu0 %v665
      %v730 = vpop.f32.mrf.mxu0
      %v731 = vadd.f32 0.0, %v730
      %v732 = vpop.f32.mrf.mxu0
      %v733 = vadd.f32 0.0, %v732
      %734 = vmatmul.bf16.gmra.mxu0 %v666
      %v735 = vpop.f32.mrf.mxu0
      %v736 = vadd.f32 0.0, %v735
      %v737 = vpop.f32.mrf.mxu0
      %v738 = vadd.f32 0.0, %v737
      %739 = vmatmul.bf16.gmra.mxu0 %v667
      %v740 = vpop.f32.mrf.mxu0
      %v741 = vadd.f32 0.0, %v740
      %v742 = vpop.f32.mrf.mxu0
      %v743 = vadd.f32 0.0, %v742
      %744 = vmatmul.bf16.gmra.mxu0 %v668
      %v745 = vpop.f32.mrf.mxu0
      %v746 = vadd.f32 0.0, %v745
      %v747 = vpop.f32.mrf.mxu0
      %v748 = vadd.f32 0.0, %v747
      %749 = vdwg.mxu0
      %v750 = vadd.f32 %v490, %v731
      %v751 = vadd.f32 %v492, %v733
      %v752 = vadd.f32 %v495, %v736
      %v753 = vadd.f32 %v497, %v738
      %v754 = vadd.f32 %v500, %v741
      %v755 = vadd.f32 %v502, %v743
      %v756 = vadd.f32 %v505, %v746
      %v757 = vadd.f32 %v507, %v748
      %s758 = scalar_lea.vmem %s243, 144
      %v759 = vld [vmem:[%s758] sm:$0xf]
      %v760 = vld [vmem:[%s758 + $0x8] sm:$0xf]
      %v761 = vld [vmem:[%s758 + $0x10] sm:$0xf]
      %v762 = vld [vmem:[%s758 + $0x18] sm:$0xf]
      %v763 = vld [vmem:[%s758 + $0x20] sm:$0xf]
      %v764 = vld [vmem:[%s758 + $0x28] sm:$0xf]
      %v765 = vld [vmem:[%s758 + $0x30] sm:$0xf]
      %v766 = vld [vmem:[%s758 + $0x38] sm:$0xf]
      %s767 = scalar_lea.vmem %s1, 192
      %v768 = vld [vmem:[%s767] sm:$0xf]
      %v769 = vld [vmem:[%s767 + $0x4] sm:$0xf]
      %v770 = vld [vmem:[%s767 + $0x8] sm:$0xf]
      %v771 = vld [vmem:[%s767 + $0xc] sm:$0xf]
      %v772 = vld [vmem:[%s767 + $0x10] sm:$0xf]
      %v773 = vld [vmem:[%s767 + $0x14] sm:$0xf]
      %v774 = vld [vmem:[%s767 + $0x18] sm:$0xf]
      %v775 = vld [vmem:[%s767 + $0x1c] sm:$0xf]
      %v776 = vld [vmem:[%s767 + $0x20] sm:$0xf]
      %v777 = vld [vmem:[%s767 + $0x24] sm:$0xf]
      %v778 = vld [vmem:[%s767 + $0x28] sm:$0xf]
      %v779 = vld [vmem:[%s767 + $0x2c] sm:$0xf]
      %v780 = vld [vmem:[%s767 + $0x30] sm:$0xf]
      %v781 = vld [vmem:[%s767 + $0x34] sm:$0xf]
      %v782 = vld [vmem:[%s767 + $0x38] sm:$0xf]
      %v783 = vld [vmem:[%s767 + $0x3c] sm:$0xf]
      %v792 = vunpack.c.l.b16 %v759
      %v793 = vunpack.c.l.b16 %v760
      %v794 = vunpack.c.l.b16 %v761
      %v795 = vunpack.c.l.b16 %v762
      %v796 = vunpack.c.l.b16 %v763
      %v797 = vunpack.c.l.b16 %v764
      %v798 = vunpack.c.l.b16 %v765
      %v799 = vunpack.c.l.b16 %v766
      %v800 = vpack.c.b16 %v793, %v792
      %v801 = vpack.c.b16 %v795, %v794
      %v802 = vpack.c.b16 %v797, %v796
      %v803 = vpack.c.b16 %v799, %v798
      %v824 = vunpack.c.l.b16 %v768
      %v825 = vunpack.c.l.b16 %v769
      %v826 = vunpack.c.l.b16 %v770
      %v827 = vunpack.c.l.b16 %v771
      %v828 = vunpack.c.l.b16 %v772
      %v829 = vunpack.c.l.b16 %v773
      %v830 = vunpack.c.l.b16 %v774
      %v831 = vunpack.c.l.b16 %v775
      %v832 = vunpack.c.l.b16 %v776
      %v833 = vunpack.c.l.b16 %v777
      %v834 = vunpack.c.l.b16 %v778
      %v835 = vunpack.c.l.b16 %v779
      %v836 = vunpack.c.l.b16 %v780
      %v837 = vunpack.c.l.b16 %v781
      %v838 = vunpack.c.l.b16 %v782
      %v839 = vunpack.c.l.b16 %v783
      %v840 = vpack.c.b16 %v825, %v824
      %v841 = vpack.c.b16 %v827, %v826
      %v842 = vpack.c.b16 %v829, %v828
      %v843 = vpack.c.b16 %v831, %v830
      %v844 = vpack.c.b16 %v833, %v832
      %v845 = vpack.c.b16 %v835, %v834
      %v846 = vpack.c.b16 %v837, %v836
      %v847 = vpack.c.b16 %v839, %v838
      %856 = vmatpush.bf16.msra.mxu0 %v847
      %857 = vmatpush.bf16.msra.mxu0 %v846
      %858 = vmatpush.bf16.msra.mxu0 %v845
      %859 = vmatpush.bf16.msra.mxu0 %v844
      %860 = vmatpush.bf16.msra.mxu0 %v843
      %861 = vmatpush.bf16.msra.mxu0 %v842
      %862 = vmatpush.bf16.msra.mxu0 %v841
      %863 = vmatpush.bf16.msra.mxu0 %v840
      %864 = vmatmul.bf16.gmra.mxu0 %v800
      %v865 = vpop.f32.mrf.mxu0
      %v866 = vadd.f32 0.0, %v865
      %v867 = vpop.f32.mrf.mxu0
      %v868 = vadd.f32 0.0, %v867
      %869 = vmatmul.bf16.gmra.mxu0 %v801
      %v870 = vpop.f32.mrf.mxu0
      %v871 = vadd.f32 0.0, %v870
      %v872 = vpop.f32.mrf.mxu0
      %v873 = vadd.f32 0.0, %v872
      %874 = vmatmul.bf16.gmra.mxu0 %v802
      %v875 = vpop.f32.mrf.mxu0
      %v876 = vadd.f32 0.0, %v875
      %v877 = vpop.f32.mrf.mxu0
      %v878 = vadd.f32 0.0, %v877
      %879 = vmatmul.bf16.gmra.mxu0 %v803
      %v880 = vpop.f32.mrf.mxu0
      %v881 = vadd.f32 0.0, %v880
      %v882 = vpop.f32.mrf.mxu0
      %v883 = vadd.f32 0.0, %v882
      %884 = vdwg.mxu0
      %v885 = vadd.f32 %v750, %v866
      %v886 = vadd.f32 %v751, %v868
      %v887 = vadd.f32 %v752, %v871
      %v888 = vadd.f32 %v753, %v873
      %v889 = vadd.f32 %v754, %v876
      %v890 = vadd.f32 %v755, %v878
      %v891 = vadd.f32 %v756, %v881
      %v892 = vadd.f32 %v757, %v883
      %s893 = scalar_lea.vmem %s243, 216
      %v894 = vld [vmem:[%s893] sm:$0xf]
      %v895 = vld [vmem:[%s893 + $0x8] sm:$0xf]
      %v896 = vld [vmem:[%s893 + $0x10] sm:$0xf]
      %v897 = vld [vmem:[%s893 + $0x18] sm:$0xf]
      %v898 = vld [vmem:[%s893 + $0x20] sm:$0xf]
      %v899 = vld [vmem:[%s893 + $0x28] sm:$0xf]
      %v900 = vld [vmem:[%s893 + $0x30] sm:$0xf]
      %v901 = vld [vmem:[%s893 + $0x38] sm:$0xf]
      %s902 = scalar_lea.vmem %s1, 256
      %v903 = vld [vmem:[%s902] sm:$0xf]
      %v904 = vld [vmem:[%s902 + $0x4] sm:$0xf]
      %v905 = vld [vmem:[%s902 + $0x8] sm:$0xf]
      %v906 = vld [vmem:[%s902 + $0xc] sm:$0xf]
      %v907 = vld [vmem:[%s902 + $0x10] sm:$0xf]
      %v908 = vld [vmem:[%s902 + $0x14] sm:$0xf]
      %v909 = vld [vmem:[%s902 + $0x18] sm:$0xf]
      %v910 = vld [vmem:[%s902 + $0x1c] sm:$0xf]
      %v911 = vld [vmem:[%s902 + $0x20] sm:$0xf]
      %v912 = vld [vmem:[%s902 + $0x24] sm:$0xf]
      %v913 = vld [vmem:[%s902 + $0x28] sm:$0xf]
      %v914 = vld [vmem:[%s902 + $0x2c] sm:$0xf]
      %v915 = vld [vmem:[%s902 + $0x30] sm:$0xf]
      %v916 = vld [vmem:[%s902 + $0x34] sm:$0xf]
      %v917 = vld [vmem:[%s902 + $0x38] sm:$0xf]
      %v918 = vld [vmem:[%s902 + $0x3c] sm:$0xf]
      %v927 = vunpack.c.l.b16 %v894
      %v928 = vunpack.c.l.b16 %v895
      %v929 = vunpack.c.l.b16 %v896
      %v930 = vunpack.c.l.b16 %v897
      %v931 = vunpack.c.l.b16 %v898
      %v932 = vunpack.c.l.b16 %v899
      %v933 = vunpack.c.l.b16 %v900
      %v934 = vunpack.c.l.b16 %v901
      %v935 = vpack.c.b16 %v928, %v927
      %v936 = vpack.c.b16 %v930, %v929
      %v937 = vpack.c.b16 %v932, %v931
      %v938 = vpack.c.b16 %v934, %v933
      %v959 = vunpack.c.l.b16 %v903
      %v960 = vunpack.c.l.b16 %v904
      %v961 = vunpack.c.l.b16 %v905
      %v962 = vunpack.c.l.b16 %v906
      %v963 = vunpack.c.l.b16 %v907
      %v964 = vunpack.c.l.b16 %v908
      %v965 = vunpack.c.l.b16 %v909
      %v966 = vunpack.c.l.b16 %v910
      %v967 = vunpack.c.l.b16 %v911
      %v968 = vunpack.c.l.b16 %v912
      %v969 = vunpack.c.l.b16 %v913
      %v970 = vunpack.c.l.b16 %v914
      %v971 = vunpack.c.l.b16 %v915
      %v972 = vunpack.c.l.b16 %v916
      %v973 = vunpack.c.l.b16 %v917
      %v974 = vunpack.c.l.b16 %v918
      %v975 = vpack.c.b16 %v960, %v959
      %v976 = vpack.c.b16 %v962, %v961
      %v977 = vpack.c.b16 %v964, %v963
      %v978 = vpack.c.b16 %v966, %v965
      %v979 = vpack.c.b16 %v968, %v967
      %v980 = vpack.c.b16 %v970, %v969
      %v981 = vpack.c.b16 %v972, %v971
      %v982 = vpack.c.b16 %v974, %v973
      %991 = vmatpush.bf16.msra.mxu0 %v982
      %992 = vmatpush.bf16.msra.mxu0 %v981
      %993 = vmatpush.bf16.msra.mxu0 %v980
      %994 = vmatpush.bf16.msra.mxu0 %v979
      %995 = vmatpush.bf16.msra.mxu0 %v978
      %996 = vmatpush.bf16.msra.mxu0 %v977
      %997 = vmatpush.bf16.msra.mxu0 %v976
      %998 = vmatpush.bf16.msra.mxu0 %v975
      %999 = vmatmul.bf16.gmra.mxu0 %v935
      %v1000 = vpop.f32.mrf.mxu0
      %v1001 = vadd.f32 0.0, %v1000
      %v1002 = vpop.f32.mrf.mxu0
      %v1003 = vadd.f32 0.0, %v1002
      %1004 = vmatmul.bf16.gmra.mxu0 %v936
      %v1005 = vpop.f32.mrf.mxu0
      %v1006 = vadd.f32 0.0, %v1005
      %v1007 = vpop.f32.mrf.mxu0
      %v1008 = vadd.f32 0.0, %v1007
      %1009 = vmatmul.bf16.gmra.mxu0 %v937
      %v1010 = vpop.f32.mrf.mxu0
      %v1011 = vadd.f32 0.0, %v1010
      %v1012 = vpop.f32.mrf.mxu0
      %v1013 = vadd.f32 0.0, %v1012
      %1014 = vmatmul.bf16.gmra.mxu0 %v938
      %v1015 = vpop.f32.mrf.mxu0
      %v1016 = vadd.f32 0.0, %v1015
      %v1017 = vpop.f32.mrf.mxu0
      %v1018 = vadd.f32 0.0, %v1017
      %1019 = vdwg.mxu0
      %v1020 = vadd.f32 %v885, %v1001
      %v1021 = vadd.f32 %v886, %v1003
      %v1022 = vadd.f32 %v887, %v1006
      %v1023 = vadd.f32 %v888, %v1008
      %v1024 = vadd.f32 %v889, %v1011
      %v1025 = vadd.f32 %v890, %v1013
      %v1026 = vadd.f32 %v891, %v1016
      %v1027 = vadd.f32 %v892, %v1018
      %v1028 = vld [vmem:[%s758] sm:$0xf]
      %v1029 = vld [vmem:[%s758 + $0x4] sm:$0x1]
      %v1030 = vld [vmem:[%s758 + $0x8] sm:$0xf]
      %v1031 = vld [vmem:[%s758 + $0xc] sm:$0x1]
      %v1032 = vld [vmem:[%s758 + $0x10] sm:$0xf]
      %v1033 = vld [vmem:[%s758 + $0x14] sm:$0x1]
      %v1034 = vld [vmem:[%s758 + $0x18] sm:$0xf]
      %v1035 = vld [vmem:[%s758 + $0x1c] sm:$0x1]
      %v1036 = vld [vmem:[%s758 + $0x20] sm:$0xf]
      %v1037 = vld [vmem:[%s758 + $0x24] sm:$0x1]
      %v1038 = vld [vmem:[%s758 + $0x28] sm:$0xf]
      %v1039 = vld [vmem:[%s758 + $0x2c] sm:$0x1]
      %v1040 = vld [vmem:[%s758 + $0x30] sm:$0xf]
      %v1041 = vld [vmem:[%s758 + $0x34] sm:$0x1]
      %v1042 = vld [vmem:[%s758 + $0x38] sm:$0xf]
      %v1043 = vld [vmem:[%s758 + $0x3c] sm:$0x1]
      %v1045 = vshrl.u32 %v1028, 16
      %v1047 = vrot.slane %v1045, 4
      %v1048 = vshll.u32 %v1028, 16
      %v1050 = vrot.slane %v1048, 5
      %v1051 = vor.u32 %v1047, %v1050
      %v1052 = vrot.slane %v1051, 4
      %v1054 = vshll.u32 %v1029, 16
      %v1056 = vrot.slane %v1054, 5
      %v1057 = vsel %vm527, %v1052, %v1056
      %v1059 = vshrl.u32 %v1030, 16
      %v1061 = vrot.slane %v1059, 4
      %v1062 = vshll.u32 %v1030, 16
      %v1064 = vrot.slane %v1062, 5
      %v1065 = vor.u32 %v1061, %v1064
      %v1066 = vrot.slane %v1065, 4
      %v1068 = vshll.u32 %v1031, 16
      %v1070 = vrot.slane %v1068, 5
      %v1071 = vsel %vm527, %v1066, %v1070
      %v1073 = vshrl.u32 %v1032, 16
      %v1075 = vrot.slane %v1073, 4
      %v1076 = vshll.u32 %v1032, 16
      %v1078 = vrot.slane %v1076, 5
      %v1079 = vor.u32 %v1075, %v1078
      %v1080 = vrot.slane %v1079, 4
      %v1082 = vshll.u32 %v1033, 16
      %v1084 = vrot.slane %v1082, 5
      %v1085 = vsel %vm527, %v1080, %v1084
      %v1087 = vshrl.u32 %v1034, 16
      %v1089 = vrot.slane %v1087, 4
      %v1090 = vshll.u32 %v1034, 16
      %v1092 = vrot.slane %v1090, 5
      %v1093 = vor.u32 %v1089, %v1092
      %v1094 = vrot.slane %v1093, 4
      %v1096 = vshll.u32 %v1035, 16
      %v1098 = vrot.slane %v1096, 5
      %v1099 = vsel %vm527, %v1094, %v1098
      %v1101 = vshrl.u32 %v1036, 16
      %v1103 = vrot.slane %v1101, 4
      %v1104 = vshll.u32 %v1036, 16
      %v1106 = vrot.slane %v1104, 5
      %v1107 = vor.u32 %v1103, %v1106
      %v1108 = vrot.slane %v1107, 4
      %v1110 = vshll.u32 %v1037, 16
      %v1112 = vrot.slane %v1110, 5
      %v1113 = vsel %vm527, %v1108, %v1112
      %v1115 = vshrl.u32 %v1038, 16
      %v1117 = vrot.slane %v1115, 4
      %v1118 = vshll.u32 %v1038, 16
      %v1120 = vrot.slane %v1118, 5
      %v1121 = vor.u32 %v1117, %v1120
      %v1122 = vrot.slane %v1121, 4
      %v1124 = vshll.u32 %v1039, 16
      %v1126 = vrot.slane %v1124, 5
      %v1127 = vsel %vm527, %v1122, %v1126
      %v1129 = vshrl.u32 %v1040, 16
      %v1131 = vrot.slane %v1129, 4
      %v1132 = vshll.u32 %v1040, 16
      %v1134 = vrot.slane %v1132, 5
      %v1135 = vor.u32 %v1131, %v1134
      %v1136 = vrot.slane %v1135, 4
      %v1138 = vshll.u32 %v1041, 16
      %v1140 = vrot.slane %v1138, 5
      %v1141 = vsel %vm527, %v1136, %v1140
      %v1143 = vshrl.u32 %v1042, 16
      %v1145 = vrot.slane %v1143, 4
      %v1146 = vshll.u32 %v1042, 16
      %v1148 = vrot.slane %v1146, 5
      %v1149 = vor.u32 %v1145, %v1148
      %v1150 = vrot.slane %v1149, 4
      %v1152 = vshll.u32 %v1043, 16
      %v1154 = vrot.slane %v1152, 5
      %v1155 = vsel %vm527, %v1150, %v1154
      %s1156 = scalar_lea.vmem %s1, 320
      %v1157 = vld [vmem:[%s1156] sm:$0xf]
      %v1158 = vld [vmem:[%s1156 + $0x4] sm:$0xf]
      %v1159 = vld [vmem:[%s1156 + $0x8] sm:$0xf]
      %v1160 = vld [vmem:[%s1156 + $0xc] sm:$0xf]
      %v1161 = vld [vmem:[%s1156 + $0x10] sm:$0xf]
      %v1162 = vld [vmem:[%s1156 + $0x14] sm:$0xf]
      %v1163 = vld [vmem:[%s1156 + $0x18] sm:$0xf]
      %v1164 = vld [vmem:[%s1156 + $0x1c] sm:$0xf]
      %v1165 = vld [vmem:[%s1156 + $0x20] sm:$0xf]
      %v1166 = vld [vmem:[%s1156 + $0x24] sm:$0xf]
      %v1167 = vld [vmem:[%s1156 + $0x28] sm:$0xf]
      %v1168 = vld [vmem:[%s1156 + $0x2c] sm:$0xf]
      %v1169 = vld [vmem:[%s1156 + $0x30] sm:$0xf]
      %v1170 = vld [vmem:[%s1156 + $0x34] sm:$0xf]
      %v1171 = vld [vmem:[%s1156 + $0x38] sm:$0xf]
      %v1172 = vld [vmem:[%s1156 + $0x3c] sm:$0xf]
      %v1173 = vunpack.c.l.b16 %v1057
      %v1174 = vunpack.c.l.b16 %v1071
      %v1175 = vunpack.c.l.b16 %v1085
      %v1176 = vunpack.c.l.b16 %v1099
      %v1177 = vunpack.c.l.b16 %v1113
      %v1178 = vunpack.c.l.b16 %v1127
      %v1179 = vunpack.c.l.b16 %v1141
      %v1180 = vunpack.c.l.b16 %v1155
      %v1181 = vpack.c.b16 %v1174, %v1173
      %v1182 = vpack.c.b16 %v1176, %v1175
      %v1183 = vpack.c.b16 %v1178, %v1177
      %v1184 = vpack.c.b16 %v1180, %v1179
      %v1205 = vunpack.c.l.b16 %v1157
      %v1206 = vunpack.c.l.b16 %v1158
      %v1207 = vunpack.c.l.b16 %v1159
      %v1208 = vunpack.c.l.b16 %v1160
      %v1209 = vunpack.c.l.b16 %v1161
      %v1210 = vunpack.c.l.b16 %v1162
      %v1211 = vunpack.c.l.b16 %v1163
      %v1212 = vunpack.c.l.b16 %v1164
      %v1213 = vunpack.c.l.b16 %v1165
      %v1214 = vunpack.c.l.b16 %v1166
      %v1215 = vunpack.c.l.b16 %v1167
      %v1216 = vunpack.c.l.b16 %v1168
      %v1217 = vunpack.c.l.b16 %v1169
      %v1218 = vunpack.c.l.b16 %v1170
      %v1219 = vunpack.c.l.b16 %v1171
      %v1220 = vunpack.c.l.b16 %v1172
      %v1221 = vpack.c.b16 %v1206, %v1205
      %v1222 = vpack.c.b16 %v1208, %v1207
      %v1223 = vpack.c.b16 %v1210, %v1209
      %v1224 = vpack.c.b16 %v1212, %v1211
      %v1225 = vpack.c.b16 %v1214, %v1213
      %v1226 = vpack.c.b16 %v1216, %v1215
      %v1227 = vpack.c.b16 %v1218, %v1217
      %v1228 = vpack.c.b16 %v1220, %v1219
      %1237 = vmatpush.bf16.msra.mxu0 %v1228
      %1238 = vmatpush.bf16.msra.mxu0 %v1227
      %1239 = vmatpush.bf16.msra.mxu0 %v1226
      %1240 = vmatpush.bf16.msra.mxu0 %v1225
      %1241 = vmatpush.bf16.msra.mxu0 %v1224
      %1242 = vmatpush.bf16.msra.mxu0 %v1223
      %1243 = vmatpush.bf16.msra.mxu0 %v1222
      %1244 = vmatpush.bf16.msra.mxu0 %v1221
      %1245 = vmatmul.bf16.gmra.mxu0 %v1181
      %v1246 = vpop.f32.mrf.mxu0
      %v1247 = vadd.f32 0.0, %v1246
      %v1248 = vpop.f32.mrf.mxu0
      %v1249 = vadd.f32 0.0, %v1248
      %1250 = vmatmul.bf16.gmra.mxu0 %v1182
      %v1251 = vpop.f32.mrf.mxu0
      %v1252 = vadd.f32 0.0, %v1251
      %v1253 = vpop.f32.mrf.mxu0
      %v1254 = vadd.f32 0.0, %v1253
      %1255 = vmatmul.bf16.gmra.mxu0 %v1183
      %v1256 = vpop.f32.mrf.mxu0
      %v1257 = vadd.f32 0.0, %v1256
      %v1258 = vpop.f32.mrf.mxu0
      %v1259 = vadd.f32 0.0, %v1258
      %1260 = vmatmul.bf16.gmra.mxu0 %v1184
      %v1261 = vpop.f32.mrf.mxu0
      %v1262 = vadd.f32 0.0, %v1261
      %v1263 = vpop.f32.mrf.mxu0
      %v1264 = vadd.f32 0.0, %v1263
      %1265 = vdwg.mxu0
      %v1266 = vadd.f32 %v1020, %v1247
      %v1267 = vadd.f32 %v1021, %v1249
      %v1268 = vadd.f32 %v1022, %v1252
      %v1269 = vadd.f32 %v1023, %v1254
      %v1270 = vadd.f32 %v1024, %v1257
      %v1271 = vadd.f32 %v1025, %v1259
      %v1272 = vadd.f32 %v1026, %v1262
      %v1273 = vadd.f32 %v1027, %v1264
      %s1274 = scalar_lea.vmem %s243, 8
      %v1275 = vld [vmem:[%s1274] sm:$0xf]
      %v1276 = vld [vmem:[%s1274 + $0x8] sm:$0xf]
      %v1277 = vld [vmem:[%s1274 + $0x10] sm:$0xf]
      %v1278 = vld [vmem:[%s1274 + $0x18] sm:$0xf]
      %v1279 = vld [vmem:[%s1274 + $0x20] sm:$0xf]
      %v1280 = vld [vmem:[%s1274 + $0x28] sm:$0xf]
      %v1281 = vld [vmem:[%s1274 + $0x30] sm:$0xf]
      %v1282 = vld [vmem:[%s1274 + $0x38] sm:$0xf]
      %s1283 = scalar_lea.vmem %s1, 384
      %v1284 = vld [vmem:[%s1283] sm:$0xf]
      %v1285 = vld [vmem:[%s1283 + $0x4] sm:$0xf]
      %v1286 = vld [vmem:[%s1283 + $0x8] sm:$0xf]
      %v1287 = vld [vmem:[%s1283 + $0xc] sm:$0xf]
      %v1288 = vld [vmem:[%s1283 + $0x10] sm:$0xf]
      %v1289 = vld [vmem:[%s1283 + $0x14] sm:$0xf]
      %v1290 = vld [vmem:[%s1283 + $0x18] sm:$0xf]
      %v1291 = vld [vmem:[%s1283 + $0x1c] sm:$0xf]
      %v1292 = vld [vmem:[%s1283 + $0x20] sm:$0xf]
      %v1293 = vld [vmem:[%s1283 + $0x24] sm:$0xf]
      %v1294 = vld [vmem:[%s1283 + $0x28] sm:$0xf]
      %v1295 = vld [vmem:[%s1283 + $0x2c] sm:$0xf]
      %v1296 = vld [vmem:[%s1283 + $0x30] sm:$0xf]
      %v1297 = vld [vmem:[%s1283 + $0x34] sm:$0xf]
      %v1298 = vld [vmem:[%s1283 + $0x38] sm:$0xf]
      %v1299 = vld [vmem:[%s1283 + $0x3c] sm:$0xf]
      %v1308 = vunpack.c.l.b16 %v1275
      %v1309 = vunpack.c.l.b16 %v1276
      %v1310 = vunpack.c.l.b16 %v1277
      %v1311 = vunpack.c.l.b16 %v1278
      %v1312 = vunpack.c.l.b16 %v1279
      %v1313 = vunpack.c.l.b16 %v1280
      %v1314 = vunpack.c.l.b16 %v1281
      %v1315 = vunpack.c.l.b16 %v1282
      %v1316 = vpack.c.b16 %v1309, %v1308
      %v1317 = vpack.c.b16 %v1311, %v1310
      %v1318 = vpack.c.b16 %v1313, %v1312
      %v1319 = vpack.c.b16 %v1315, %v1314
      %v1340 = vunpack.c.l.b16 %v1284
      %v1341 = vunpack.c.l.b16 %v1285
      %v1342 = vunpack.c.l.b16 %v1286
      %v1343 = vunpack.c.l.b16 %v1287
      %v1344 = vunpack.c.l.b16 %v1288
      %v1345 = vunpack.c.l.b16 %v1289
      %v1346 = vunpack.c.l.b16 %v1290
      %v1347 = vunpack.c.l.b16 %v1291
      %v1348 = vunpack.c.l.b16 %v1292
      %v1349 = vunpack.c.l.b16 %v1293
      %v1350 = vunpack.c.l.b16 %v1294
      %v1351 = vunpack.c.l.b16 %v1295
      %v1352 = vunpack.c.l.b16 %v1296
      %v1353 = vunpack.c.l.b16 %v1297
      %v1354 = vunpack.c.l.b16 %v1298
      %v1355 = vunpack.c.l.b16 %v1299
      %v1356 = vpack.c.b16 %v1341, %v1340
      %v1357 = vpack.c.b16 %v1343, %v1342
      %v1358 = vpack.c.b16 %v1345, %v1344
      %v1359 = vpack.c.b16 %v1347, %v1346
      %v1360 = vpack.c.b16 %v1349, %v1348
      %v1361 = vpack.c.b16 %v1351, %v1350
      %v1362 = vpack.c.b16 %v1353, %v1352
      %v1363 = vpack.c.b16 %v1355, %v1354
      %1372 = vmatpush.bf16.msra.mxu0 %v1363
      %1373 = vmatpush.bf16.msra.mxu0 %v1362
      %1374 = vmatpush.bf16.msra.mxu0 %v1361
      %1375 = vmatpush.bf16.msra.mxu0 %v1360
      %1376 = vmatpush.bf16.msra.mxu0 %v1359
      %1377 = vmatpush.bf16.msra.mxu0 %v1358
      %1378 = vmatpush.bf16.msra.mxu0 %v1357
      %1379 = vmatpush.bf16.msra.mxu0 %v1356
      %1380 = vmatmul.bf16.gmra.mxu0 %v1316
      %v1381 = vpop.f32.mrf.mxu0
      %v1382 = vadd.f32 0.0, %v1381
      %v1383 = vpop.f32.mrf.mxu0
      %v1384 = vadd.f32 0.0, %v1383
      %1385 = vmatmul.bf16.gmra.mxu0 %v1317
      %v1386 = vpop.f32.mrf.mxu0
      %v1387 = vadd.f32 0.0, %v1386
      %v1388 = vpop.f32.mrf.mxu0
      %v1389 = vadd.f32 0.0, %v1388
      %1390 = vmatmul.bf16.gmra.mxu0 %v1318
      %v1391 = vpop.f32.mrf.mxu0
      %v1392 = vadd.f32 0.0, %v1391
      %v1393 = vpop.f32.mrf.mxu0
      %v1394 = vadd.f32 0.0, %v1393
      %1395 = vmatmul.bf16.gmra.mxu0 %v1319
      %v1396 = vpop.f32.mrf.mxu0
      %v1397 = vadd.f32 0.0, %v1396
      %v1398 = vpop.f32.mrf.mxu0
      %v1399 = vadd.f32 0.0, %v1398
      %1400 = vdwg.mxu0
      %v1401 = vadd.f32 %v1266, %v1382
      %v1402 = vadd.f32 %v1267, %v1384
      %v1403 = vadd.f32 %v1268, %v1387
      %v1404 = vadd.f32 %v1269, %v1389
      %v1405 = vadd.f32 %v1270, %v1392
      %v1406 = vadd.f32 %v1271, %v1394
      %v1407 = vadd.f32 %v1272, %v1397
      %v1408 = vadd.f32 %v1273, %v1399
      %s1409 = scalar_lea.vmem %s243, 80
      %v1410 = vld [vmem:[%s1409] sm:$0xf]
      %v1411 = vld [vmem:[%s1409 + $0x8] sm:$0xf]
      %v1412 = vld [vmem:[%s1409 + $0x10] sm:$0xf]
      %v1413 = vld [vmem:[%s1409 + $0x18] sm:$0xf]
      %v1414 = vld [vmem:[%s1409 + $0x20] sm:$0xf]
      %v1415 = vld [vmem:[%s1409 + $0x28] sm:$0xf]
      %v1416 = vld [vmem:[%s1409 + $0x30] sm:$0xf]
      %v1417 = vld [vmem:[%s1409 + $0x38] sm:$0xf]
      %s1418 = scalar_lea.vmem %s1, 448
      %v1419 = vld [vmem:[%s1418] sm:$0xf]
      %v1420 = vld [vmem:[%s1418 + $0x4] sm:$0xf]
      %v1421 = vld [vmem:[%s1418 + $0x8] sm:$0xf]
      %v1422 = vld [vmem:[%s1418 + $0xc] sm:$0xf]
      %v1423 = vld [vmem:[%s1418 + $0x10] sm:$0xf]
      %v1424 = vld [vmem:[%s1418 + $0x14] sm:$0xf]
      %v1425 = vld [vmem:[%s1418 + $0x18] sm:$0xf]
      %v1426 = vld [vmem:[%s1418 + $0x1c] sm:$0xf]
      %v1427 = vld [vmem:[%s1418 + $0x20] sm:$0xf]
      %v1428 = vld [vmem:[%s1418 + $0x24] sm:$0xf]
      %v1429 = vld [vmem:[%s1418 + $0x28] sm:$0xf]
      %v1430 = vld [vmem:[%s1418 + $0x2c] sm:$0xf]
      %v1431 = vld [vmem:[%s1418 + $0x30] sm:$0xf]
      %v1432 = vld [vmem:[%s1418 + $0x34] sm:$0xf]
      %v1433 = vld [vmem:[%s1418 + $0x38] sm:$0xf]
      %v1434 = vld [vmem:[%s1418 + $0x3c] sm:$0xf]
      %v1443 = vunpack.c.l.b16 %v1410
      %v1444 = vunpack.c.l.b16 %v1411
      %v1445 = vunpack.c.l.b16 %v1412
      %v1446 = vunpack.c.l.b16 %v1413
      %v1447 = vunpack.c.l.b16 %v1414
      %v1448 = vunpack.c.l.b16 %v1415
      %v1449 = vunpack.c.l.b16 %v1416
      %v1450 = vunpack.c.l.b16 %v1417
      %v1451 = vpack.c.b16 %v1444, %v1443
      %v1452 = vpack.c.b16 %v1446, %v1445
      %v1453 = vpack.c.b16 %v1448, %v1447
      %v1454 = vpack.c.b16 %v1450, %v1449
      %v1475 = vunpack.c.l.b16 %v1419
      %v1476 = vunpack.c.l.b16 %v1420
      %v1477 = vunpack.c.l.b16 %v1421
      %v1478 = vunpack.c.l.b16 %v1422
      %v1479 = vunpack.c.l.b16 %v1423
      %v1480 = vunpack.c.l.b16 %v1424
      %v1481 = vunpack.c.l.b16 %v1425
      %v1482 = vunpack.c.l.b16 %v1426
      %v1483 = vunpack.c.l.b16 %v1427
      %v1484 = vunpack.c.l.b16 %v1428
      %v1485 = vunpack.c.l.b16 %v1429
      %v1486 = vunpack.c.l.b16 %v1430
      %v1487 = vunpack.c.l.b16 %v1431
      %v1488 = vunpack.c.l.b16 %v1432
      %v1489 = vunpack.c.l.b16 %v1433
      %v1490 = vunpack.c.l.b16 %v1434
      %v1491 = vpack.c.b16 %v1476, %v1475
      %v1492 = vpack.c.b16 %v1478, %v1477
      %v1493 = vpack.c.b16 %v1480, %v1479
      %v1494 = vpack.c.b16 %v1482, %v1481
      %v1495 = vpack.c.b16 %v1484, %v1483
      %v1496 = vpack.c.b16 %v1486, %v1485
      %v1497 = vpack.c.b16 %v1488, %v1487
      %v1498 = vpack.c.b16 %v1490, %v1489
      %1507 = vmatpush.bf16.msra.mxu0 %v1498
      %1508 = vmatpush.bf16.msra.mxu0 %v1497
      %1509 = vmatpush.bf16.msra.mxu0 %v1496
      %1510 = vmatpush.bf16.msra.mxu0 %v1495
      %1511 = vmatpush.bf16.msra.mxu0 %v1494
      %1512 = vmatpush.bf16.msra.mxu0 %v1493
      %1513 = vmatpush.bf16.msra.mxu0 %v1492
      %1514 = vmatpush.bf16.msra.mxu0 %v1491
      %1515 = vmatmul.bf16.gmra.mxu0 %v1451
      %v1516 = vpop.f32.mrf.mxu0
      %v1517 = vadd.f32 0.0, %v1516
      %v1518 = vpop.f32.mrf.mxu0
      %v1519 = vadd.f32 0.0, %v1518
      %1520 = vmatmul.bf16.gmra.mxu0 %v1452
      %v1521 = vpop.f32.mrf.mxu0
      %v1522 = vadd.f32 0.0, %v1521
      %v1523 = vpop.f32.mrf.mxu0
      %v1524 = vadd.f32 0.0, %v1523
      %1525 = vmatmul.bf16.gmra.mxu0 %v1453
      %v1526 = vpop.f32.mrf.mxu0
      %v1527 = vadd.f32 0.0, %v1526
      %v1528 = vpop.f32.mrf.mxu0
      %v1529 = vadd.f32 0.0, %v1528
      %1530 = vmatmul.bf16.gmra.mxu0 %v1454
      %v1531 = vpop.f32.mrf.mxu0
      %v1532 = vadd.f32 0.0, %v1531
      %v1533 = vpop.f32.mrf.mxu0
      %v1534 = vadd.f32 0.0, %v1533
      %1535 = vdwg.mxu0
      %v1536 = vadd.f32 %v1401, %v1517
      %v1537 = vadd.f32 %v1402, %v1519
      %v1538 = vadd.f32 %v1403, %v1522
      %v1539 = vadd.f32 %v1404, %v1524
      %v1540 = vadd.f32 %v1405, %v1527
      %v1541 = vadd.f32 %v1406, %v1529
      %v1542 = vadd.f32 %v1407, %v1532
      %v1543 = vadd.f32 %v1408, %v1534
      %v1544 = vld [vmem:[%s1274] sm:$0xf]
      %v1545 = vld [vmem:[%s1274 + $0x4] sm:$0x1]
      %v1546 = vld [vmem:[%s1274 + $0x8] sm:$0xf]
      %v1547 = vld [vmem:[%s1274 + $0xc] sm:$0x1]
      %v1548 = vld [vmem:[%s1274 + $0x10] sm:$0xf]
      %v1549 = vld [vmem:[%s1274 + $0x14] sm:$0x1]
      %v1550 = vld [vmem:[%s1274 + $0x18] sm:$0xf]
      %v1551 = vld [vmem:[%s1274 + $0x1c] sm:$0x1]
      %v1552 = vld [vmem:[%s1274 + $0x20] sm:$0xf]
      %v1553 = vld [vmem:[%s1274 + $0x24] sm:$0x1]
      %v1554 = vld [vmem:[%s1274 + $0x28] sm:$0xf]
      %v1555 = vld [vmem:[%s1274 + $0x2c] sm:$0x1]
      %v1556 = vld [vmem:[%s1274 + $0x30] sm:$0xf]
      %v1557 = vld [vmem:[%s1274 + $0x34] sm:$0x1]
      %v1558 = vld [vmem:[%s1274 + $0x38] sm:$0xf]
      %v1559 = vld [vmem:[%s1274 + $0x3c] sm:$0x1]
      %v1561 = vshrl.u32 %v1544, 16
      %v1563 = vrot.slane %v1561, 4
      %v1564 = vshll.u32 %v1544, 16
      %v1566 = vrot.slane %v1564, 5
      %v1567 = vor.u32 %v1563, %v1566
      %v1568 = vrot.slane %v1567, 4
      %v1570 = vshll.u32 %v1545, 16
      %v1572 = vrot.slane %v1570, 5
      %v1573 = vsel %vm527, %v1568, %v1572
      %v1575 = vshrl.u32 %v1546, 16
      %v1577 = vrot.slane %v1575, 4
      %v1578 = vshll.u32 %v1546, 16
      %v1580 = vrot.slane %v1578, 5
      %v1581 = vor.u32 %v1577, %v1580
      %v1582 = vrot.slane %v1581, 4
      %v1584 = vshll.u32 %v1547, 16
      %v1586 = vrot.slane %v1584, 5
      %v1587 = vsel %vm527, %v1582, %v1586
      %v1589 = vshrl.u32 %v1548, 16
      %v1591 = vrot.slane %v1589, 4
      %v1592 = vshll.u32 %v1548, 16
      %v1594 = vrot.slane %v1592, 5
      %v1595 = vor.u32 %v1591, %v1594
      %v1596 = vrot.slane %v1595, 4
      %v1598 = vshll.u32 %v1549, 16
      %v1600 = vrot.slane %v1598, 5
      %v1601 = vsel %vm527, %v1596, %v1600
      %v1603 = vshrl.u32 %v1550, 16
      %v1605 = vrot.slane %v1603, 4
      %v1606 = vshll.u32 %v1550, 16
      %v1608 = vrot.slane %v1606, 5
      %v1609 = vor.u32 %v1605, %v1608
      %v1610 = vrot.slane %v1609, 4
      %v1612 = vshll.u32 %v1551, 16
      %v1614 = vrot.slane %v1612, 5
      %v1615 = vsel %vm527, %v1610, %v1614
      %v1617 = vshrl.u32 %v1552, 16
      %v1619 = vrot.slane %v1617, 4
      %v1620 = vshll.u32 %v1552, 16
      %v1622 = vrot.slane %v1620, 5
      %v1623 = vor.u32 %v1619, %v1622
      %v1624 = vrot.slane %v1623, 4
      %v1626 = vshll.u32 %v1553, 16
      %v1628 = vrot.slane %v1626, 5
      %v1629 = vsel %vm527, %v1624, %v1628
      %v1631 = vshrl.u32 %v1554, 16
      %v1633 = vrot.slane %v1631, 4
      %v1634 = vshll.u32 %v1554, 16
      %v1636 = vrot.slane %v1634, 5
      %v1637 = vor.u32 %v1633, %v1636
      %v1638 = vrot.slane %v1637, 4
      %v1640 = vshll.u32 %v1555, 16
      %v1642 = vrot.slane %v1640, 5
      %v1643 = vsel %vm527, %v1638, %v1642
      %v1645 = vshrl.u32 %v1556, 16
      %v1647 = vrot.slane %v1645, 4
      %v1648 = vshll.u32 %v1556, 16
      %v1650 = vrot.slane %v1648, 5
      %v1651 = vor.u32 %v1647, %v1650
      %v1652 = vrot.slane %v1651, 4
      %v1654 = vshll.u32 %v1557, 16
      %v1656 = vrot.slane %v1654, 5
      %v1657 = vsel %vm527, %v1652, %v1656
      %v1659 = vshrl.u32 %v1558, 16
      %v1661 = vrot.slane %v1659, 4
      %v1662 = vshll.u32 %v1558, 16
      %v1664 = vrot.slane %v1662, 5
      %v1665 = vor.u32 %v1661, %v1664
      %v1666 = vrot.slane %v1665, 4
      %v1668 = vshll.u32 %v1559, 16
      %v1670 = vrot.slane %v1668, 5
      %v1671 = vsel %vm527, %v1666, %v1670
      %s1672 = scalar_lea.vmem %s1, 512
      %v1673 = vld [vmem:[%s1672] sm:$0xf]
      %v1674 = vld [vmem:[%s1672 + $0x4] sm:$0xf]
      %v1675 = vld [vmem:[%s1672 + $0x8] sm:$0xf]
      %v1676 = vld [vmem:[%s1672 + $0xc] sm:$0xf]
      %v1677 = vld [vmem:[%s1672 + $0x10] sm:$0xf]
      %v1678 = vld [vmem:[%s1672 + $0x14] sm:$0xf]
      %v1679 = vld [vmem:[%s1672 + $0x18] sm:$0xf]
      %v1680 = vld [vmem:[%s1672 + $0x1c] sm:$0xf]
      %v1681 = vld [vmem:[%s1672 + $0x20] sm:$0xf]
      %v1682 = vld [vmem:[%s1672 + $0x24] sm:$0xf]
      %v1683 = vld [vmem:[%s1672 + $0x28] sm:$0xf]
      %v1684 = vld [vmem:[%s1672 + $0x2c] sm:$0xf]
      %v1685 = vld [vmem:[%s1672 + $0x30] sm:$0xf]
      %v1686 = vld [vmem:[%s1672 + $0x34] sm:$0xf]
      %v1687 = vld [vmem:[%s1672 + $0x38] sm:$0xf]
      %v1688 = vld [vmem:[%s1672 + $0x3c] sm:$0xf]
      %v1689 = vunpack.c.l.b16 %v1573
      %v1690 = vunpack.c.l.b16 %v1587
      %v1691 = vunpack.c.l.b16 %v1601
      %v1692 = vunpack.c.l.b16 %v1615
      %v1693 = vunpack.c.l.b16 %v1629
      %v1694 = vunpack.c.l.b16 %v1643
      %v1695 = vunpack.c.l.b16 %v1657
      %v1696 = vunpack.c.l.b16 %v1671
      %v1697 = vpack.c.b16 %v1690, %v1689
      %v1698 = vpack.c.b16 %v1692, %v1691
      %v1699 = vpack.c.b16 %v1694, %v1693
      %v1700 = vpack.c.b16 %v1696, %v1695
      %v1721 = vunpack.c.l.b16 %v1673
      %v1722 = vunpack.c.l.b16 %v1674
      %v1723 = vunpack.c.l.b16 %v1675
      %v1724 = vunpack.c.l.b16 %v1676
      %v1725 = vunpack.c.l.b16 %v1677
      %v1726 = vunpack.c.l.b16 %v1678
      %v1727 = vunpack.c.l.b16 %v1679
      %v1728 = vunpack.c.l.b16 %v1680
      %v1729 = vunpack.c.l.b16 %v1681
      %v1730 = vunpack.c.l.b16 %v1682
      %v1731 = vunpack.c.l.b16 %v1683
      %v1732 = vunpack.c.l.b16 %v1684
      %v1733 = vunpack.c.l.b16 %v1685
      %v1734 = vunpack.c.l.b16 %v1686
      %v1735 = vunpack.c.l.b16 %v1687
      %v1736 = vunpack.c.l.b16 %v1688
      %v1737 = vpack.c.b16 %v1722, %v1721
      %v1738 = vpack.c.b16 %v1724, %v1723
      %v1739 = vpack.c.b16 %v1726, %v1725
      %v1740 = vpack.c.b16 %v1728, %v1727
      %v1741 = vpack.c.b16 %v1730, %v1729
      %v1742 = vpack.c.b16 %v1732, %v1731
      %v1743 = vpack.c.b16 %v1734, %v1733
      %v1744 = vpack.c.b16 %v1736, %v1735
      %1753 = vmatpush.bf16.msra.mxu0 %v1744
      %1754 = vmatpush.bf16.msra.mxu0 %v1743
      %1755 = vmatpush.bf16.msra.mxu0 %v1742
      %1756 = vmatpush.bf16.msra.mxu0 %v1741
      %1757 = vmatpush.bf16.msra.mxu0 %v1740
      %1758 = vmatpush.bf16.msra.mxu0 %v1739
      %1759 = vmatpush.bf16.msra.mxu0 %v1738
      %1760 = vmatpush.bf16.msra.mxu0 %v1737
      %1761 = vmatmul.bf16.gmra.mxu0 %v1697
      %v1762 = vpop.f32.mrf.mxu0
      %v1763 = vadd.f32 0.0, %v1762
      %v1764 = vpop.f32.mrf.mxu0
      %v1765 = vadd.f32 0.0, %v1764
      %1766 = vmatmul.bf16.gmra.mxu0 %v1698
      %v1767 = vpop.f32.mrf.mxu0
      %v1768 = vadd.f32 0.0, %v1767
      %v1769 = vpop.f32.mrf.mxu0
      %v1770 = vadd.f32 0.0, %v1769
      %1771 = vmatmul.bf16.gmra.mxu0 %v1699
      %v1772 = vpop.f32.mrf.mxu0
      %v1773 = vadd.f32 0.0, %v1772
      %v1774 = vpop.f32.mrf.mxu0
      %v1775 = vadd.f32 0.0, %v1774
      %1776 = vmatmul.bf16.gmra.mxu0 %v1700
      %v1777 = vpop.f32.mrf.mxu0
      %v1778 = vadd.f32 0.0, %v1777
      %v1779 = vpop.f32.mrf.mxu0
      %v1780 = vadd.f32 0.0, %v1779
      %1781 = vdwg.mxu0
      %v1782 = vadd.f32 %v1536, %v1763
      %v1783 = vadd.f32 %v1537, %v1765
      %v1784 = vadd.f32 %v1538, %v1768
      %v1785 = vadd.f32 %v1539, %v1770
      %v1786 = vadd.f32 %v1540, %v1773
      %v1787 = vadd.f32 %v1541, %v1775
      %v1788 = vadd.f32 %v1542, %v1778
      %v1789 = vadd.f32 %v1543, %v1780
      %v1791 = vperm.slane %v255, 0
      %v1793 = vadd.f32 %v1782, %v1791
      %v1794 = vadd.f32 %v1783, %v1791
      %v1795 = vadd.f32 %v1784, %v1791
      %v1796 = vadd.f32 %v1785, %v1791
      %v1797 = vadd.f32 %v1786, %v1791
      %v1798 = vadd.f32 %v1787, %v1791
      %v1799 = vadd.f32 %v1788, %v1791
      %v1800 = vadd.f32 %v1789, %v1791
      %v1801 = vmax.f32 %v1793, 0.0
      %v1802 = vmax.f32 %v1794, 0.0
      %v1803 = vmax.f32 %v1795, 0.0
      %v1804 = vmax.f32 %v1796, 0.0
      %v1805 = vmax.f32 %v1797, 0.0
      %v1806 = vmax.f32 %v1798, 0.0
      %v1807 = vmax.f32 %v1799, 0.0
      %v1808 = vmax.f32 %v1800, 0.0
      %v1809 = vpack.c.bf16 %v1801, %v1801
      %v1810 = vpack.c.bf16 %v1802, %v1802
      %v1811 = vpack.c.bf16 %v1803, %v1803
      %v1812 = vpack.c.bf16 %v1804, %v1804
      %v1813 = vpack.c.bf16 %v1805, %v1805
      %v1814 = vpack.c.bf16 %v1806, %v1806
      %v1815 = vpack.c.bf16 %v1807, %v1807
      %v1816 = vpack.c.bf16 %v1808, %v1808
      %v1825 = vunpack.c.l.b16 %v1809
      %v1826 = vunpack.c.l.b16 %v1810
      %v1827 = vunpack.c.l.b16 %v1811
      %v1828 = vunpack.c.l.b16 %v1812
      %v1829 = vunpack.c.l.b16 %v1813
      %v1830 = vunpack.c.l.b16 %v1814
      %v1831 = vunpack.c.l.b16 %v1815
      %v1832 = vunpack.c.l.b16 %v1816
      %v1833 = vpack.c.b16 %v1826, %v1825
      %v1834 = vpack.c.b16 %v1828, %v1827
      %v1835 = vpack.c.b16 %v1830, %v1829
      %v1836 = vpack.c.b16 %v1832, %v1831
      %v1841 = vld [vmem:[%s3] sm:$0xf]
      %v1842 = vld [vmem:[%s3 + $0x4] sm:$0xf]
      %v1843 = vld [vmem:[%s3 + $0x8] sm:$0xf]
      %v1844 = vld [vmem:[%s3 + $0xc] sm:$0xf]
      %v1845 = vld [vmem:[%s3 + $0x10] sm:$0xf]
      %v1846 = vld [vmem:[%s3 + $0x14] sm:$0xf]
      %v1847 = vld [vmem:[%s3 + $0x18] sm:$0xf]
      %v1848 = vld [vmem:[%s3 + $0x1c] sm:$0xf]
      %v1849 = vld [vmem:[%s3 + $0x20] sm:$0xf]
      %v1850 = vld [vmem:[%s3 + $0x24] sm:$0xf]
      %v1851 = vld [vmem:[%s3 + $0x28] sm:$0xf]
      %v1852 = vld [vmem:[%s3 + $0x2c] sm:$0xf]
      %v1853 = vld [vmem:[%s3 + $0x30] sm:$0xf]
      %v1854 = vld [vmem:[%s3 + $0x34] sm:$0xf]
      %v1855 = vld [vmem:[%s3 + $0x38] sm:$0xf]
      %v1856 = vld [vmem:[%s3 + $0x3c] sm:$0xf]
      %v1857 = vld [vmem:[%s3 + $0x40] sm:$0xf]
      %v1858 = vld [vmem:[%s3 + $0x44] sm:$0xf]
      %v1859 = vld [vmem:[%s3 + $0x48] sm:$0xf]
      %v1860 = vld [vmem:[%s3 + $0x4c] sm:$0xf]
      %v1861 = vld [vmem:[%s3 + $0x50] sm:$0xf]
      %v1862 = vld [vmem:[%s3 + $0x54] sm:$0xf]
      %v1863 = vld [vmem:[%s3 + $0x58] sm:$0xf]
      %v1864 = vld [vmem:[%s3 + $0x5c] sm:$0xf]
      %v1865 = vld [vmem:[%s3 + $0x60] sm:$0xf]
      %v1866 = vld [vmem:[%s3 + $0x64] sm:$0xf]
      %v1867 = vld [vmem:[%s3 + $0x68] sm:$0xf]
      %v1868 = vld [vmem:[%s3 + $0x6c] sm:$0xf]
      %v1869 = vld [vmem:[%s3 + $0x70] sm:$0xf]
      %v1870 = vld [vmem:[%s3 + $0x74] sm:$0xf]
      %v1871 = vld [vmem:[%s3 + $0x78] sm:$0xf]
      %v1872 = vld [vmem:[%s3 + $0x7c] sm:$0xf]
      %1873 = vmatpush.bf16.msra.mxu0 %v370
      %1874 = vmatpush.bf16.msra.mxu0 %v369
      %1875 = vmatpush.bf16.msra.mxu0 %v368
      %1876 = vmatpush.bf16.msra.mxu0 %v367
      %1877 = vmatpush.bf16.msra.mxu0 %v366
      %1878 = vmatpush.bf16.msra.mxu0 %v365
      %1879 = vmatpush.bf16.msra.mxu0 %v364
      %1880 = vmatpush.bf16.msra.mxu0 %v363
      %1881 = vmatmul.bf16.gmra.mxu0 %v665
      %v1882 = vpop.f32.mrf.mxu0
      %v1883 = vadd.f32 0.0, %v1882
      %v1884 = vpop.f32.mrf.mxu0
      %v1885 = vadd.f32 0.0, %v1884
      %1886 = vmatmul.bf16.gmra.mxu0 %v666
      %v1887 = vpop.f32.mrf.mxu0
      %v1888 = vadd.f32 0.0, %v1887
      %v1889 = vpop.f32.mrf.mxu0
      %v1890 = vadd.f32 0.0, %v1889
      %1891 = vmatmul.bf16.gmra.mxu0 %v667
      %v1892 = vpop.f32.mrf.mxu0
      %v1893 = vadd.f32 0.0, %v1892
      %v1894 = vpop.f32.mrf.mxu0
      %v1895 = vadd.f32 0.0, %v1894
      %1896 = vmatmul.bf16.gmra.mxu0 %v668
      %v1897 = vpop.f32.mrf.mxu0
      %v1898 = vadd.f32 0.0, %v1897
      %v1899 = vpop.f32.mrf.mxu0
      %v1900 = vadd.f32 0.0, %v1899
      %1901 = vdwg.mxu0
      %1902 = vmatpush.bf16.msra.mxu0 %v471
      %1903 = vmatpush.bf16.msra.mxu0 %v470
      %1904 = vmatpush.bf16.msra.mxu0 %v469
      %1905 = vmatpush.bf16.msra.mxu0 %v468
      %1906 = vmatpush.bf16.msra.mxu0 %v467
      %1907 = vmatpush.bf16.msra.mxu0 %v466
      %1908 = vmatpush.bf16.msra.mxu0 %v465
      %1909 = vmatpush.bf16.msra.mxu0 %v464
      %1910 = vmatmul.bf16.gmra.mxu0 %v323
      %v1911 = vpop.f32.mrf.mxu0
      %v1912 = vadd.f32 %v1883, %v1911
      %v1913 = vpop.f32.mrf.mxu0
      %v1914 = vadd.f32 %v1885, %v1913
      %1915 = vmatmul.bf16.gmra.mxu0 %v324
      %v1916 = vpop.f32.mrf.mxu0
      %v1917 = vadd.f32 %v1888, %v1916
      %v1918 = vpop.f32.mrf.mxu0
      %v1919 = vadd.f32 %v1890, %v1918
      %1920 = vmatmul.bf16.gmra.mxu0 %v325
      %v1921 = vpop.f32.mrf.mxu0
      %v1922 = vadd.f32 %v1893, %v1921
      %v1923 = vpop.f32.mrf.mxu0
      %v1924 = vadd.f32 %v1895, %v1923
      %1925 = vmatmul.bf16.gmra.mxu0 %v326
      %v1926 = vpop.f32.mrf.mxu0
      %v1927 = vadd.f32 %v1898, %v1926
      %v1928 = vpop.f32.mrf.mxu0
      %v1929 = vadd.f32 %v1900, %v1928
      %1930 = vdwg.mxu0
      %v1931 = vld [vmem:[%s281] sm:$0xf]
      %v1932 = vld [vmem:[%s281 + $0x4] sm:$0x1]
      %v1933 = vld [vmem:[%s281 + $0x8] sm:$0xf]
      %v1934 = vld [vmem:[%s281 + $0xc] sm:$0x1]
      %v1935 = vld [vmem:[%s281 + $0x10] sm:$0xf]
      %v1936 = vld [vmem:[%s281 + $0x14] sm:$0x1]
      %v1937 = vld [vmem:[%s281 + $0x18] sm:$0xf]
      %v1938 = vld [vmem:[%s281 + $0x1c] sm:$0x1]
      %v1939 = vld [vmem:[%s281 + $0x20] sm:$0xf]
      %v1940 = vld [vmem:[%s281 + $0x24] sm:$0x1]
      %v1941 = vld [vmem:[%s281 + $0x28] sm:$0xf]
      %v1942 = vld [vmem:[%s281 + $0x2c] sm:$0x1]
      %v1943 = vld [vmem:[%s281 + $0x30] sm:$0xf]
      %v1944 = vld [vmem:[%s281 + $0x34] sm:$0x1]
      %v1945 = vld [vmem:[%s281 + $0x38] sm:$0xf]
      %v1946 = vld [vmem:[%s281 + $0x3c] sm:$0x1]
      %v1948 = vshrl.u32 %v1931, 16
      %v1950 = vrot.slane %v1948, 4
      %v1951 = vshll.u32 %v1931, 16
      %v1953 = vrot.slane %v1951, 5
      %v1954 = vor.u32 %v1950, %v1953
      %v1955 = vrot.slane %v1954, 4
      %v1957 = vshll.u32 %v1932, 16
      %v1959 = vrot.slane %v1957, 5
      %v1960 = vsel %vm527, %v1955, %v1959
      %v1962 = vshrl.u32 %v1933, 16
      %v1964 = vrot.slane %v1962, 4
      %v1965 = vshll.u32 %v1933, 16
      %v1967 = vrot.slane %v1965, 5
      %v1968 = vor.u32 %v1964, %v1967
      %v1969 = vrot.slane %v1968, 4
      %v1971 = vshll.u32 %v1934, 16
      %v1973 = vrot.slane %v1971, 5
      %v1974 = vsel %vm527, %v1969, %v1973
      %v1976 = vshrl.u32 %v1935, 16
      %v1978 = vrot.slane %v1976, 4
      %v1979 = vshll.u32 %v1935, 16
      %v1981 = vrot.slane %v1979, 5
      %v1982 = vor.u32 %v1978, %v1981
      %v1983 = vrot.slane %v1982, 4
      %v1985 = vshll.u32 %v1936, 16
      %v1987 = vrot.slane %v1985, 5
      %v1988 = vsel %vm527, %v1983, %v1987
      %v1990 = vshrl.u32 %v1937, 16
      %v1992 = vrot.slane %v1990, 4
      %v1993 = vshll.u32 %v1937, 16
      %v1995 = vrot.slane %v1993, 5
      %v1996 = vor.u32 %v1992, %v1995
      %v1997 = vrot.slane %v1996, 4
      %v1999 = vshll.u32 %v1938, 16
      %v2001 = vrot.slane %v1999, 5
      %v2002 = vsel %vm527, %v1997, %v2001
      %v2004 = vshrl.u32 %v1939, 16
      %v2006 = vrot.slane %v2004, 4
      %v2007 = vshll.u32 %v1939, 16
      %v2009 = vrot.slane %v2007, 5
      %v2010 = vor.u32 %v2006, %v2009
      %v2011 = vrot.slane %v2010, 4
      %v2013 = vshll.u32 %v1940, 16
      %v2015 = vrot.slane %v2013, 5
      %v2016 = vsel %vm527, %v2011, %v2015
      %v2018 = vshrl.u32 %v1941, 16
      %v2020 = vrot.slane %v2018, 4
      %v2021 = vshll.u32 %v1941, 16
      %v2023 = vrot.slane %v2021, 5
      %v2024 = vor.u32 %v2020, %v2023
      %v2025 = vrot.slane %v2024, 4
      %v2027 = vshll.u32 %v1942, 16
      %v2029 = vrot.slane %v2027, 5
      %v2030 = vsel %vm527, %v2025, %v2029
      %v2032 = vshrl.u32 %v1943, 16
      %v2034 = vrot.slane %v2032, 4
      %v2035 = vshll.u32 %v1943, 16
      %v2037 = vrot.slane %v2035, 5
      %v2038 = vor.u32 %v2034, %v2037
      %v2039 = vrot.slane %v2038, 4
      %v2041 = vshll.u32 %v1944, 16
      %v2043 = vrot.slane %v2041, 5
      %v2044 = vsel %vm527, %v2039, %v2043
      %v2046 = vshrl.u32 %v1945, 16
      %v2048 = vrot.slane %v2046, 4
      %v2049 = vshll.u32 %v1945, 16
      %v2051 = vrot.slane %v2049, 5
      %v2052 = vor.u32 %v2048, %v2051
      %v2053 = vrot.slane %v2052, 4
      %v2055 = vshll.u32 %v1946, 16
      %v2057 = vrot.slane %v2055, 5
      %v2058 = vsel %vm527, %v2053, %v2057
      %v2059 = vunpack.c.l.b16 %v1960
      %v2060 = vunpack.c.l.b16 %v1974
      %v2061 = vunpack.c.l.b16 %v1988
      %v2062 = vunpack.c.l.b16 %v2002
      %v2063 = vunpack.c.l.b16 %v2016
      %v2064 = vunpack.c.l.b16 %v2030
      %v2065 = vunpack.c.l.b16 %v2044
      %v2066 = vunpack.c.l.b16 %v2058
      %v2067 = vpack.c.b16 %v2060, %v2059
      %v2068 = vpack.c.b16 %v2062, %v2061
      %v2069 = vpack.c.b16 %v2064, %v2063
      %v2070 = vpack.c.b16 %v2066, %v2065
      %2075 = vmatpush.bf16.msra.mxu0 %v712
      %2076 = vmatpush.bf16.msra.mxu0 %v711
      %2077 = vmatpush.bf16.msra.mxu0 %v710
      %2078 = vmatpush.bf16.msra.mxu0 %v709
      %2079 = vmatpush.bf16.msra.mxu0 %v708
      %2080 = vmatpush.bf16.msra.mxu0 %v707
      %2081 = vmatpush.bf16.msra.mxu0 %v706
      %2082 = vmatpush.bf16.msra.mxu0 %v705
      %2083 = vmatmul.bf16.gmra.mxu0 %v2067
      %v2084 = vpop.f32.mrf.mxu0
      %v2085 = vadd.f32 0.0, %v2084
      %v2086 = vpop.f32.mrf.mxu0
      %v2087 = vadd.f32 0.0, %v2086
      %2088 = vmatmul.bf16.gmra.mxu0 %v2068
      %v2089 = vpop.f32.mrf.mxu0
      %v2090 = vadd.f32 0.0, %v2089
      %v2091 = vpop.f32.mrf.mxu0
      %v2092 = vadd.f32 0.0, %v2091
      %2093 = vmatmul.bf16.gmra.mxu0 %v2069
      %v2094 = vpop.f32.mrf.mxu0
      %v2095 = vadd.f32 0.0, %v2094
      %v2096 = vpop.f32.mrf.mxu0
      %v2097 = vadd.f32 0.0, %v2096
      %2098 = vmatmul.bf16.gmra.mxu0 %v2070
      %v2099 = vpop.f32.mrf.mxu0
      %v2100 = vadd.f32 0.0, %v2099
      %v2101 = vpop.f32.mrf.mxu0
      %v2102 = vadd.f32 0.0, %v2101
      %2103 = vdwg.mxu0
      %v2104 = vadd.f32 %v1912, %v2085
      %v2105 = vadd.f32 %v1914, %v2087
      %v2106 = vadd.f32 %v1917, %v2090
      %v2107 = vadd.f32 %v1919, %v2092
      %v2108 = vadd.f32 %v1922, %v2095
      %v2109 = vadd.f32 %v1924, %v2097
      %v2110 = vadd.f32 %v1927, %v2100
      %v2111 = vadd.f32 %v1929, %v2102
      %2112 = vmatpush.bf16.msra.mxu0 %v847
      %2113 = vmatpush.bf16.msra.mxu0 %v846
      %2114 = vmatpush.bf16.msra.mxu0 %v845
      %2115 = vmatpush.bf16.msra.mxu0 %v844
      %2116 = vmatpush.bf16.msra.mxu0 %v843
      %2117 = vmatpush.bf16.msra.mxu0 %v842
      %2118 = vmatpush.bf16.msra.mxu0 %v841
      %2119 = vmatpush.bf16.msra.mxu0 %v840
      %2120 = vmatmul.bf16.gmra.mxu0 %v935
      %v2121 = vpop.f32.mrf.mxu0
      %v2122 = vadd.f32 0.0, %v2121
      %v2123 = vpop.f32.mrf.mxu0
      %v2124 = vadd.f32 0.0, %v2123
      %2125 = vmatmul.bf16.gmra.mxu0 %v936
      %v2126 = vpop.f32.mrf.mxu0
      %v2127 = vadd.f32 0.0, %v2126
      %v2128 = vpop.f32.mrf.mxu0
      %v2129 = vadd.f32 0.0, %v2128
      %2130 = vmatmul.bf16.gmra.mxu0 %v937
      %v2131 = vpop.f32.mrf.mxu0
      %v2132 = vadd.f32 0.0, %v2131
      %v2133 = vpop.f32.mrf.mxu0
      %v2134 = vadd.f32 0.0, %v2133
      %2135 = vmatmul.bf16.gmra.mxu0 %v938
      %v2136 = vpop.f32.mrf.mxu0
      %v2137 = vadd.f32 0.0, %v2136
      %v2138 = vpop.f32.mrf.mxu0
      %v2139 = vadd.f32 0.0, %v2138
      %2140 = vdwg.mxu0
      %v2141 = vadd.f32 %v2104, %v2122
      %v2142 = vadd.f32 %v2105, %v2124
      %v2143 = vadd.f32 %v2106, %v2127
      %v2144 = vadd.f32 %v2107, %v2129
      %v2145 = vadd.f32 %v2108, %v2132
      %v2146 = vadd.f32 %v2109, %v2134
      %v2147 = vadd.f32 %v2110, %v2137
      %v2148 = vadd.f32 %v2111, %v2139
      %2149 = vmatpush.bf16.msra.mxu0 %v982
      %2150 = vmatpush.bf16.msra.mxu0 %v981
      %2151 = vmatpush.bf16.msra.mxu0 %v980
      %2152 = vmatpush.bf16.msra.mxu0 %v979
      %2153 = vmatpush.bf16.msra.mxu0 %v978
      %2154 = vmatpush.bf16.msra.mxu0 %v977
      %2155 = vmatpush.bf16.msra.mxu0 %v976
      %2156 = vmatpush.bf16.msra.mxu0 %v975
      %2157 = vmatmul.bf16.gmra.mxu0 %v1181
      %v2158 = vpop.f32.mrf.mxu0
      %v2159 = vadd.f32 0.0, %v2158
      %v2160 = vpop.f32.mrf.mxu0
      %v2161 = vadd.f32 0.0, %v2160
      %2162 = vmatmul.bf16.gmra.mxu0 %v1182
      %v2163 = vpop.f32.mrf.mxu0
      %v2164 = vadd.f32 0.0, %v2163
      %v2165 = vpop.f32.mrf.mxu0
      %v2166 = vadd.f32 0.0, %v2165
      %2167 = vmatmul.bf16.gmra.mxu0 %v1183
      %v2168 = vpop.f32.mrf.mxu0
      %v2169 = vadd.f32 0.0, %v2168
      %v2170 = vpop.f32.mrf.mxu0
      %v2171 = vadd.f32 0.0, %v2170
      %2172 = vmatmul.bf16.gmra.mxu0 %v1184
      %v2173 = vpop.f32.mrf.mxu0
      %v2174 = vadd.f32 0.0, %v2173
      %v2175 = vpop.f32.mrf.mxu0
      %v2176 = vadd.f32 0.0, %v2175
      %2177 = vdwg.mxu0
      %v2178 = vadd.f32 %v2141, %v2159
      %v2179 = vadd.f32 %v2142, %v2161
      %v2180 = vadd.f32 %v2143, %v2164
      %v2181 = vadd.f32 %v2144, %v2166
      %v2182 = vadd.f32 %v2145, %v2169
      %v2183 = vadd.f32 %v2146, %v2171
      %v2184 = vadd.f32 %v2147, %v2174
      %v2185 = vadd.f32 %v2148, %v2176
      %v2186 = vld [vmem:[%s893] sm:$0xf]
      %v2187 = vld [vmem:[%s893 + $0x4] sm:$0x1]
      %v2188 = vld [vmem:[%s893 + $0x8] sm:$0xf]
      %v2189 = vld [vmem:[%s893 + $0xc] sm:$0x1]
      %v2190 = vld [vmem:[%s893 + $0x10] sm:$0xf]
      %v2191 = vld [vmem:[%s893 + $0x14] sm:$0x1]
      %v2192 = vld [vmem:[%s893 + $0x18] sm:$0xf]
      %v2193 = vld [vmem:[%s893 + $0x1c] sm:$0x1]
      %v2194 = vld [vmem:[%s893 + $0x20] sm:$0xf]
      %v2195 = vld [vmem:[%s893 + $0x24] sm:$0x1]
      %v2196 = vld [vmem:[%s893 + $0x28] sm:$0xf]
      %v2197 = vld [vmem:[%s893 + $0x2c] sm:$0x1]
      %v2198 = vld [vmem:[%s893 + $0x30] sm:$0xf]
      %v2199 = vld [vmem:[%s893 + $0x34] sm:$0x1]
      %v2200 = vld [vmem:[%s893 + $0x38] sm:$0xf]
      %v2201 = vld [vmem:[%s893 + $0x3c] sm:$0x1]
      %v2203 = vshrl.u32 %v2186, 16
      %v2205 = vrot.slane %v2203, 4
      %v2206 = vshll.u32 %v2186, 16
      %v2208 = vrot.slane %v2206, 5
      %v2209 = vor.u32 %v2205, %v2208
      %v2210 = vrot.slane %v2209, 4
      %v2212 = vshll.u32 %v2187, 16
      %v2214 = vrot.slane %v2212, 5
      %v2215 = vsel %vm527, %v2210, %v2214
      %v2217 = vshrl.u32 %v2188, 16
      %v2219 = vrot.slane %v2217, 4
      %v2220 = vshll.u32 %v2188, 16
      %v2222 = vrot.slane %v2220, 5
      %v2223 = vor.u32 %v2219, %v2222
      %v2224 = vrot.slane %v2223, 4
      %v2226 = vshll.u32 %v2189, 16
      %v2228 = vrot.slane %v2226, 5
      %v2229 = vsel %vm527, %v2224, %v2228
      %v2231 = vshrl.u32 %v2190, 16
      %v2233 = vrot.slane %v2231, 4
      %v2234 = vshll.u32 %v2190, 16
      %v2236 = vrot.slane %v2234, 5
      %v2237 = vor.u32 %v2233, %v2236
      %v2238 = vrot.slane %v2237, 4
      %v2240 = vshll.u32 %v2191, 16
      %v2242 = vrot.slane %v2240, 5
      %v2243 = vsel %vm527, %v2238, %v2242
      %v2245 = vshrl.u32 %v2192, 16
      %v2247 = vrot.slane %v2245, 4
      %v2248 = vshll.u32 %v2192, 16
      %v2250 = vrot.slane %v2248, 5
      %v2251 = vor.u32 %v2247, %v2250
      %v2252 = vrot.slane %v2251, 4
      %v2254 = vshll.u32 %v2193, 16
      %v2256 = vrot.slane %v2254, 5
      %v2257 = vsel %vm527, %v2252, %v2256
      %v2259 = vshrl.u32 %v2194, 16
      %v2261 = vrot.slane %v2259, 4
      %v2262 = vshll.u32 %v2194, 16
      %v2264 = vrot.slane %v2262, 5
      %v2265 = vor.u32 %v2261, %v2264
      %v2266 = vrot.slane %v2265, 4
      %v2268 = vshll.u32 %v2195, 16
      %v2270 = vrot.slane %v2268, 5
      %v2271 = vsel %vm527, %v2266, %v2270
      %v2273 = vshrl.u32 %v2196, 16
      %v2275 = vrot.slane %v2273, 4
      %v2276 = vshll.u32 %v2196, 16
      %v2278 = vrot.slane %v2276, 5
      %v2279 = vor.u32 %v2275, %v2278
      %v2280 = vrot.slane %v2279, 4
      %v2282 = vshll.u32 %v2197, 16
      %v2284 = vrot.slane %v2282, 5
      %v2285 = vsel %vm527, %v2280, %v2284
      %v2287 = vshrl.u32 %v2198, 16
      %v2289 = vrot.slane %v2287, 4
      %v2290 = vshll.u32 %v2198, 16
      %v2292 = vrot.slane %v2290, 5
      %v2293 = vor.u32 %v2289, %v2292
      %v2294 = vrot.slane %v2293, 4
      %v2296 = vshll.u32 %v2199, 16
      %v2298 = vrot.slane %v2296, 5
      %v2299 = vsel %vm527, %v2294, %v2298
      %v2301 = vshrl.u32 %v2200, 16
      %v2303 = vrot.slane %v2301, 4
      %v2304 = vshll.u32 %v2200, 16
      %v2306 = vrot.slane %v2304, 5
      %v2307 = vor.u32 %v2303, %v2306
      %v2308 = vrot.slane %v2307, 4
      %v2310 = vshll.u32 %v2201, 16
      %v2312 = vrot.slane %v2310, 5
      %v2313 = vsel %vm527, %v2308, %v2312
      %v2314 = vunpack.c.l.b16 %v2215
      %v2315 = vunpack.c.l.b16 %v2229
      %v2316 = vunpack.c.l.b16 %v2243
      %v2317 = vunpack.c.l.b16 %v2257
      %v2318 = vunpack.c.l.b16 %v2271
      %v2319 = vunpack.c.l.b16 %v2285
      %v2320 = vunpack.c.l.b16 %v2299
      %v2321 = vunpack.c.l.b16 %v2313
      %v2322 = vpack.c.b16 %v2315, %v2314
      %v2323 = vpack.c.b16 %v2317, %v2316
      %v2324 = vpack.c.b16 %v2319, %v2318
      %v2325 = vpack.c.b16 %v2321, %v2320
      %2330 = vmatpush.bf16.msra.mxu0 %v1228
      %2331 = vmatpush.bf16.msra.mxu0 %v1227
      %2332 = vmatpush.bf16.msra.mxu0 %v1226
      %2333 = vmatpush.bf16.msra.mxu0 %v1225
      %2334 = vmatpush.bf16.msra.mxu0 %v1224
      %2335 = vmatpush.bf16.msra.mxu0 %v1223
      %2336 = vmatpush.bf16.msra.mxu0 %v1222
      %2337 = vmatpush.bf16.msra.mxu0 %v1221
      %2338 = vmatmul.bf16.gmra.mxu0 %v2322
      %v2339 = vpop.f32.mrf.mxu0
      %v2340 = vadd.f32 0.0, %v2339
      %v2341 = vpop.f32.mrf.mxu0
      %v2342 = vadd.f32 0.0, %v2341
      %2343 = vmatmul.bf16.gmra.mxu0 %v2323
      %v2344 = vpop.f32.mrf.mxu0
      %v2345 = vadd.f32 0.0, %v2344
      %v2346 = vpop.f32.mrf.mxu0
      %v2347 = vadd.f32 0.0, %v2346
      %2348 = vmatmul.bf16.gmra.mxu0 %v2324
      %v2349 = vpop.f32.mrf.mxu0
      %v2350 = vadd.f32 0.0, %v2349
      %v2351 = vpop.f32.mrf.mxu0
      %v2352 = vadd.f32 0.0, %v2351
      %2353 = vmatmul.bf16.gmra.mxu0 %v2325
      %v2354 = vpop.f32.mrf.mxu0
      %v2355 = vadd.f32 0.0, %v2354
      %v2356 = vpop.f32.mrf.mxu0
      %v2357 = vadd.f32 0.0, %v2356
      %2358 = vdwg.mxu0
      %v2359 = vadd.f32 %v2178, %v2340
      %v2360 = vadd.f32 %v2179, %v2342
      %v2361 = vadd.f32 %v2180, %v2345
      %v2362 = vadd.f32 %v2181, %v2347
      %v2363 = vadd.f32 %v2182, %v2350
      %v2364 = vadd.f32 %v2183, %v2352
      %v2365 = vadd.f32 %v2184, %v2355
      %v2366 = vadd.f32 %v2185, %v2357
      %2367 = vmatpush.bf16.msra.mxu0 %v1363
      %2368 = vmatpush.bf16.msra.mxu0 %v1362
      %2369 = vmatpush.bf16.msra.mxu0 %v1361
      %2370 = vmatpush.bf16.msra.mxu0 %v1360
      %2371 = vmatpush.bf16.msra.mxu0 %v1359
      %2372 = vmatpush.bf16.msra.mxu0 %v1358
      %2373 = vmatpush.bf16.msra.mxu0 %v1357
      %2374 = vmatpush.bf16.msra.mxu0 %v1356
      %2375 = vmatmul.bf16.gmra.mxu0 %v1451
      %v2376 = vpop.f32.mrf.mxu0
      %v2377 = vadd.f32 0.0, %v2376
      %v2378 = vpop.f32.mrf.mxu0
      %v2379 = vadd.f32 0.0, %v2378
      %2380 = vmatmul.bf16.gmra.mxu0 %v1452
      %v2381 = vpop.f32.mrf.mxu0
      %v2382 = vadd.f32 0.0, %v2381
      %v2383 = vpop.f32.mrf.mxu0
      %v2384 = vadd.f32 0.0, %v2383
      %2385 = vmatmul.bf16.gmra.mxu0 %v1453
      %v2386 = vpop.f32.mrf.mxu0
      %v2387 = vadd.f32 0.0, %v2386
      %v2388 = vpop.f32.mrf.mxu0
      %v2389 = vadd.f32 0.0, %v2388
      %2390 = vmatmul.bf16.gmra.mxu0 %v1454
      %v2391 = vpop.f32.mrf.mxu0
      %v2392 = vadd.f32 0.0, %v2391
      %v2393 = vpop.f32.mrf.mxu0
      %v2394 = vadd.f32 0.0, %v2393
      %2395 = vdwg.mxu0
      %v2396 = vadd.f32 %v2359, %v2377
      %v2397 = vadd.f32 %v2360, %v2379
      %v2398 = vadd.f32 %v2361, %v2382
      %v2399 = vadd.f32 %v2362, %v2384
      %v2400 = vadd.f32 %v2363, %v2387
      %v2401 = vadd.f32 %v2364, %v2389
      %v2402 = vadd.f32 %v2365, %v2392
      %v2403 = vadd.f32 %v2366, %v2394
      %2404 = vmatpush.bf16.msra.mxu0 %v1498
      %2405 = vmatpush.bf16.msra.mxu0 %v1497
      %2406 = vmatpush.bf16.msra.mxu0 %v1496
      %2407 = vmatpush.bf16.msra.mxu0 %v1495
      %2408 = vmatpush.bf16.msra.mxu0 %v1494
      %2409 = vmatpush.bf16.msra.mxu0 %v1493
      %2410 = vmatpush.bf16.msra.mxu0 %v1492
      %2411 = vmatpush.bf16.msra.mxu0 %v1491
      %2412 = vmatmul.bf16.gmra.mxu0 %v1697
      %v2413 = vpop.f32.mrf.mxu0
      %v2414 = vadd.f32 0.0, %v2413
      %v2415 = vpop.f32.mrf.mxu0
      %v2416 = vadd.f32 0.0, %v2415
      %2417 = vmatmul.bf16.gmra.mxu0 %v1698
      %v2418 = vpop.f32.mrf.mxu0
      %v2419 = vadd.f32 0.0, %v2418
      %v2420 = vpop.f32.mrf.mxu0
      %v2421 = vadd.f32 0.0, %v2420
      %2422 = vmatmul.bf16.gmra.mxu0 %v1699
      %v2423 = vpop.f32.mrf.mxu0
      %v2424 = vadd.f32 0.0, %v2423
      %v2425 = vpop.f32.mrf.mxu0
      %v2426 = vadd.f32 0.0, %v2425
      %2427 = vmatmul.bf16.gmra.mxu0 %v1700
      %v2428 = vpop.f32.mrf.mxu0
      %v2429 = vadd.f32 0.0, %v2428
      %v2430 = vpop.f32.mrf.mxu0
      %v2431 = vadd.f32 0.0, %v2430
      %2432 = vdwg.mxu0
      %v2433 = vadd.f32 %v2396, %v2414
      %v2434 = vadd.f32 %v2397, %v2416
      %v2435 = vadd.f32 %v2398, %v2419
      %v2436 = vadd.f32 %v2399, %v2421
      %v2437 = vadd.f32 %v2400, %v2424
      %v2438 = vadd.f32 %v2401, %v2426
      %v2439 = vadd.f32 %v2402, %v2429
      %v2440 = vadd.f32 %v2403, %v2431
      %v2441 = vld [vmem:[%s1409] sm:$0xf]
      %v2442 = vld [vmem:[%s1409 + $0x4] sm:$0x1]
      %v2443 = vld [vmem:[%s1409 + $0x8] sm:$0xf]
      %v2444 = vld [vmem:[%s1409 + $0xc] sm:$0x1]
      %v2445 = vld [vmem:[%s1409 + $0x10] sm:$0xf]
      %v2446 = vld [vmem:[%s1409 + $0x14] sm:$0x1]
      %v2447 = vld [vmem:[%s1409 + $0x18] sm:$0xf]
      %v2448 = vld [vmem:[%s1409 + $0x1c] sm:$0x1]
      %v2449 = vld [vmem:[%s1409 + $0x20] sm:$0xf]
      %v2450 = vld [vmem:[%s1409 + $0x24] sm:$0x1]
      %v2451 = vld [vmem:[%s1409 + $0x28] sm:$0xf]
      %v2452 = vld [vmem:[%s1409 + $0x2c] sm:$0x1]
      %v2453 = vld [vmem:[%s1409 + $0x30] sm:$0xf]
      %v2454 = vld [vmem:[%s1409 + $0x34] sm:$0x1]
      %v2455 = vld [vmem:[%s1409 + $0x38] sm:$0xf]
      %v2456 = vld [vmem:[%s1409 + $0x3c] sm:$0x1]
      %v2458 = vshrl.u32 %v2441, 16
      %v2460 = vrot.slane %v2458, 4
      %v2461 = vshll.u32 %v2441, 16
      %v2463 = vrot.slane %v2461, 5
      %v2464 = vor.u32 %v2460, %v2463
      %v2465 = vrot.slane %v2464, 4
      %v2467 = vshll.u32 %v2442, 16
      %v2469 = vrot.slane %v2467, 5
      %v2470 = vsel %vm527, %v2465, %v2469
      %v2472 = vshrl.u32 %v2443, 16
      %v2474 = vrot.slane %v2472, 4
      %v2475 = vshll.u32 %v2443, 16
      %v2477 = vrot.slane %v2475, 5
      %v2478 = vor.u32 %v2474, %v2477
      %v2479 = vrot.slane %v2478, 4
      %v2481 = vshll.u32 %v2444, 16
      %v2483 = vrot.slane %v2481, 5
      %v2484 = vsel %vm527, %v2479, %v2483
      %v2486 = vshrl.u32 %v2445, 16
      %v2488 = vrot.slane %v2486, 4
      %v2489 = vshll.u32 %v2445, 16
      %v2491 = vrot.slane %v2489, 5
      %v2492 = vor.u32 %v2488, %v2491
      %v2493 = vrot.slane %v2492, 4
      %v2495 = vshll.u32 %v2446, 16
      %v2497 = vrot.slane %v2495, 5
      %v2498 = vsel %vm527, %v2493, %v2497
      %v2500 = vshrl.u32 %v2447, 16
      %v2502 = vrot.slane %v2500, 4
      %v2503 = vshll.u32 %v2447, 16
      %v2505 = vrot.slane %v2503, 5
      %v2506 = vor.u32 %v2502, %v2505
      %v2507 = vrot.slane %v2506, 4
      %v2509 = vshll.u32 %v2448, 16
      %v2511 = vrot.slane %v2509, 5
      %v2512 = vsel %vm527, %v2507, %v2511
      %v2514 = vshrl.u32 %v2449, 16
      %v2516 = vrot.slane %v2514, 4
      %v2517 = vshll.u32 %v2449, 16
      %v2519 = vrot.slane %v2517, 5
      %v2520 = vor.u32 %v2516, %v2519
      %v2521 = vrot.slane %v2520, 4
      %v2523 = vshll.u32 %v2450, 16
      %v2525 = vrot.slane %v2523, 5
      %v2526 = vsel %vm527, %v2521, %v2525
      %v2528 = vshrl.u32 %v2451, 16
      %v2530 = vrot.slane %v2528, 4
      %v2531 = vshll.u32 %v2451, 16
      %v2533 = vrot.slane %v2531, 5
      %v2534 = vor.u32 %v2530, %v2533
      %v2535 = vrot.slane %v2534, 4
      %v2537 = vshll.u32 %v2452, 16
      %v2539 = vrot.slane %v2537, 5
      %v2540 = vsel %vm527, %v2535, %v2539
      %v2542 = vshrl.u32 %v2453, 16
      %v2544 = vrot.slane %v2542, 4
      %v2545 = vshll.u32 %v2453, 16
      %v2547 = vrot.slane %v2545, 5
      %v2548 = vor.u32 %v2544, %v2547
      %v2549 = vrot.slane %v2548, 4
      %v2551 = vshll.u32 %v2454, 16
      %v2553 = vrot.slane %v2551, 5
      %v2554 = vsel %vm527, %v2549, %v2553
      %v2556 = vshrl.u32 %v2455, 16
      %v2558 = vrot.slane %v2556, 4
      %v2559 = vshll.u32 %v2455, 16
      %v2561 = vrot.slane %v2559, 5
      %v2562 = vor.u32 %v2558, %v2561
      %v2563 = vrot.slane %v2562, 4
      %v2565 = vshll.u32 %v2456, 16
      %v2567 = vrot.slane %v2565, 5
      %v2568 = vsel %vm527, %v2563, %v2567
      %v2569 = vunpack.c.l.b16 %v2470
      %v2570 = vunpack.c.l.b16 %v2484
      %v2571 = vunpack.c.l.b16 %v2498
      %v2572 = vunpack.c.l.b16 %v2512
      %v2573 = vunpack.c.l.b16 %v2526
      %v2574 = vunpack.c.l.b16 %v2540
      %v2575 = vunpack.c.l.b16 %v2554
      %v2576 = vunpack.c.l.b16 %v2568
      %v2577 = vpack.c.b16 %v2570, %v2569
      %v2578 = vpack.c.b16 %v2572, %v2571
      %v2579 = vpack.c.b16 %v2574, %v2573
      %v2580 = vpack.c.b16 %v2576, %v2575
      %2585 = vmatpush.bf16.msra.mxu0 %v1744
      %2586 = vmatpush.bf16.msra.mxu0 %v1743
      %2587 = vmatpush.bf16.msra.mxu0 %v1742
      %2588 = vmatpush.bf16.msra.mxu0 %v1741
      %2589 = vmatpush.bf16.msra.mxu0 %v1740
      %2590 = vmatpush.bf16.msra.mxu0 %v1739
      %2591 = vmatpush.bf16.msra.mxu0 %v1738
      %2592 = vmatpush.bf16.msra.mxu0 %v1737
      %2593 = vmatmul.bf16.gmra.mxu0 %v2577
      %v2594 = vpop.f32.mrf.mxu0
      %v2595 = vadd.f32 0.0, %v2594
      %v2596 = vpop.f32.mrf.mxu0
      %v2597 = vadd.f32 0.0, %v2596
      %2598 = vmatmul.bf16.gmra.mxu0 %v2578
      %v2599 = vpop.f32.mrf.mxu0
      %v2600 = vadd.f32 0.0, %v2599
      %v2601 = vpop.f32.mrf.mxu0
      %v2602 = vadd.f32 0.0, %v2601
      %2603 = vmatmul.bf16.gmra.mxu0 %v2579
      %v2604 = vpop.f32.mrf.mxu0
      %v2605 = vadd.f32 0.0, %v2604
      %v2606 = vpop.f32.mrf.mxu0
      %v2607 = vadd.f32 0.0, %v2606
      %2608 = vmatmul.bf16.gmra.mxu0 %v2580
      %v2609 = vpop.f32.mrf.mxu0
      %v2610 = vadd.f32 0.0, %v2609
      %v2611 = vpop.f32.mrf.mxu0
      %v2612 = vadd.f32 0.0, %v2611
      %2613 = vdwg.mxu0
      %v2614 = vadd.f32 %v2433, %v2595
      %v2615 = vadd.f32 %v2434, %v2597
      %v2616 = vadd.f32 %v2435, %v2600
      %v2617 = vadd.f32 %v2436, %v2602
      %v2618 = vadd.f32 %v2437, %v2605
      %v2619 = vadd.f32 %v2438, %v2607
      %v2620 = vadd.f32 %v2439, %v2610
      %v2621 = vadd.f32 %v2440, %v2612
      %v2622 = vadd.f32 %v2614, %v1791
      %v2623 = vadd.f32 %v2615, %v1791
      %v2624 = vadd.f32 %v2616, %v1791
      %v2625 = vadd.f32 %v2617, %v1791
      %v2626 = vadd.f32 %v2618, %v1791
      %v2627 = vadd.f32 %v2619, %v1791
      %v2628 = vadd.f32 %v2620, %v1791
      %v2629 = vadd.f32 %v2621, %v1791
      %v2630 = vmax.f32 %v2622, 0.0
      %v2631 = vmax.f32 %v2623, 0.0
      %v2632 = vmax.f32 %v2624, 0.0
      %v2633 = vmax.f32 %v2625, 0.0
      %v2634 = vmax.f32 %v2626, 0.0
      %v2635 = vmax.f32 %v2627, 0.0
      %v2636 = vmax.f32 %v2628, 0.0
      %v2637 = vmax.f32 %v2629, 0.0
      %v2638 = vpack.c.bf16 %v2630, %v2630
      %v2639 = vpack.c.bf16 %v2631, %v2631
      %v2640 = vpack.c.bf16 %v2632, %v2632
      %v2641 = vpack.c.bf16 %v2633, %v2633
      %v2642 = vpack.c.bf16 %v2634, %v2634
      %v2643 = vpack.c.bf16 %v2635, %v2635
      %v2644 = vpack.c.bf16 %v2636, %v2636
      %v2645 = vpack.c.bf16 %v2637, %v2637
      %v2654 = vunpack.c.l.b16 %v2638
      %v2655 = vunpack.c.l.b16 %v2639
      %v2656 = vunpack.c.l.b16 %v2640
      %v2657 = vunpack.c.l.b16 %v2641
      %v2658 = vunpack.c.l.b16 %v2642
      %v2659 = vunpack.c.l.b16 %v2643
      %v2660 = vunpack.c.l.b16 %v2644
      %v2661 = vunpack.c.l.b16 %v2645
      %v2662 = vpack.c.b16 %v2655, %v2654
      %v2663 = vpack.c.b16 %v2657, %v2656
      %v2664 = vpack.c.b16 %v2659, %v2658
      %v2665 = vpack.c.b16 %v2661, %v2660
      %s2670 = scalar_lea.vmem %s3, 128
      %v2671 = vld [vmem:[%s2670] sm:$0xf]
      %v2672 = vld [vmem:[%s2670 + $0x4] sm:$0xf]
      %v2673 = vld [vmem:[%s2670 + $0x8] sm:$0xf]
      %v2674 = vld [vmem:[%s2670 + $0xc] sm:$0xf]
      %v2675 = vld [vmem:[%s2670 + $0x10] sm:$0xf]
      %v2676 = vld [vmem:[%s2670 + $0x14] sm:$0xf]
      %v2677 = vld [vmem:[%s2670 + $0x18] sm:$0xf]
      %v2678 = vld [vmem:[%s2670 + $0x1c] sm:$0xf]
      %v2679 = vld [vmem:[%s2670 + $0x20] sm:$0xf]
      %v2680 = vld [vmem:[%s2670 + $0x24] sm:$0xf]
      %v2681 = vld [vmem:[%s2670 + $0x28] sm:$0xf]
      %v2682 = vld [vmem:[%s2670 + $0x2c] sm:$0xf]
      %v2683 = vld [vmem:[%s2670 + $0x30] sm:$0xf]
      %v2684 = vld [vmem:[%s2670 + $0x34] sm:$0xf]
      %v2685 = vld [vmem:[%s2670 + $0x38] sm:$0xf]
      %v2686 = vld [vmem:[%s2670 + $0x3c] sm:$0xf]
      %v2687 = vld [vmem:[%s2670 + $0x40] sm:$0xf]
      %v2688 = vld [vmem:[%s2670 + $0x44] sm:$0xf]
      %v2689 = vld [vmem:[%s2670 + $0x48] sm:$0xf]
      %v2690 = vld [vmem:[%s2670 + $0x4c] sm:$0xf]
      %v2691 = vld [vmem:[%s2670 + $0x50] sm:$0xf]
      %v2692 = vld [vmem:[%s2670 + $0x54] sm:$0xf]
      %v2693 = vld [vmem:[%s2670 + $0x58] sm:$0xf]
      %v2694 = vld [vmem:[%s2670 + $0x5c] sm:$0xf]
      %v2695 = vld [vmem:[%s2670 + $0x60] sm:$0xf]
      %v2696 = vld [vmem:[%s2670 + $0x64] sm:$0xf]
      %v2697 = vld [vmem:[%s2670 + $0x68] sm:$0xf]
      %v2698 = vld [vmem:[%s2670 + $0x6c] sm:$0xf]
      %v2699 = vld [vmem:[%s2670 + $0x70] sm:$0xf]
      %v2700 = vld [vmem:[%s2670 + $0x74] sm:$0xf]
      %v2701 = vld [vmem:[%s2670 + $0x78] sm:$0xf]
      %v2702 = vld [vmem:[%s2670 + $0x7c] sm:$0xf]
      %v2735 = vunpack.c.l.b16 %v2671
      %v2736 = vunpack.c.l.b16 %v2672
      %v2737 = vunpack.c.l.b16 %v2673
      %v2738 = vunpack.c.l.b16 %v2674
      %v2739 = vunpack.c.l.b16 %v2675
      %v2740 = vunpack.c.l.b16 %v2676
      %v2741 = vunpack.c.l.b16 %v2677
      %v2742 = vunpack.c.l.b16 %v2678
      %v2743 = vunpack.c.l.b16 %v2679
      %v2744 = vunpack.c.l.b16 %v2680
      %v2745 = vunpack.c.l.b16 %v2681
      %v2746 = vunpack.c.l.b16 %v2682
      %v2747 = vunpack.c.l.b16 %v2683
      %v2748 = vunpack.c.l.b16 %v2684
      %v2749 = vunpack.c.l.b16 %v2685
      %v2750 = vunpack.c.l.b16 %v2686
      %v2751 = vunpack.c.l.b16 %v2687
      %v2752 = vunpack.c.l.b16 %v2688
      %v2753 = vunpack.c.l.b16 %v2689
      %v2754 = vunpack.c.l.b16 %v2690
      %v2755 = vunpack.c.l.b16 %v2691
      %v2756 = vunpack.c.l.b16 %v2692
      %v2757 = vunpack.c.l.b16 %v2693
      %v2758 = vunpack.c.l.b16 %v2694
      %v2759 = vunpack.c.l.b16 %v2695
      %v2760 = vunpack.c.l.b16 %v2696
      %v2761 = vunpack.c.l.b16 %v2697
      %v2762 = vunpack.c.l.b16 %v2698
      %v2763 = vunpack.c.l.b16 %v2699
      %v2764 = vunpack.c.l.b16 %v2700
      %v2765 = vunpack.c.l.b16 %v2701
      %v2766 = vunpack.c.l.b16 %v2702
      %v2767 = vpack.c.b16 %v2736, %v2735
      %v2768 = vpack.c.b16 %v2738, %v2737
      %v2769 = vpack.c.b16 %v2740, %v2739
      %v2770 = vpack.c.b16 %v2742, %v2741
      %v2771 = vpack.c.b16 %v2744, %v2743
      %v2772 = vpack.c.b16 %v2746, %v2745
      %v2773 = vpack.c.b16 %v2748, %v2747
      %v2774 = vpack.c.b16 %v2750, %v2749
      %v2775 = vpack.c.b16 %v2752, %v2751
      %v2776 = vpack.c.b16 %v2754, %v2753
      %v2777 = vpack.c.b16 %v2756, %v2755
      %v2778 = vpack.c.b16 %v2758, %v2757
      %v2779 = vpack.c.b16 %v2760, %v2759
      %v2780 = vpack.c.b16 %v2762, %v2761
      %v2781 = vpack.c.b16 %v2764, %v2763
      %v2782 = vpack.c.b16 %v2766, %v2765
      %2799 = vmatpush.bf16.msra.mxu0 %v2774
      %2800 = vmatpush.bf16.msra.mxu0 %v2773
      %2801 = vmatpush.bf16.msra.mxu0 %v2772
      %2802 = vmatpush.bf16.msra.mxu0 %v2771
      %2803 = vmatpush.bf16.msra.mxu0 %v2770
      %2804 = vmatpush.bf16.msra.mxu0 %v2769
      %2805 = vmatpush.bf16.msra.mxu0 %v2768
      %2806 = vmatpush.bf16.msra.mxu0 %v2767
      %2807 = vmatmul.bf16.gmra.mxu0 %v2662
      %v2808 = vpop.f32.mrf.mxu0
      %v2809 = vadd.f32 0.0, %v2808
      %v2810 = vpop.f32.mrf.mxu0
      %v2811 = vadd.f32 0.0, %v2810
      %2812 = vmatmul.bf16.gmra.mxu0 %v2663
      %v2813 = vpop.f32.mrf.mxu0
      %v2814 = vadd.f32 0.0, %v2813
      %v2815 = vpop.f32.mrf.mxu0
      %v2816 = vadd.f32 0.0, %v2815
      %2817 = vmatmul.bf16.gmra.mxu0 %v2664
      %v2818 = vpop.f32.mrf.mxu0
      %v2819 = vadd.f32 0.0, %v2818
      %v2820 = vpop.f32.mrf.mxu0
      %v2821 = vadd.f32 0.0, %v2820
      %2822 = vmatmul.bf16.gmra.mxu0 %v2665
      %v2823 = vpop.f32.mrf.mxu0
      %v2824 = vadd.f32 0.0, %v2823
      %v2825 = vpop.f32.mrf.mxu0
      %v2826 = vadd.f32 0.0, %v2825
      %2827 = vdwg.mxu0
      %2828 = vmatpush.bf16.msra.mxu0 %v2782
      %2829 = vmatpush.bf16.msra.mxu0 %v2781
      %2830 = vmatpush.bf16.msra.mxu0 %v2780
      %2831 = vmatpush.bf16.msra.mxu0 %v2779
      %2832 = vmatpush.bf16.msra.mxu0 %v2778
      %2833 = vmatpush.bf16.msra.mxu0 %v2777
      %2834 = vmatpush.bf16.msra.mxu0 %v2776
      %2835 = vmatpush.bf16.msra.mxu0 %v2775
      %2836 = vmatmul.bf16.gmra.mxu0 %v1181
      %v2837 = vpop.f32.mrf.mxu0
      %v2838 = vadd.f32 %v2809, %v2837
      %v2839 = vpop.f32.mrf.mxu0
      %v2840 = vadd.f32 %v2811, %v2839
      %2841 = vmatmul.bf16.gmra.mxu0 %v1182
      %v2842 = vpop.f32.mrf.mxu0
      %v2843 = vadd.f32 %v2814, %v2842
      %v2844 = vpop.f32.mrf.mxu0
      %v2845 = vadd.f32 %v2816, %v2844
      %2846 = vmatmul.bf16.gmra.mxu0 %v1183
      %v2847 = vpop.f32.mrf.mxu0
      %v2848 = vadd.f32 %v2819, %v2847
      %v2849 = vpop.f32.mrf.mxu0
      %v2850 = vadd.f32 %v2821, %v2849
      %2851 = vmatmul.bf16.gmra.mxu0 %v1184
      %v2852 = vpop.f32.mrf.mxu0
      %v2853 = vadd.f32 %v2824, %v2852
      %v2854 = vpop.f32.mrf.mxu0
      %v2855 = vadd.f32 %v2826, %v2854
      %2856 = vdwg.mxu0
      %v2889 = vunpack.c.l.b16 %v1841
      %v2890 = vunpack.c.l.b16 %v1842
      %v2891 = vunpack.c.l.b16 %v1843
      %v2892 = vunpack.c.l.b16 %v1844
      %v2893 = vunpack.c.l.b16 %v1845
      %v2894 = vunpack.c.l.b16 %v1846
      %v2895 = vunpack.c.l.b16 %v1847
      %v2896 = vunpack.c.l.b16 %v1848
      %v2897 = vunpack.c.l.b16 %v1849
      %v2898 = vunpack.c.l.b16 %v1850
      %v2899 = vunpack.c.l.b16 %v1851
      %v2900 = vunpack.c.l.b16 %v1852
      %v2901 = vunpack.c.l.b16 %v1853
      %v2902 = vunpack.c.l.b16 %v1854
      %v2903 = vunpack.c.l.b16 %v1855
      %v2904 = vunpack.c.l.b16 %v1856
      %v2905 = vunpack.c.l.b16 %v1857
      %v2906 = vunpack.c.l.b16 %v1858
      %v2907 = vunpack.c.l.b16 %v1859
      %v2908 = vunpack.c.l.b16 %v1860
      %v2909 = vunpack.c.l.b16 %v1861
      %v2910 = vunpack.c.l.b16 %v1862
      %v2911 = vunpack.c.l.b16 %v1863
      %v2912 = vunpack.c.l.b16 %v1864
      %v2913 = vunpack.c.l.b16 %v1865
      %v2914 = vunpack.c.l.b16 %v1866
      %v2915 = vunpack.c.l.b16 %v1867
      %v2916 = vunpack.c.l.b16 %v1868
      %v2917 = vunpack.c.l.b16 %v1869
      %v2918 = vunpack.c.l.b16 %v1870
      %v2919 = vunpack.c.l.b16 %v1871
      %v2920 = vunpack.c.l.b16 %v1872
      %v2921 = vpack.c.b16 %v2890, %v2889
      %v2922 = vpack.c.b16 %v2892, %v2891
      %v2923 = vpack.c.b16 %v2894, %v2893
      %v2924 = vpack.c.b16 %v2896, %v2895
      %v2925 = vpack.c.b16 %v2898, %v2897
      %v2926 = vpack.c.b16 %v2900, %v2899
      %v2927 = vpack.c.b16 %v2902, %v2901
      %v2928 = vpack.c.b16 %v2904, %v2903
      %v2929 = vpack.c.b16 %v2906, %v2905
      %v2930 = vpack.c.b16 %v2908, %v2907
      %v2931 = vpack.c.b16 %v2910, %v2909
      %v2932 = vpack.c.b16 %v2912, %v2911
      %v2933 = vpack.c.b16 %v2914, %v2913
      %v2934 = vpack.c.b16 %v2916, %v2915
      %v2935 = vpack.c.b16 %v2918, %v2917
      %v2936 = vpack.c.b16 %v2920, %v2919
      %2953 = vmatpush.bf16.msra.mxu0 %v2928
      %2954 = vmatpush.bf16.msra.mxu0 %v2927
      %2955 = vmatpush.bf16.msra.mxu0 %v2926
      %2956 = vmatpush.bf16.msra.mxu0 %v2925
      %2957 = vmatpush.bf16.msra.mxu0 %v2924
      %2958 = vmatpush.bf16.msra.mxu0 %v2923
      %2959 = vmatpush.bf16.msra.mxu0 %v2922
      %2960 = vmatpush.bf16.msra.mxu0 %v2921
      %2961 = vmatmul.bf16.gmra.mxu0 %v1833
      %v2962 = vpop.f32.mrf.mxu0
      %v2963 = vadd.f32 %v2838, %v2962
      %v2964 = vpop.f32.mrf.mxu0
      %v2965 = vadd.f32 %v2840, %v2964
      %2966 = vmatmul.bf16.gmra.mxu0 %v1834
      %v2967 = vpop.f32.mrf.mxu0
      %v2968 = vadd.f32 %v2843, %v2967
      %v2969 = vpop.f32.mrf.mxu0
      %v2970 = vadd.f32 %v2845, %v2969
      %2971 = vmatmul.bf16.gmra.mxu0 %v1835
      %v2972 = vpop.f32.mrf.mxu0
      %v2973 = vadd.f32 %v2848, %v2972
      %v2974 = vpop.f32.mrf.mxu0
      %v2975 = vadd.f32 %v2850, %v2974
      %2976 = vmatmul.bf16.gmra.mxu0 %v1836
      %v2977 = vpop.f32.mrf.mxu0
      %v2978 = vadd.f32 %v2853, %v2977
      %v2979 = vpop.f32.mrf.mxu0
      %v2980 = vadd.f32 %v2855, %v2979
      %2981 = vdwg.mxu0
      %2982 = vmatpush.bf16.msra.mxu0 %v2936
      %2983 = vmatpush.bf16.msra.mxu0 %v2935
      %2984 = vmatpush.bf16.msra.mxu0 %v2934
      %2985 = vmatpush.bf16.msra.mxu0 %v2933
      %2986 = vmatpush.bf16.msra.mxu0 %v2932
      %2987 = vmatpush.bf16.msra.mxu0 %v2931
      %2988 = vmatpush.bf16.msra.mxu0 %v2930
      %2989 = vmatpush.bf16.msra.mxu0 %v2929
      %2990 = vmatmul.bf16.gmra.mxu0 %v935
      %v2991 = vpop.f32.mrf.mxu0
      %v2992 = vadd.f32 %v2963, %v2991
      %v2993 = vpop.f32.mrf.mxu0
      %v2994 = vadd.f32 %v2965, %v2993
      %2995 = vmatmul.bf16.gmra.mxu0 %v936
      %v2996 = vpop.f32.mrf.mxu0
      %v2997 = vadd.f32 %v2968, %v2996
      %v2998 = vpop.f32.mrf.mxu0
      %v2999 = vadd.f32 %v2970, %v2998
      %3000 = vmatmul.bf16.gmra.mxu0 %v937
      %v3001 = vpop.f32.mrf.mxu0
      %v3002 = vadd.f32 %v2973, %v3001
      %v3003 = vpop.f32.mrf.mxu0
      %v3004 = vadd.f32 %v2975, %v3003
      %3005 = vmatmul.bf16.gmra.mxu0 %v938
      %v3006 = vpop.f32.mrf.mxu0
      %v3007 = vadd.f32 %v2978, %v3006
      %v3008 = vpop.f32.mrf.mxu0
      %v3009 = vadd.f32 %v2980, %v3008
      %3010 = vdwg.mxu0
      %3011 = vmatpush.bf16.msra.mxu0 %v370
      %3012 = vmatpush.bf16.msra.mxu0 %v369
      %3013 = vmatpush.bf16.msra.mxu0 %v368
      %3014 = vmatpush.bf16.msra.mxu0 %v367
      %3015 = vmatpush.bf16.msra.mxu0 %v366
      %3016 = vmatpush.bf16.msra.mxu0 %v365
      %3017 = vmatpush.bf16.msra.mxu0 %v364
      %3018 = vmatpush.bf16.msra.mxu0 %v363
      %3019 = vmatmul.bf16.gmra.mxu0 %v935
      %v3020 = vpop.f32.mrf.mxu0
      %v3021 = vadd.f32 0.0, %v3020
      %v3022 = vpop.f32.mrf.mxu0
      %v3023 = vadd.f32 0.0, %v3022
      %3024 = vmatmul.bf16.gmra.mxu0 %v936
      %v3025 = vpop.f32.mrf.mxu0
      %v3026 = vadd.f32 0.0, %v3025
      %v3027 = vpop.f32.mrf.mxu0
      %v3028 = vadd.f32 0.0, %v3027
      %3029 = vmatmul.bf16.gmra.mxu0 %v937
      %v3030 = vpop.f32.mrf.mxu0
      %v3031 = vadd.f32 0.0, %v3030
      %v3032 = vpop.f32.mrf.mxu0
      %v3033 = vadd.f32 0.0, %v3032
      %3034 = vmatmul.bf16.gmra.mxu0 %v938
      %v3035 = vpop.f32.mrf.mxu0
      %v3036 = vadd.f32 0.0, %v3035
      %v3037 = vpop.f32.mrf.mxu0
      %v3038 = vadd.f32 0.0, %v3037
      %3039 = vdwg.mxu0
      %3040 = vmatpush.bf16.msra.mxu0 %v471
      %3041 = vmatpush.bf16.msra.mxu0 %v470
      %3042 = vmatpush.bf16.msra.mxu0 %v469
      %3043 = vmatpush.bf16.msra.mxu0 %v468
      %3044 = vmatpush.bf16.msra.mxu0 %v467
      %3045 = vmatpush.bf16.msra.mxu0 %v466
      %3046 = vmatpush.bf16.msra.mxu0 %v465
      %3047 = vmatpush.bf16.msra.mxu0 %v464
      %3048 = vmatmul.bf16.gmra.mxu0 %v800
      %v3049 = vpop.f32.mrf.mxu0
      %v3050 = vadd.f32 %v3021, %v3049
      %v3051 = vpop.f32.mrf.mxu0
      %v3052 = vadd.f32 %v3023, %v3051
      %3053 = vmatmul.bf16.gmra.mxu0 %v801
      %v3054 = vpop.f32.mrf.mxu0
      %v3055 = vadd.f32 %v3026, %v3054
      %v3056 = vpop.f32.mrf.mxu0
      %v3057 = vadd.f32 %v3028, %v3056
      %3058 = vmatmul.bf16.gmra.mxu0 %v802
      %v3059 = vpop.f32.mrf.mxu0
      %v3060 = vadd.f32 %v3031, %v3059
      %v3061 = vpop.f32.mrf.mxu0
      %v3062 = vadd.f32 %v3033, %v3061
      %3063 = vmatmul.bf16.gmra.mxu0 %v803
      %v3064 = vpop.f32.mrf.mxu0
      %v3065 = vadd.f32 %v3036, %v3064
      %v3066 = vpop.f32.mrf.mxu0
      %v3067 = vadd.f32 %v3038, %v3066
      %3068 = vdwg.mxu0
      %3069 = vmatpush.bf16.msra.mxu0 %v712
      %3070 = vmatpush.bf16.msra.mxu0 %v711
      %3071 = vmatpush.bf16.msra.mxu0 %v710
      %3072 = vmatpush.bf16.msra.mxu0 %v709
      %3073 = vmatpush.bf16.msra.mxu0 %v708
      %3074 = vmatpush.bf16.msra.mxu0 %v707
      %3075 = vmatpush.bf16.msra.mxu0 %v706
      %3076 = vmatpush.bf16.msra.mxu0 %v705
      %3077 = vmatmul.bf16.gmra.mxu0 %v1181
      %v3078 = vpop.f32.mrf.mxu0
      %v3079 = vadd.f32 0.0, %v3078
      %v3080 = vpop.f32.mrf.mxu0
      %v3081 = vadd.f32 0.0, %v3080
      %3082 = vmatmul.bf16.gmra.mxu0 %v1182
      %v3083 = vpop.f32.mrf.mxu0
      %v3084 = vadd.f32 0.0, %v3083
      %v3085 = vpop.f32.mrf.mxu0
      %v3086 = vadd.f32 0.0, %v3085
      %3087 = vmatmul.bf16.gmra.mxu0 %v1183
      %v3088 = vpop.f32.mrf.mxu0
      %v3089 = vadd.f32 0.0, %v3088
      %v3090 = vpop.f32.mrf.mxu0
      %v3091 = vadd.f32 0.0, %v3090
      %3092 = vmatmul.bf16.gmra.mxu0 %v1184
      %v3093 = vpop.f32.mrf.mxu0
      %v3094 = vadd.f32 0.0, %v3093
      %v3095 = vpop.f32.mrf.mxu0
      %v3096 = vadd.f32 0.0, %v3095
      %3097 = vdwg.mxu0
      %v3098 = vadd.f32 %v3050, %v3079
      %v3099 = vadd.f32 %v3052, %v3081
      %v3100 = vadd.f32 %v3055, %v3084
      %v3101 = vadd.f32 %v3057, %v3086
      %v3102 = vadd.f32 %v3060, %v3089
      %v3103 = vadd.f32 %v3062, %v3091
      %v3104 = vadd.f32 %v3065, %v3094
      %v3105 = vadd.f32 %v3067, %v3096
      %3106 = vmatpush.bf16.msra.mxu0 %v847
      %3107 = vmatpush.bf16.msra.mxu0 %v846
      %3108 = vmatpush.bf16.msra.mxu0 %v845
      %3109 = vmatpush.bf16.msra.mxu0 %v844
      %3110 = vmatpush.bf16.msra.mxu0 %v843
      %3111 = vmatpush.bf16.msra.mxu0 %v842
      %3112 = vmatpush.bf16.msra.mxu0 %v841
      %3113 = vmatpush.bf16.msra.mxu0 %v840
      %3114 = vmatmul.bf16.gmra.mxu0 %v1316
      %v3115 = vpop.f32.mrf.mxu0
      %v3116 = vadd.f32 0.0, %v3115
      %v3117 = vpop.f32.mrf.mxu0
      %v3118 = vadd.f32 0.0, %v3117
      %3119 = vmatmul.bf16.gmra.mxu0 %v1317
      %v3120 = vpop.f32.mrf.mxu0
      %v3121 = vadd.f32 0.0, %v3120
      %v3122 = vpop.f32.mrf.mxu0
      %v3123 = vadd.f32 0.0, %v3122
      %3124 = vmatmul.bf16.gmra.mxu0 %v1318
      %v3125 = vpop.f32.mrf.mxu0
      %v3126 = vadd.f32 0.0, %v3125
      %v3127 = vpop.f32.mrf.mxu0
      %v3128 = vadd.f32 0.0, %v3127
      %3129 = vmatmul.bf16.gmra.mxu0 %v1319
      %v3130 = vpop.f32.mrf.mxu0
      %v3131 = vadd.f32 0.0, %v3130
      %v3132 = vpop.f32.mrf.mxu0
      %v3133 = vadd.f32 0.0, %v3132
      %3134 = vdwg.mxu0
      %v3135 = vadd.f32 %v3098, %v3116
      %v3136 = vadd.f32 %v3099, %v3118
      %v3137 = vadd.f32 %v3100, %v3121
      %v3138 = vadd.f32 %v3101, %v3123
      %v3139 = vadd.f32 %v3102, %v3126
      %v3140 = vadd.f32 %v3103, %v3128
      %v3141 = vadd.f32 %v3104, %v3131
      %v3142 = vadd.f32 %v3105, %v3133
      %3143 = vmatpush.bf16.msra.mxu0 %v982
      %3144 = vmatpush.bf16.msra.mxu0 %v981
      %3145 = vmatpush.bf16.msra.mxu0 %v980
      %3146 = vmatpush.bf16.msra.mxu0 %v979
      %3147 = vmatpush.bf16.msra.mxu0 %v978
      %3148 = vmatpush.bf16.msra.mxu0 %v977
      %3149 = vmatpush.bf16.msra.mxu0 %v976
      %3150 = vmatpush.bf16.msra.mxu0 %v975
      %3151 = vmatmul.bf16.gmra.mxu0 %v1451
      %v3152 = vpop.f32.mrf.mxu0
      %v3153 = vadd.f32 0.0, %v3152
      %v3154 = vpop.f32.mrf.mxu0
      %v3155 = vadd.f32 0.0, %v3154
      %3156 = vmatmul.bf16.gmra.mxu0 %v1452
      %v3157 = vpop.f32.mrf.mxu0
      %v3158 = vadd.f32 0.0, %v3157
      %v3159 = vpop.f32.mrf.mxu0
      %v3160 = vadd.f32 0.0, %v3159
      %3161 = vmatmul.bf16.gmra.mxu0 %v1453
      %v3162 = vpop.f32.mrf.mxu0
      %v3163 = vadd.f32 0.0, %v3162
      %v3164 = vpop.f32.mrf.mxu0
      %v3165 = vadd.f32 0.0, %v3164
      %3166 = vmatmul.bf16.gmra.mxu0 %v1454
      %v3167 = vpop.f32.mrf.mxu0
      %v3168 = vadd.f32 0.0, %v3167
      %v3169 = vpop.f32.mrf.mxu0
      %v3170 = vadd.f32 0.0, %v3169
      %3171 = vdwg.mxu0
      %v3172 = vadd.f32 %v3135, %v3153
      %v3173 = vadd.f32 %v3136, %v3155
      %v3174 = vadd.f32 %v3137, %v3158
      %v3175 = vadd.f32 %v3138, %v3160
      %v3176 = vadd.f32 %v3139, %v3163
      %v3177 = vadd.f32 %v3140, %v3165
      %v3178 = vadd.f32 %v3141, %v3168
      %v3179 = vadd.f32 %v3142, %v3170
      %3180 = vmatpush.bf16.msra.mxu0 %v1228
      %3181 = vmatpush.bf16.msra.mxu0 %v1227
      %3182 = vmatpush.bf16.msra.mxu0 %v1226
      %3183 = vmatpush.bf16.msra.mxu0 %v1225
      %3184 = vmatpush.bf16.msra.mxu0 %v1224
      %3185 = vmatpush.bf16.msra.mxu0 %v1223
      %3186 = vmatpush.bf16.msra.mxu0 %v1222
      %3187 = vmatpush.bf16.msra.mxu0 %v1221
      %3188 = vmatmul.bf16.gmra.mxu0 %v1697
      %v3189 = vpop.f32.mrf.mxu0
      %v3190 = vadd.f32 0.0, %v3189
      %v3191 = vpop.f32.mrf.mxu0
      %v3192 = vadd.f32 0.0, %v3191
      %3193 = vmatmul.bf16.gmra.mxu0 %v1698
      %v3194 = vpop.f32.mrf.mxu0
      %v3195 = vadd.f32 0.0, %v3194
      %v3196 = vpop.f32.mrf.mxu0
      %v3197 = vadd.f32 0.0, %v3196
      %3198 = vmatmul.bf16.gmra.mxu0 %v1699
      %v3199 = vpop.f32.mrf.mxu0
      %v3200 = vadd.f32 0.0, %v3199
      %v3201 = vpop.f32.mrf.mxu0
      %v3202 = vadd.f32 0.0, %v3201
      %3203 = vmatmul.bf16.gmra.mxu0 %v1700
      %v3204 = vpop.f32.mrf.mxu0
      %v3205 = vadd.f32 0.0, %v3204
      %v3206 = vpop.f32.mrf.mxu0
      %v3207 = vadd.f32 0.0, %v3206
      %3208 = vdwg.mxu0
      %v3209 = vadd.f32 %v3172, %v3190
      %v3210 = vadd.f32 %v3173, %v3192
      %v3211 = vadd.f32 %v3174, %v3195
      %v3212 = vadd.f32 %v3175, %v3197
      %v3213 = vadd.f32 %v3176, %v3200
      %v3214 = vadd.f32 %v3177, %v3202
      %v3215 = vadd.f32 %v3178, %v3205
      %v3216 = vadd.f32 %v3179, %v3207
      %s3217 = scalar_lea.vmem %s243, 152
      %v3218 = vld [vmem:[%s3217] sm:$0xf]
      %v3219 = vld [vmem:[%s3217 + $0x8] sm:$0xf]
      %v3220 = vld [vmem:[%s3217 + $0x10] sm:$0xf]
      %v3221 = vld [vmem:[%s3217 + $0x18] sm:$0xf]
      %v3222 = vld [vmem:[%s3217 + $0x20] sm:$0xf]
      %v3223 = vld [vmem:[%s3217 + $0x28] sm:$0xf]
      %v3224 = vld [vmem:[%s3217 + $0x30] sm:$0xf]
      %v3225 = vld [vmem:[%s3217 + $0x38] sm:$0xf]
      %v3234 = vunpack.c.l.b16 %v3218
      %v3235 = vunpack.c.l.b16 %v3219
      %v3236 = vunpack.c.l.b16 %v3220
      %v3237 = vunpack.c.l.b16 %v3221
      %v3238 = vunpack.c.l.b16 %v3222
      %v3239 = vunpack.c.l.b16 %v3223
      %v3240 = vunpack.c.l.b16 %v3224
      %v3241 = vunpack.c.l.b16 %v3225
      %v3242 = vpack.c.b16 %v3235, %v3234
      %v3243 = vpack.c.b16 %v3237, %v3236
      %v3244 = vpack.c.b16 %v3239, %v3238
      %v3245 = vpack.c.b16 %v3241, %v3240
      %3250 = vmatpush.bf16.msra.mxu0 %v1363
      %3251 = vmatpush.bf16.msra.mxu0 %v1362
      %3252 = vmatpush.bf16.msra.mxu0 %v1361
      %3253 = vmatpush.bf16.msra.mxu0 %v1360
      %3254 = vmatpush.bf16.msra.mxu0 %v1359
      %3255 = vmatpush.bf16.msra.mxu0 %v1358
      %3256 = vmatpush.bf16.msra.mxu0 %v1357
      %3257 = vmatpush.bf16.msra.mxu0 %v1356
      %3258 = vmatmul.bf16.gmra.mxu0 %v3242
      %v3259 = vpop.f32.mrf.mxu0
      %v3260 = vadd.f32 0.0, %v3259
      %v3261 = vpop.f32.mrf.mxu0
      %v3262 = vadd.f32 0.0, %v3261
      %3263 = vmatmul.bf16.gmra.mxu0 %v3243
      %v3264 = vpop.f32.mrf.mxu0
      %v3265 = vadd.f32 0.0, %v3264
      %v3266 = vpop.f32.mrf.mxu0
      %v3267 = vadd.f32 0.0, %v3266
      %3268 = vmatmul.bf16.gmra.mxu0 %v3244
      %v3269 = vpop.f32.mrf.mxu0
      %v3270 = vadd.f32 0.0, %v3269
      %v3271 = vpop.f32.mrf.mxu0
      %v3272 = vadd.f32 0.0, %v3271
      %3273 = vmatmul.bf16.gmra.mxu0 %v3245
      %v3274 = vpop.f32.mrf.mxu0
      %v3275 = vadd.f32 0.0, %v3274
      %v3276 = vpop.f32.mrf.mxu0
      %v3277 = vadd.f32 0.0, %v3276
      %3278 = vdwg.mxu0
      %v3279 = vadd.f32 %v3209, %v3260
      %v3280 = vadd.f32 %v3210, %v3262
      %v3281 = vadd.f32 %v3211, %v3265
      %v3282 = vadd.f32 %v3212, %v3267
      %v3283 = vadd.f32 %v3213, %v3270
      %v3284 = vadd.f32 %v3214, %v3272
      %v3285 = vadd.f32 %v3215, %v3275
      %v3286 = vadd.f32 %v3216, %v3277
      %s3287 = scalar_lea.vmem %s243, 224
      %v3288 = vld [vmem:[%s3287] sm:$0xf]
      %v3289 = vld [vmem:[%s3287 + $0x8] sm:$0xf]
      %v3290 = vld [vmem:[%s3287 + $0x10] sm:$0xf]
      %v3291 = vld [vmem:[%s3287 + $0x18] sm:$0xf]
      %v3292 = vld [vmem:[%s3287 + $0x20] sm:$0xf]
      %v3293 = vld [vmem:[%s3287 + $0x28] sm:$0xf]
      %v3294 = vld [vmem:[%s3287 + $0x30] sm:$0xf]
      %v3295 = vld [vmem:[%s3287 + $0x38] sm:$0xf]
      %v3304 = vunpack.c.l.b16 %v3288
      %v3305 = vunpack.c.l.b16 %v3289
      %v3306 = vunpack.c.l.b16 %v3290
      %v3307 = vunpack.c.l.b16 %v3291
      %v3308 = vunpack.c.l.b16 %v3292
      %v3309 = vunpack.c.l.b16 %v3293
      %v3310 = vunpack.c.l.b16 %v3294
      %v3311 = vunpack.c.l.b16 %v3295
      %v3312 = vpack.c.b16 %v3305, %v3304
      %v3313 = vpack.c.b16 %v3307, %v3306
      %v3314 = vpack.c.b16 %v3309, %v3308
      %v3315 = vpack.c.b16 %v3311, %v3310
      %3320 = vmatpush.bf16.msra.mxu0 %v1498
      %3321 = vmatpush.bf16.msra.mxu0 %v1497
      %3322 = vmatpush.bf16.msra.mxu0 %v1496
      %3323 = vmatpush.bf16.msra.mxu0 %v1495
      %3324 = vmatpush.bf16.msra.mxu0 %v1494
      %3325 = vmatpush.bf16.msra.mxu0 %v1493
      %3326 = vmatpush.bf16.msra.mxu0 %v1492
      %3327 = vmatpush.bf16.msra.mxu0 %v1491
      %3328 = vmatmul.bf16.gmra.mxu0 %v3312
      %v3329 = vpop.f32.mrf.mxu0
      %v3330 = vadd.f32 0.0, %v3329
      %v3331 = vpop.f32.mrf.mxu0
      %v3332 = vadd.f32 0.0, %v3331
      %3333 = vmatmul.bf16.gmra.mxu0 %v3313
      %v3334 = vpop.f32.mrf.mxu0
      %v3335 = vadd.f32 0.0, %v3334
      %v3336 = vpop.f32.mrf.mxu0
      %v3337 = vadd.f32 0.0, %v3336
      %3338 = vmatmul.bf16.gmra.mxu0 %v3314
      %v3339 = vpop.f32.mrf.mxu0
      %v3340 = vadd.f32 0.0, %v3339
      %v3341 = vpop.f32.mrf.mxu0
      %v3342 = vadd.f32 0.0, %v3341
      %3343 = vmatmul.bf16.gmra.mxu0 %v3315
      %v3344 = vpop.f32.mrf.mxu0
      %v3345 = vadd.f32 0.0, %v3344
      %v3346 = vpop.f32.mrf.mxu0
      %v3347 = vadd.f32 0.0, %v3346
      %3348 = vdwg.mxu0
      %v3349 = vadd.f32 %v3279, %v3330
      %v3350 = vadd.f32 %v3280, %v3332
      %v3351 = vadd.f32 %v3281, %v3335
      %v3352 = vadd.f32 %v3282, %v3337
      %v3353 = vadd.f32 %v3283, %v3340
      %v3354 = vadd.f32 %v3284, %v3342
      %v3355 = vadd.f32 %v3285, %v3345
      %v3356 = vadd.f32 %v3286, %v3347
      %v3357 = vld [vmem:[%s3217] sm:$0xf]
      %v3358 = vld [vmem:[%s3217 + $0x4] sm:$0x1]
      %v3359 = vld [vmem:[%s3217 + $0x8] sm:$0xf]
      %v3360 = vld [vmem:[%s3217 + $0xc] sm:$0x1]
      %v3361 = vld [vmem:[%s3217 + $0x10] sm:$0xf]
      %v3362 = vld [vmem:[%s3217 + $0x14] sm:$0x1]
      %v3363 = vld [vmem:[%s3217 + $0x18] sm:$0xf]
      %v3364 = vld [vmem:[%s3217 + $0x1c] sm:$0x1]
      %v3365 = vld [vmem:[%s3217 + $0x20] sm:$0xf]
      %v3366 = vld [vmem:[%s3217 + $0x24] sm:$0x1]
      %v3367 = vld [vmem:[%s3217 + $0x28] sm:$0xf]
      %v3368 = vld [vmem:[%s3217 + $0x2c] sm:$0x1]
      %v3369 = vld [vmem:[%s3217 + $0x30] sm:$0xf]
      %v3370 = vld [vmem:[%s3217 + $0x34] sm:$0x1]
      %v3371 = vld [vmem:[%s3217 + $0x38] sm:$0xf]
      %v3372 = vld [vmem:[%s3217 + $0x3c] sm:$0x1]
      %v3374 = vshrl.u32 %v3357, 16
      %v3376 = vrot.slane %v3374, 4
      %v3377 = vshll.u32 %v3357, 16
      %v3379 = vrot.slane %v3377, 5
      %v3380 = vor.u32 %v3376, %v3379
      %v3381 = vrot.slane %v3380, 4
      %v3383 = vshll.u32 %v3358, 16
      %v3385 = vrot.slane %v3383, 5
      %v3386 = vsel %vm527, %v3381, %v3385
      %v3388 = vshrl.u32 %v3359, 16
      %v3390 = vrot.slane %v3388, 4
      %v3391 = vshll.u32 %v3359, 16
      %v3393 = vrot.slane %v3391, 5
      %v3394 = vor.u32 %v3390, %v3393
      %v3395 = vrot.slane %v3394, 4
      %v3397 = vshll.u32 %v3360, 16
      %v3399 = vrot.slane %v3397, 5
      %v3400 = vsel %vm527, %v3395, %v3399
      %v3402 = vshrl.u32 %v3361, 16
      %v3404 = vrot.slane %v3402, 4
      %v3405 = vshll.u32 %v3361, 16
      %v3407 = vrot.slane %v3405, 5
      %v3408 = vor.u32 %v3404, %v3407
      %v3409 = vrot.slane %v3408, 4
      %v3411 = vshll.u32 %v3362, 16
      %v3413 = vrot.slane %v3411, 5
      %v3414 = vsel %vm527, %v3409, %v3413
      %v3416 = vshrl.u32 %v3363, 16
      %v3418 = vrot.slane %v3416, 4
      %v3419 = vshll.u32 %v3363, 16
      %v3421 = vrot.slane %v3419, 5
      %v3422 = vor.u32 %v3418, %v3421
      %v3423 = vrot.slane %v3422, 4
      %v3425 = vshll.u32 %v3364, 16
      %v3427 = vrot.slane %v3425, 5
      %v3428 = vsel %vm527, %v3423, %v3427
      %v3430 = vshrl.u32 %v3365, 16
      %v3432 = vrot.slane %v3430, 4
      %v3433 = vshll.u32 %v3365, 16
      %v3435 = vrot.slane %v3433, 5
      %v3436 = vor.u32 %v3432, %v3435
      %v3437 = vrot.slane %v3436, 4
      %v3439 = vshll.u32 %v3366, 16
      %v3441 = vrot.slane %v3439, 5
      %v3442 = vsel %vm527, %v3437, %v3441
      %v3444 = vshrl.u32 %v3367, 16
      %v3446 = vrot.slane %v3444, 4
      %v3447 = vshll.u32 %v3367, 16
      %v3449 = vrot.slane %v3447, 5
      %v3450 = vor.u32 %v3446, %v3449
      %v3451 = vrot.slane %v3450, 4
      %v3453 = vshll.u32 %v3368, 16
      %v3455 = vrot.slane %v3453, 5
      %v3456 = vsel %vm527, %v3451, %v3455
      %v3458 = vshrl.u32 %v3369, 16
      %v3460 = vrot.slane %v3458, 4
      %v3461 = vshll.u32 %v3369, 16
      %v3463 = vrot.slane %v3461, 5
      %v3464 = vor.u32 %v3460, %v3463
      %v3465 = vrot.slane %v3464, 4
      %v3467 = vshll.u32 %v3370, 16
      %v3469 = vrot.slane %v3467, 5
      %v3470 = vsel %vm527, %v3465, %v3469
      %v3472 = vshrl.u32 %v3371, 16
      %v3474 = vrot.slane %v3472, 4
      %v3475 = vshll.u32 %v3371, 16
      %v3477 = vrot.slane %v3475, 5
      %v3478 = vor.u32 %v3474, %v3477
      %v3479 = vrot.slane %v3478, 4
      %v3481 = vshll.u32 %v3372, 16
      %v3483 = vrot.slane %v3481, 5
      %v3484 = vsel %vm527, %v3479, %v3483
      %v3485 = vunpack.c.l.b16 %v3386
      %v3486 = vunpack.c.l.b16 %v3400
      %v3487 = vunpack.c.l.b16 %v3414
      %v3488 = vunpack.c.l.b16 %v3428
      %v3489 = vunpack.c.l.b16 %v3442
      %v3490 = vunpack.c.l.b16 %v3456
      %v3491 = vunpack.c.l.b16 %v3470
      %v3492 = vunpack.c.l.b16 %v3484
      %v3493 = vpack.c.b16 %v3486, %v3485
      %v3494 = vpack.c.b16 %v3488, %v3487
      %v3495 = vpack.c.b16 %v3490, %v3489
      %v3496 = vpack.c.b16 %v3492, %v3491
      %3501 = vmatpush.bf16.msra.mxu0 %v1744
      %3502 = vmatpush.bf16.msra.mxu0 %v1743
      %3503 = vmatpush.bf16.msra.mxu0 %v1742
      %3504 = vmatpush.bf16.msra.mxu0 %v1741
      %3505 = vmatpush.bf16.msra.mxu0 %v1740
      %3506 = vmatpush.bf16.msra.mxu0 %v1739
      %3507 = vmatpush.bf16.msra.mxu0 %v1738
      %3508 = vmatpush.bf16.msra.mxu0 %v1737
      %3509 = vmatmul.bf16.gmra.mxu0 %v3493
      %v3510 = vpop.f32.mrf.mxu0
      %v3511 = vadd.f32 0.0, %v3510
      %v3512 = vpop.f32.mrf.mxu0
      %v3513 = vadd.f32 0.0, %v3512
      %3514 = vmatmul.bf16.gmra.mxu0 %v3494
      %v3515 = vpop.f32.mrf.mxu0
      %v3516 = vadd.f32 0.0, %v3515
      %v3517 = vpop.f32.mrf.mxu0
      %v3518 = vadd.f32 0.0, %v3517
      %3519 = vmatmul.bf16.gmra.mxu0 %v3495
      %v3520 = vpop.f32.mrf.mxu0
      %v3521 = vadd.f32 0.0, %v3520
      %v3522 = vpop.f32.mrf.mxu0
      %v3523 = vadd.f32 0.0, %v3522
      %3524 = vmatmul.bf16.gmra.mxu0 %v3496
      %v3525 = vpop.f32.mrf.mxu0
      %v3526 = vadd.f32 0.0, %v3525
      %v3527 = vpop.f32.mrf.mxu0
      %v3528 = vadd.f32 0.0, %v3527
      %3529 = vdwg.mxu0
      %v3530 = vadd.f32 %v3349, %v3511
      %v3531 = vadd.f32 %v3350, %v3513
      %v3532 = vadd.f32 %v3351, %v3516
      %v3533 = vadd.f32 %v3352, %v3518
      %v3534 = vadd.f32 %v3353, %v3521
      %v3535 = vadd.f32 %v3354, %v3523
      %v3536 = vadd.f32 %v3355, %v3526
      %v3537 = vadd.f32 %v3356, %v3528
      %v3538 = vadd.f32 %v3530, %v1791
      %v3539 = vadd.f32 %v3531, %v1791
      %v3540 = vadd.f32 %v3532, %v1791
      %v3541 = vadd.f32 %v3533, %v1791
      %v3542 = vadd.f32 %v3534, %v1791
      %v3543 = vadd.f32 %v3535, %v1791
      %v3544 = vadd.f32 %v3536, %v1791
      %v3545 = vadd.f32 %v3537, %v1791
      %v3546 = vmax.f32 %v3538, 0.0
      %v3547 = vmax.f32 %v3539, 0.0
      %v3548 = vmax.f32 %v3540, 0.0
      %v3549 = vmax.f32 %v3541, 0.0
      %v3550 = vmax.f32 %v3542, 0.0
      %v3551 = vmax.f32 %v3543, 0.0
      %v3552 = vmax.f32 %v3544, 0.0
      %v3553 = vmax.f32 %v3545, 0.0
      %v3554 = vpack.c.bf16 %v3546, %v3546
      %v3555 = vpack.c.bf16 %v3547, %v3547
      %v3556 = vpack.c.bf16 %v3548, %v3548
      %v3557 = vpack.c.bf16 %v3549, %v3549
      %v3558 = vpack.c.bf16 %v3550, %v3550
      %v3559 = vpack.c.bf16 %v3551, %v3551
      %v3560 = vpack.c.bf16 %v3552, %v3552
      %v3561 = vpack.c.bf16 %v3553, %v3553
      %v3570 = vunpack.c.l.b16 %v3554
      %v3571 = vunpack.c.l.b16 %v3555
      %v3572 = vunpack.c.l.b16 %v3556
      %v3573 = vunpack.c.l.b16 %v3557
      %v3574 = vunpack.c.l.b16 %v3558
      %v3575 = vunpack.c.l.b16 %v3559
      %v3576 = vunpack.c.l.b16 %v3560
      %v3577 = vunpack.c.l.b16 %v3561
      %v3578 = vpack.c.b16 %v3571, %v3570
      %v3579 = vpack.c.b16 %v3573, %v3572
      %v3580 = vpack.c.b16 %v3575, %v3574
      %v3581 = vpack.c.b16 %v3577, %v3576
      %s3586 = scalar_lea.vmem %s3, 256
      %v3587 = vld [vmem:[%s3586] sm:$0xf]
      %v3588 = vld [vmem:[%s3586 + $0x4] sm:$0xf]
      %v3589 = vld [vmem:[%s3586 + $0x8] sm:$0xf]
      %v3590 = vld [vmem:[%s3586 + $0xc] sm:$0xf]
      %v3591 = vld [vmem:[%s3586 + $0x10] sm:$0xf]
      %v3592 = vld [vmem:[%s3586 + $0x14] sm:$0xf]
      %v3593 = vld [vmem:[%s3586 + $0x18] sm:$0xf]
      %v3594 = vld [vmem:[%s3586 + $0x1c] sm:$0xf]
      %v3595 = vld [vmem:[%s3586 + $0x20] sm:$0xf]
      %v3596 = vld [vmem:[%s3586 + $0x24] sm:$0xf]
      %v3597 = vld [vmem:[%s3586 + $0x28] sm:$0xf]
      %v3598 = vld [vmem:[%s3586 + $0x2c] sm:$0xf]
      %v3599 = vld [vmem:[%s3586 + $0x30] sm:$0xf]
      %v3600 = vld [vmem:[%s3586 + $0x34] sm:$0xf]
      %v3601 = vld [vmem:[%s3586 + $0x38] sm:$0xf]
      %v3602 = vld [vmem:[%s3586 + $0x3c] sm:$0xf]
      %v3603 = vld [vmem:[%s3586 + $0x40] sm:$0xf]
      %v3604 = vld [vmem:[%s3586 + $0x44] sm:$0xf]
      %v3605 = vld [vmem:[%s3586 + $0x48] sm:$0xf]
      %v3606 = vld [vmem:[%s3586 + $0x4c] sm:$0xf]
      %v3607 = vld [vmem:[%s3586 + $0x50] sm:$0xf]
      %v3608 = vld [vmem:[%s3586 + $0x54] sm:$0xf]
      %v3609 = vld [vmem:[%s3586 + $0x58] sm:$0xf]
      %v3610 = vld [vmem:[%s3586 + $0x5c] sm:$0xf]
      %v3611 = vld [vmem:[%s3586 + $0x60] sm:$0xf]
      %v3612 = vld [vmem:[%s3586 + $0x64] sm:$0xf]
      %v3613 = vld [vmem:[%s3586 + $0x68] sm:$0xf]
      %v3614 = vld [vmem:[%s3586 + $0x6c] sm:$0xf]
      %v3615 = vld [vmem:[%s3586 + $0x70] sm:$0xf]
      %v3616 = vld [vmem:[%s3586 + $0x74] sm:$0xf]
      %v3617 = vld [vmem:[%s3586 + $0x78] sm:$0xf]
      %v3618 = vld [vmem:[%s3586 + $0x7c] sm:$0xf]
      %v3651 = vunpack.c.l.b16 %v3587
      %v3652 = vunpack.c.l.b16 %v3588
      %v3653 = vunpack.c.l.b16 %v3589
      %v3654 = vunpack.c.l.b16 %v3590
      %v3655 = vunpack.c.l.b16 %v3591
      %v3656 = vunpack.c.l.b16 %v3592
      %v3657 = vunpack.c.l.b16 %v3593
      %v3658 = vunpack.c.l.b16 %v3594
      %v3659 = vunpack.c.l.b16 %v3595
      %v3660 = vunpack.c.l.b16 %v3596
      %v3661 = vunpack.c.l.b16 %v3597
      %v3662 = vunpack.c.l.b16 %v3598
      %v3663 = vunpack.c.l.b16 %v3599
      %v3664 = vunpack.c.l.b16 %v3600
      %v3665 = vunpack.c.l.b16 %v3601
      %v3666 = vunpack.c.l.b16 %v3602
      %v3667 = vunpack.c.l.b16 %v3603
      %v3668 = vunpack.c.l.b16 %v3604
      %v3669 = vunpack.c.l.b16 %v3605
      %v3670 = vunpack.c.l.b16 %v3606
      %v3671 = vunpack.c.l.b16 %v3607
      %v3672 = vunpack.c.l.b16 %v3608
      %v3673 = vunpack.c.l.b16 %v3609
      %v3674 = vunpack.c.l.b16 %v3610
      %v3675 = vunpack.c.l.b16 %v3611
      %v3676 = vunpack.c.l.b16 %v3612
      %v3677 = vunpack.c.l.b16 %v3613
      %v3678 = vunpack.c.l.b16 %v3614
      %v3679 = vunpack.c.l.b16 %v3615
      %v3680 = vunpack.c.l.b16 %v3616
      %v3681 = vunpack.c.l.b16 %v3617
      %v3682 = vunpack.c.l.b16 %v3618
      %v3683 = vpack.c.b16 %v3652, %v3651
      %v3684 = vpack.c.b16 %v3654, %v3653
      %v3685 = vpack.c.b16 %v3656, %v3655
      %v3686 = vpack.c.b16 %v3658, %v3657
      %v3687 = vpack.c.b16 %v3660, %v3659
      %v3688 = vpack.c.b16 %v3662, %v3661
      %v3689 = vpack.c.b16 %v3664, %v3663
      %v3690 = vpack.c.b16 %v3666, %v3665
      %v3691 = vpack.c.b16 %v3668, %v3667
      %v3692 = vpack.c.b16 %v3670, %v3669
      %v3693 = vpack.c.b16 %v3672, %v3671
      %v3694 = vpack.c.b16 %v3674, %v3673
      %v3695 = vpack.c.b16 %v3676, %v3675
      %v3696 = vpack.c.b16 %v3678, %v3677
      %v3697 = vpack.c.b16 %v3680, %v3679
      %v3698 = vpack.c.b16 %v3682, %v3681
      %3715 = vmatpush.bf16.msra.mxu0 %v3690
      %3716 = vmatpush.bf16.msra.mxu0 %v3689
      %3717 = vmatpush.bf16.msra.mxu0 %v3688
      %3718 = vmatpush.bf16.msra.mxu0 %v3687
      %3719 = vmatpush.bf16.msra.mxu0 %v3686
      %3720 = vmatpush.bf16.msra.mxu0 %v3685
      %3721 = vmatpush.bf16.msra.mxu0 %v3684
      %3722 = vmatpush.bf16.msra.mxu0 %v3683
      %3723 = vmatmul.bf16.gmra.mxu0 %v3578
      %v3724 = vpop.f32.mrf.mxu0
      %v3725 = vadd.f32 0.0, %v3724
      %v3726 = vpop.f32.mrf.mxu0
      %v3727 = vadd.f32 0.0, %v3726
      %3728 = vmatmul.bf16.gmra.mxu0 %v3579
      %v3729 = vpop.f32.mrf.mxu0
      %v3730 = vadd.f32 0.0, %v3729
      %v3731 = vpop.f32.mrf.mxu0
      %v3732 = vadd.f32 0.0, %v3731
      %3733 = vmatmul.bf16.gmra.mxu0 %v3580
      %v3734 = vpop.f32.mrf.mxu0
      %v3735 = vadd.f32 0.0, %v3734
      %v3736 = vpop.f32.mrf.mxu0
      %v3737 = vadd.f32 0.0, %v3736
      %3738 = vmatmul.bf16.gmra.mxu0 %v3581
      %v3739 = vpop.f32.mrf.mxu0
      %v3740 = vadd.f32 0.0, %v3739
      %v3741 = vpop.f32.mrf.mxu0
      %v3742 = vadd.f32 0.0, %v3741
      %3743 = vdwg.mxu0
      %3744 = vmatpush.bf16.msra.mxu0 %v3698
      %3745 = vmatpush.bf16.msra.mxu0 %v3697
      %3746 = vmatpush.bf16.msra.mxu0 %v3696
      %3747 = vmatpush.bf16.msra.mxu0 %v3695
      %3748 = vmatpush.bf16.msra.mxu0 %v3694
      %3749 = vmatpush.bf16.msra.mxu0 %v3693
      %3750 = vmatpush.bf16.msra.mxu0 %v3692
      %3751 = vmatpush.bf16.msra.mxu0 %v3691
      %3752 = vmatmul.bf16.gmra.mxu0 %v1451
      %v3753 = vpop.f32.mrf.mxu0
      %v3754 = vadd.f32 %v3725, %v3753
      %v3755 = vpop.f32.mrf.mxu0
      %v3756 = vadd.f32 %v3727, %v3755
      %3757 = vmatmul.bf16.gmra.mxu0 %v1452
      %v3758 = vpop.f32.mrf.mxu0
      %v3759 = vadd.f32 %v3730, %v3758
      %v3760 = vpop.f32.mrf.mxu0
      %v3761 = vadd.f32 %v3732, %v3760
      %3762 = vmatmul.bf16.gmra.mxu0 %v1453
      %v3763 = vpop.f32.mrf.mxu0
      %v3764 = vadd.f32 %v3735, %v3763
      %v3765 = vpop.f32.mrf.mxu0
      %v3766 = vadd.f32 %v3737, %v3765
      %3767 = vmatmul.bf16.gmra.mxu0 %v1454
      %v3768 = vpop.f32.mrf.mxu0
      %v3769 = vadd.f32 %v3740, %v3768
      %v3770 = vpop.f32.mrf.mxu0
      %v3771 = vadd.f32 %v3742, %v3770
      %3772 = vdwg.mxu0
      %v3773 = vadd.f32 %v2992, %v3754
      %v3774 = vadd.f32 %v2994, %v3756
      %v3775 = vadd.f32 %v2997, %v3759
      %v3776 = vadd.f32 %v2999, %v3761
      %v3777 = vadd.f32 %v3002, %v3764
      %v3778 = vadd.f32 %v3004, %v3766
      %v3779 = vadd.f32 %v3007, %v3769
      %v3780 = vadd.f32 %v3009, %v3771
      %3781 = vmatpush.bf16.msra.mxu0 %v370
      %3782 = vmatpush.bf16.msra.mxu0 %v369
      %3783 = vmatpush.bf16.msra.mxu0 %v368
      %3784 = vmatpush.bf16.msra.mxu0 %v367
      %3785 = vmatpush.bf16.msra.mxu0 %v366
      %3786 = vmatpush.bf16.msra.mxu0 %v365
      %3787 = vmatpush.bf16.msra.mxu0 %v364
      %3788 = vmatpush.bf16.msra.mxu0 %v363
      %3789 = vmatmul.bf16.gmra.mxu0 %v1181
      %v3790 = vpop.f32.mrf.mxu0
      %v3791 = vadd.f32 0.0, %v3790
      %v3792 = vpop.f32.mrf.mxu0
      %v3793 = vadd.f32 0.0, %v3792
      %3794 = vmatmul.bf16.gmra.mxu0 %v1182
      %v3795 = vpop.f32.mrf.mxu0
      %v3796 = vadd.f32 0.0, %v3795
      %v3797 = vpop.f32.mrf.mxu0
      %v3798 = vadd.f32 0.0, %v3797
      %3799 = vmatmul.bf16.gmra.mxu0 %v1183
      %v3800 = vpop.f32.mrf.mxu0
      %v3801 = vadd.f32 0.0, %v3800
      %v3802 = vpop.f32.mrf.mxu0
      %v3803 = vadd.f32 0.0, %v3802
      %3804 = vmatmul.bf16.gmra.mxu0 %v1184
      %v3805 = vpop.f32.mrf.mxu0
      %v3806 = vadd.f32 0.0, %v3805
      %v3807 = vpop.f32.mrf.mxu0
      %v3808 = vadd.f32 0.0, %v3807
      %3809 = vdwg.mxu0
      %3810 = vmatpush.bf16.msra.mxu0 %v471
      %3811 = vmatpush.bf16.msra.mxu0 %v470
      %3812 = vmatpush.bf16.msra.mxu0 %v469
      %3813 = vmatpush.bf16.msra.mxu0 %v468
      %3814 = vmatpush.bf16.msra.mxu0 %v467
      %3815 = vmatpush.bf16.msra.mxu0 %v466
      %3816 = vmatpush.bf16.msra.mxu0 %v465
      %3817 = vmatpush.bf16.msra.mxu0 %v464
      %3818 = vmatmul.bf16.gmra.mxu0 %v935
      %v3819 = vpop.f32.mrf.mxu0
      %v3820 = vadd.f32 %v3791, %v3819
      %v3821 = vpop.f32.mrf.mxu0
      %v3822 = vadd.f32 %v3793, %v3821
      %3823 = vmatmul.bf16.gmra.mxu0 %v936
      %v3824 = vpop.f32.mrf.mxu0
      %v3825 = vadd.f32 %v3796, %v3824
      %v3826 = vpop.f32.mrf.mxu0
      %v3827 = vadd.f32 %v3798, %v3826
      %3828 = vmatmul.bf16.gmra.mxu0 %v937
      %v3829 = vpop.f32.mrf.mxu0
      %v3830 = vadd.f32 %v3801, %v3829
      %v3831 = vpop.f32.mrf.mxu0
      %v3832 = vadd.f32 %v3803, %v3831
      %3833 = vmatmul.bf16.gmra.mxu0 %v938
      %v3834 = vpop.f32.mrf.mxu0
      %v3835 = vadd.f32 %v3806, %v3834
      %v3836 = vpop.f32.mrf.mxu0
      %v3837 = vadd.f32 %v3808, %v3836
      %3838 = vdwg.mxu0
      %3839 = vmatpush.bf16.msra.mxu0 %v712
      %3840 = vmatpush.bf16.msra.mxu0 %v711
      %3841 = vmatpush.bf16.msra.mxu0 %v710
      %3842 = vmatpush.bf16.msra.mxu0 %v709
      %3843 = vmatpush.bf16.msra.mxu0 %v708
      %3844 = vmatpush.bf16.msra.mxu0 %v707
      %3845 = vmatpush.bf16.msra.mxu0 %v706
      %3846 = vmatpush.bf16.msra.mxu0 %v705
      %3847 = vmatmul.bf16.gmra.mxu0 %v2322
      %v3848 = vpop.f32.mrf.mxu0
      %v3849 = vadd.f32 0.0, %v3848
      %v3850 = vpop.f32.mrf.mxu0
      %v3851 = vadd.f32 0.0, %v3850
      %3852 = vmatmul.bf16.gmra.mxu0 %v2323
      %v3853 = vpop.f32.mrf.mxu0
      %v3854 = vadd.f32 0.0, %v3853
      %v3855 = vpop.f32.mrf.mxu0
      %v3856 = vadd.f32 0.0, %v3855
      %3857 = vmatmul.bf16.gmra.mxu0 %v2324
      %v3858 = vpop.f32.mrf.mxu0
      %v3859 = vadd.f32 0.0, %v3858
      %v3860 = vpop.f32.mrf.mxu0
      %v3861 = vadd.f32 0.0, %v3860
      %3862 = vmatmul.bf16.gmra.mxu0 %v2325
      %v3863 = vpop.f32.mrf.mxu0
      %v3864 = vadd.f32 0.0, %v3863
      %v3865 = vpop.f32.mrf.mxu0
      %v3866 = vadd.f32 0.0, %v3865
      %3867 = vdwg.mxu0
      %v3868 = vadd.f32 %v3820, %v3849
      %v3869 = vadd.f32 %v3822, %v3851
      %v3870 = vadd.f32 %v3825, %v3854
      %v3871 = vadd.f32 %v3827, %v3856
      %v3872 = vadd.f32 %v3830, %v3859
      %v3873 = vadd.f32 %v3832, %v3861
      %v3874 = vadd.f32 %v3835, %v3864
      %v3875 = vadd.f32 %v3837, %v3866
      %3876 = vmatpush.bf16.msra.mxu0 %v847
      %3877 = vmatpush.bf16.msra.mxu0 %v846
      %3878 = vmatpush.bf16.msra.mxu0 %v845
      %3879 = vmatpush.bf16.msra.mxu0 %v844
      %3880 = vmatpush.bf16.msra.mxu0 %v843
      %3881 = vmatpush.bf16.msra.mxu0 %v842
      %3882 = vmatpush.bf16.msra.mxu0 %v841
      %3883 = vmatpush.bf16.msra.mxu0 %v840
      %3884 = vmatmul.bf16.gmra.mxu0 %v1451
      %v3885 = vpop.f32.mrf.mxu0
      %v3886 = vadd.f32 0.0, %v3885
      %v3887 = vpop.f32.mrf.mxu0
      %v3888 = vadd.f32 0.0, %v3887
      %3889 = vmatmul.bf16.gmra.mxu0 %v1452
      %v3890 = vpop.f32.mrf.mxu0
      %v3891 = vadd.f32 0.0, %v3890
      %v3892 = vpop.f32.mrf.mxu0
      %v3893 = vadd.f32 0.0, %v3892
      %3894 = vmatmul.bf16.gmra.mxu0 %v1453
      %v3895 = vpop.f32.mrf.mxu0
      %v3896 = vadd.f32 0.0, %v3895
      %v3897 = vpop.f32.mrf.mxu0
      %v3898 = vadd.f32 0.0, %v3897
      %3899 = vmatmul.bf16.gmra.mxu0 %v1454
      %v3900 = vpop.f32.mrf.mxu0
      %v3901 = vadd.f32 0.0, %v3900
      %v3902 = vpop.f32.mrf.mxu0
      %v3903 = vadd.f32 0.0, %v3902
      %3904 = vdwg.mxu0
      %v3905 = vadd.f32 %v3868, %v3886
      %v3906 = vadd.f32 %v3869, %v3888
      %v3907 = vadd.f32 %v3870, %v3891
      %v3908 = vadd.f32 %v3871, %v3893
      %v3909 = vadd.f32 %v3872, %v3896
      %v3910 = vadd.f32 %v3873, %v3898
      %v3911 = vadd.f32 %v3874, %v3901
      %v3912 = vadd.f32 %v3875, %v3903
      %3913 = vmatpush.bf16.msra.mxu0 %v982
      %3914 = vmatpush.bf16.msra.mxu0 %v981
      %3915 = vmatpush.bf16.msra.mxu0 %v980
      %3916 = vmatpush.bf16.msra.mxu0 %v979
      %3917 = vmatpush.bf16.msra.mxu0 %v978
      %3918 = vmatpush.bf16.msra.mxu0 %v977
      %3919 = vmatpush.bf16.msra.mxu0 %v976
      %3920 = vmatpush.bf16.msra.mxu0 %v975
      %3921 = vmatmul.bf16.gmra.mxu0 %v1697
      %v3922 = vpop.f32.mrf.mxu0
      %v3923 = vadd.f32 0.0, %v3922
      %v3924 = vpop.f32.mrf.mxu0
      %v3925 = vadd.f32 0.0, %v3924
      %3926 = vmatmul.bf16.gmra.mxu0 %v1698
      %v3927 = vpop.f32.mrf.mxu0
      %v3928 = vadd.f32 0.0, %v3927
      %v3929 = vpop.f32.mrf.mxu0
      %v3930 = vadd.f32 0.0, %v3929
      %3931 = vmatmul.bf16.gmra.mxu0 %v1699
      %v3932 = vpop.f32.mrf.mxu0
      %v3933 = vadd.f32 0.0, %v3932
      %v3934 = vpop.f32.mrf.mxu0
      %v3935 = vadd.f32 0.0, %v3934
      %3936 = vmatmul.bf16.gmra.mxu0 %v1700
      %v3937 = vpop.f32.mrf.mxu0
      %v3938 = vadd.f32 0.0, %v3937
      %v3939 = vpop.f32.mrf.mxu0
      %v3940 = vadd.f32 0.0, %v3939
      %3941 = vdwg.mxu0
      %v3942 = vadd.f32 %v3905, %v3923
      %v3943 = vadd.f32 %v3906, %v3925
      %v3944 = vadd.f32 %v3907, %v3928
      %v3945 = vadd.f32 %v3908, %v3930
      %v3946 = vadd.f32 %v3909, %v3933
      %v3947 = vadd.f32 %v3910, %v3935
      %v3948 = vadd.f32 %v3911, %v3938
      %v3949 = vadd.f32 %v3912, %v3940
      %3950 = vmatpush.bf16.msra.mxu0 %v1228
      %3951 = vmatpush.bf16.msra.mxu0 %v1227
      %3952 = vmatpush.bf16.msra.mxu0 %v1226
      %3953 = vmatpush.bf16.msra.mxu0 %v1225
      %3954 = vmatpush.bf16.msra.mxu0 %v1224
      %3955 = vmatpush.bf16.msra.mxu0 %v1223
      %3956 = vmatpush.bf16.msra.mxu0 %v1222
      %3957 = vmatpush.bf16.msra.mxu0 %v1221
      %3958 = vmatmul.bf16.gmra.mxu0 %v2577
      %v3959 = vpop.f32.mrf.mxu0
      %v3960 = vadd.f32 0.0, %v3959
      %v3961 = vpop.f32.mrf.mxu0
      %v3962 = vadd.f32 0.0, %v3961
      %3963 = vmatmul.bf16.gmra.mxu0 %v2578
      %v3964 = vpop.f32.mrf.mxu0
      %v3965 = vadd.f32 0.0, %v3964
      %v3966 = vpop.f32.mrf.mxu0
      %v3967 = vadd.f32 0.0, %v3966
      %3968 = vmatmul.bf16.gmra.mxu0 %v2579
      %v3969 = vpop.f32.mrf.mxu0
      %v3970 = vadd.f32 0.0, %v3969
      %v3971 = vpop.f32.mrf.mxu0
      %v3972 = vadd.f32 0.0, %v3971
      %3973 = vmatmul.bf16.gmra.mxu0 %v2580
      %v3974 = vpop.f32.mrf.mxu0
      %v3975 = vadd.f32 0.0, %v3974
      %v3976 = vpop.f32.mrf.mxu0
      %v3977 = vadd.f32 0.0, %v3976
      %3978 = vdwg.mxu0
      %v3979 = vadd.f32 %v3942, %v3960
      %v3980 = vadd.f32 %v3943, %v3962
      %v3981 = vadd.f32 %v3944, %v3965
      %v3982 = vadd.f32 %v3945, %v3967
      %v3983 = vadd.f32 %v3946, %v3970
      %v3984 = vadd.f32 %v3947, %v3972
      %v3985 = vadd.f32 %v3948, %v3975
      %v3986 = vadd.f32 %v3949, %v3977
      %3987 = vmatpush.bf16.msra.mxu0 %v1363
      %3988 = vmatpush.bf16.msra.mxu0 %v1362
      %3989 = vmatpush.bf16.msra.mxu0 %v1361
      %3990 = vmatpush.bf16.msra.mxu0 %v1360
      %3991 = vmatpush.bf16.msra.mxu0 %v1359
      %3992 = vmatpush.bf16.msra.mxu0 %v1358
      %3993 = vmatpush.bf16.msra.mxu0 %v1357
      %3994 = vmatpush.bf16.msra.mxu0 %v1356
      %3995 = vmatmul.bf16.gmra.mxu0 %v3312
      %v3996 = vpop.f32.mrf.mxu0
      %v3997 = vadd.f32 0.0, %v3996
      %v3998 = vpop.f32.mrf.mxu0
      %v3999 = vadd.f32 0.0, %v3998
      %4000 = vmatmul.bf16.gmra.mxu0 %v3313
      %v4001 = vpop.f32.mrf.mxu0
      %v4002 = vadd.f32 0.0, %v4001
      %v4003 = vpop.f32.mrf.mxu0
      %v4004 = vadd.f32 0.0, %v4003
      %4005 = vmatmul.bf16.gmra.mxu0 %v3314
      %v4006 = vpop.f32.mrf.mxu0
      %v4007 = vadd.f32 0.0, %v4006
      %v4008 = vpop.f32.mrf.mxu0
      %v4009 = vadd.f32 0.0, %v4008
      %4010 = vmatmul.bf16.gmra.mxu0 %v3315
      %v4011 = vpop.f32.mrf.mxu0
      %v4012 = vadd.f32 0.0, %v4011
      %v4013 = vpop.f32.mrf.mxu0
      %v4014 = vadd.f32 0.0, %v4013
      %4015 = vdwg.mxu0
      %v4016 = vadd.f32 %v3979, %v3997
      %v4017 = vadd.f32 %v3980, %v3999
      %v4018 = vadd.f32 %v3981, %v4002
      %v4019 = vadd.f32 %v3982, %v4004
      %v4020 = vadd.f32 %v3983, %v4007
      %v4021 = vadd.f32 %v3984, %v4009
      %v4022 = vadd.f32 %v3985, %v4012
      %v4023 = vadd.f32 %v3986, %v4014
      %4024 = vmatpush.bf16.msra.mxu0 %v1498
      %4025 = vmatpush.bf16.msra.mxu0 %v1497
      %4026 = vmatpush.bf16.msra.mxu0 %v1496
      %4027 = vmatpush.bf16.msra.mxu0 %v1495
      %4028 = vmatpush.bf16.msra.mxu0 %v1494
      %4029 = vmatpush.bf16.msra.mxu0 %v1493
      %4030 = vmatpush.bf16.msra.mxu0 %v1492
      %4031 = vmatpush.bf16.msra.mxu0 %v1491
      %4032 = vmatmul.bf16.gmra.mxu0 %v3493
      %v4033 = vpop.f32.mrf.mxu0
      %v4034 = vadd.f32 0.0, %v4033
      %v4035 = vpop.f32.mrf.mxu0
      %v4036 = vadd.f32 0.0, %v4035
      %4037 = vmatmul.bf16.gmra.mxu0 %v3494
      %v4038 = vpop.f32.mrf.mxu0
      %v4039 = vadd.f32 0.0, %v4038
      %v4040 = vpop.f32.mrf.mxu0
      %v4041 = vadd.f32 0.0, %v4040
      %4042 = vmatmul.bf16.gmra.mxu0 %v3495
      %v4043 = vpop.f32.mrf.mxu0
      %v4044 = vadd.f32 0.0, %v4043
      %v4045 = vpop.f32.mrf.mxu0
      %v4046 = vadd.f32 0.0, %v4045
      %4047 = vmatmul.bf16.gmra.mxu0 %v3496
      %v4048 = vpop.f32.mrf.mxu0
      %v4049 = vadd.f32 0.0, %v4048
      %v4050 = vpop.f32.mrf.mxu0
      %v4051 = vadd.f32 0.0, %v4050
      %4052 = vdwg.mxu0
      %v4053 = vadd.f32 %v4016, %v4034
      %v4054 = vadd.f32 %v4017, %v4036
      %v4055 = vadd.f32 %v4018, %v4039
      %v4056 = vadd.f32 %v4019, %v4041
      %v4057 = vadd.f32 %v4020, %v4044
      %v4058 = vadd.f32 %v4021, %v4046
      %v4059 = vadd.f32 %v4022, %v4049
      %v4060 = vadd.f32 %v4023, %v4051
      %v4061 = vld [vmem:[%s3287] sm:$0xf]
      %v4062 = vld [vmem:[%s3287 + $0x4] sm:$0x1]
      %v4063 = vld [vmem:[%s3287 + $0x8] sm:$0xf]
      %v4064 = vld [vmem:[%s3287 + $0xc] sm:$0x1]
      %v4065 = vld [vmem:[%s3287 + $0x10] sm:$0xf]
      %v4066 = vld [vmem:[%s3287 + $0x14] sm:$0x1]
      %v4067 = vld [vmem:[%s3287 + $0x18] sm:$0xf]
      %v4068 = vld [vmem:[%s3287 + $0x1c] sm:$0x1]
      %v4069 = vld [vmem:[%s3287 + $0x20] sm:$0xf]
      %v4070 = vld [vmem:[%s3287 + $0x24] sm:$0x1]
      %v4071 = vld [vmem:[%s3287 + $0x28] sm:$0xf]
      %v4072 = vld [vmem:[%s3287 + $0x2c] sm:$0x1]
      %v4073 = vld [vmem:[%s3287 + $0x30] sm:$0xf]
      %v4074 = vld [vmem:[%s3287 + $0x34] sm:$0x1]
      %v4075 = vld [vmem:[%s3287 + $0x38] sm:$0xf]
      %v4076 = vld [vmem:[%s3287 + $0x3c] sm:$0x1]
      %v4078 = vshrl.u32 %v4061, 16
      %v4080 = vrot.slane %v4078, 4
      %v4081 = vshll.u32 %v4061, 16
      %v4083 = vrot.slane %v4081, 5
      %v4084 = vor.u32 %v4080, %v4083
      %v4085 = vrot.slane %v4084, 4
      %v4087 = vshll.u32 %v4062, 16
      %v4089 = vrot.slane %v4087, 5
      %v4090 = vsel %vm527, %v4085, %v4089
      %v4092 = vshrl.u32 %v4063, 16
      %v4094 = vrot.slane %v4092, 4
      %v4095 = vshll.u32 %v4063, 16
      %v4097 = vrot.slane %v4095, 5
      %v4098 = vor.u32 %v4094, %v4097
      %v4099 = vrot.slane %v4098, 4
      %v4101 = vshll.u32 %v4064, 16
      %v4103 = vrot.slane %v4101, 5
      %v4104 = vsel %vm527, %v4099, %v4103
      %v4106 = vshrl.u32 %v4065, 16
      %v4108 = vrot.slane %v4106, 4
      %v4109 = vshll.u32 %v4065, 16
      %v4111 = vrot.slane %v4109, 5
      %v4112 = vor.u32 %v4108, %v4111
      %v4113 = vrot.slane %v4112, 4
      %v4115 = vshll.u32 %v4066, 16
      %v4117 = vrot.slane %v4115, 5
      %v4118 = vsel %vm527, %v4113, %v4117
      %v4120 = vshrl.u32 %v4067, 16
      %v4122 = vrot.slane %v4120, 4
      %v4123 = vshll.u32 %v4067, 16
      %v4125 = vrot.slane %v4123, 5
      %v4126 = vor.u32 %v4122, %v4125
      %v4127 = vrot.slane %v4126, 4
      %v4129 = vshll.u32 %v4068, 16
      %v4131 = vrot.slane %v4129, 5
      %v4132 = vsel %vm527, %v4127, %v4131
      %v4134 = vshrl.u32 %v4069, 16
      %v4136 = vrot.slane %v4134, 4
      %v4137 = vshll.u32 %v4069, 16
      %v4139 = vrot.slane %v4137, 5
      %v4140 = vor.u32 %v4136, %v4139
      %v4141 = vrot.slane %v4140, 4
      %v4143 = vshll.u32 %v4070, 16
      %v4145 = vrot.slane %v4143, 5
      %v4146 = vsel %vm527, %v4141, %v4145
      %v4148 = vshrl.u32 %v4071, 16
      %v4150 = vrot.slane %v4148, 4
      %v4151 = vshll.u32 %v4071, 16
      %v4153 = vrot.slane %v4151, 5
      %v4154 = vor.u32 %v4150, %v4153
      %v4155 = vrot.slane %v4154, 4
      %v4157 = vshll.u32 %v4072, 16
      %v4159 = vrot.slane %v4157, 5
      %v4160 = vsel %vm527, %v4155, %v4159
      %v4162 = vshrl.u32 %v4073, 16
      %v4164 = vrot.slane %v4162, 4
      %v4165 = vshll.u32 %v4073, 16
      %v4167 = vrot.slane %v4165, 5
      %v4168 = vor.u32 %v4164, %v4167
      %v4169 = vrot.slane %v4168, 4
      %v4171 = vshll.u32 %v4074, 16
      %v4173 = vrot.slane %v4171, 5
      %v4174 = vsel %vm527, %v4169, %v4173
      %v4176 = vshrl.u32 %v4075, 16
      %v4178 = vrot.slane %v4176, 4
      %v4179 = vshll.u32 %v4075, 16
      %v4181 = vrot.slane %v4179, 5
      %v4182 = vor.u32 %v4178, %v4181
      %v4183 = vrot.slane %v4182, 4
      %v4185 = vshll.u32 %v4076, 16
      %v4187 = vrot.slane %v4185, 5
      %v4188 = vsel %vm527, %v4183, %v4187
      %v4189 = vunpack.c.l.b16 %v4090
      %v4190 = vunpack.c.l.b16 %v4104
      %v4191 = vunpack.c.l.b16 %v4118
      %v4192 = vunpack.c.l.b16 %v4132
      %v4193 = vunpack.c.l.b16 %v4146
      %v4194 = vunpack.c.l.b16 %v4160
      %v4195 = vunpack.c.l.b16 %v4174
      %v4196 = vunpack.c.l.b16 %v4188
      %v4197 = vpack.c.b16 %v4190, %v4189
      %v4198 = vpack.c.b16 %v4192, %v4191
      %v4199 = vpack.c.b16 %v4194, %v4193
      %v4200 = vpack.c.b16 %v4196, %v4195
      %4205 = vmatpush.bf16.msra.mxu0 %v1744
      %4206 = vmatpush.bf16.msra.mxu0 %v1743
      %4207 = vmatpush.bf16.msra.mxu0 %v1742
      %4208 = vmatpush.bf16.msra.mxu0 %v1741
      %4209 = vmatpush.bf16.msra.mxu0 %v1740
      %4210 = vmatpush.bf16.msra.mxu0 %v1739
      %4211 = vmatpush.bf16.msra.mxu0 %v1738
      %4212 = vmatpush.bf16.msra.mxu0 %v1737
      %4213 = vmatmul.bf16.gmra.mxu0 %v4197
      %v4214 = vpop.f32.mrf.mxu0
      %v4215 = vadd.f32 0.0, %v4214
      %v4216 = vpop.f32.mrf.mxu0
      %v4217 = vadd.f32 0.0, %v4216
      %4218 = vmatmul.bf16.gmra.mxu0 %v4198
      %v4219 = vpop.f32.mrf.mxu0
      %v4220 = vadd.f32 0.0, %v4219
      %v4221 = vpop.f32.mrf.mxu0
      %v4222 = vadd.f32 0.0, %v4221
      %4223 = vmatmul.bf16.gmra.mxu0 %v4199
      %v4224 = vpop.f32.mrf.mxu0
      %v4225 = vadd.f32 0.0, %v4224
      %v4226 = vpop.f32.mrf.mxu0
      %v4227 = vadd.f32 0.0, %v4226
      %4228 = vmatmul.bf16.gmra.mxu0 %v4200
      %v4229 = vpop.f32.mrf.mxu0
      %v4230 = vadd.f32 0.0, %v4229
      %v4231 = vpop.f32.mrf.mxu0
      %v4232 = vadd.f32 0.0, %v4231
      %4233 = vdwg.mxu0
      %v4234 = vadd.f32 %v4053, %v4215
      %v4235 = vadd.f32 %v4054, %v4217
      %v4236 = vadd.f32 %v4055, %v4220
      %v4237 = vadd.f32 %v4056, %v4222
      %v4238 = vadd.f32 %v4057, %v4225
      %v4239 = vadd.f32 %v4058, %v4227
      %v4240 = vadd.f32 %v4059, %v4230
      %v4241 = vadd.f32 %v4060, %v4232
      %v4242 = vadd.f32 %v4234, %v1791
      %v4243 = vadd.f32 %v4235, %v1791
      %v4244 = vadd.f32 %v4236, %v1791
      %v4245 = vadd.f32 %v4237, %v1791
      %v4246 = vadd.f32 %v4238, %v1791
      %v4247 = vadd.f32 %v4239, %v1791
      %v4248 = vadd.f32 %v4240, %v1791
      %v4249 = vadd.f32 %v4241, %v1791
      %v4250 = vmax.f32 %v4242, 0.0
      %v4251 = vmax.f32 %v4243, 0.0
      %v4252 = vmax.f32 %v4244, 0.0
      %v4253 = vmax.f32 %v4245, 0.0
      %v4254 = vmax.f32 %v4246, 0.0
      %v4255 = vmax.f32 %v4247, 0.0
      %v4256 = vmax.f32 %v4248, 0.0
      %v4257 = vmax.f32 %v4249, 0.0
      %v4258 = vpack.c.bf16 %v4250, %v4250
      %v4259 = vpack.c.bf16 %v4251, %v4251
      %v4260 = vpack.c.bf16 %v4252, %v4252
      %v4261 = vpack.c.bf16 %v4253, %v4253
      %v4262 = vpack.c.bf16 %v4254, %v4254
      %v4263 = vpack.c.bf16 %v4255, %v4255
      %v4264 = vpack.c.bf16 %v4256, %v4256
      %v4265 = vpack.c.bf16 %v4257, %v4257
      %v4274 = vunpack.c.l.b16 %v4258
      %v4275 = vunpack.c.l.b16 %v4259
      %v4276 = vunpack.c.l.b16 %v4260
      %v4277 = vunpack.c.l.b16 %v4261
      %v4278 = vunpack.c.l.b16 %v4262
      %v4279 = vunpack.c.l.b16 %v4263
      %v4280 = vunpack.c.l.b16 %v4264
      %v4281 = vunpack.c.l.b16 %v4265
      %v4282 = vpack.c.b16 %v4275, %v4274
      %v4283 = vpack.c.b16 %v4277, %v4276
      %v4284 = vpack.c.b16 %v4279, %v4278
      %v4285 = vpack.c.b16 %v4281, %v4280
      %s4290 = scalar_lea.vmem %s3, 384
      %v4291 = vld [vmem:[%s4290] sm:$0xf]
      %v4292 = vld [vmem:[%s4290 + $0x4] sm:$0xf]
      %v4293 = vld [vmem:[%s4290 + $0x8] sm:$0xf]
      %v4294 = vld [vmem:[%s4290 + $0xc] sm:$0xf]
      %v4295 = vld [vmem:[%s4290 + $0x10] sm:$0xf]
      %v4296 = vld [vmem:[%s4290 + $0x14] sm:$0xf]
      %v4297 = vld [vmem:[%s4290 + $0x18] sm:$0xf]
      %v4298 = vld [vmem:[%s4290 + $0x1c] sm:$0xf]
      %v4299 = vld [vmem:[%s4290 + $0x20] sm:$0xf]
      %v4300 = vld [vmem:[%s4290 + $0x24] sm:$0xf]
      %v4301 = vld [vmem:[%s4290 + $0x28] sm:$0xf]
      %v4302 = vld [vmem:[%s4290 + $0x2c] sm:$0xf]
      %v4303 = vld [vmem:[%s4290 + $0x30] sm:$0xf]
      %v4304 = vld [vmem:[%s4290 + $0x34] sm:$0xf]
      %v4305 = vld [vmem:[%s4290 + $0x38] sm:$0xf]
      %v4306 = vld [vmem:[%s4290 + $0x3c] sm:$0xf]
      %v4307 = vld [vmem:[%s4290 + $0x40] sm:$0xf]
      %v4308 = vld [vmem:[%s4290 + $0x44] sm:$0xf]
      %v4309 = vld [vmem:[%s4290 + $0x48] sm:$0xf]
      %v4310 = vld [vmem:[%s4290 + $0x4c] sm:$0xf]
      %v4311 = vld [vmem:[%s4290 + $0x50] sm:$0xf]
      %v4312 = vld [vmem:[%s4290 + $0x54] sm:$0xf]
      %v4313 = vld [vmem:[%s4290 + $0x58] sm:$0xf]
      %v4314 = vld [vmem:[%s4290 + $0x5c] sm:$0xf]
      %v4315 = vld [vmem:[%s4290 + $0x60] sm:$0xf]
      %v4316 = vld [vmem:[%s4290 + $0x64] sm:$0xf]
      %v4317 = vld [vmem:[%s4290 + $0x68] sm:$0xf]
      %v4318 = vld [vmem:[%s4290 + $0x6c] sm:$0xf]
      %v4319 = vld [vmem:[%s4290 + $0x70] sm:$0xf]
      %v4320 = vld [vmem:[%s4290 + $0x74] sm:$0xf]
      %v4321 = vld [vmem:[%s4290 + $0x78] sm:$0xf]
      %v4322 = vld [vmem:[%s4290 + $0x7c] sm:$0xf]
      %v4355 = vunpack.c.l.b16 %v4291
      %v4356 = vunpack.c.l.b16 %v4292
      %v4357 = vunpack.c.l.b16 %v4293
      %v4358 = vunpack.c.l.b16 %v4294
      %v4359 = vunpack.c.l.b16 %v4295
      %v4360 = vunpack.c.l.b16 %v4296
      %v4361 = vunpack.c.l.b16 %v4297
      %v4362 = vunpack.c.l.b16 %v4298
      %v4363 = vunpack.c.l.b16 %v4299
      %v4364 = vunpack.c.l.b16 %v4300
      %v4365 = vunpack.c.l.b16 %v4301
      %v4366 = vunpack.c.l.b16 %v4302
      %v4367 = vunpack.c.l.b16 %v4303
      %v4368 = vunpack.c.l.b16 %v4304
      %v4369 = vunpack.c.l.b16 %v4305
      %v4370 = vunpack.c.l.b16 %v4306
      %v4371 = vunpack.c.l.b16 %v4307
      %v4372 = vunpack.c.l.b16 %v4308
      %v4373 = vunpack.c.l.b16 %v4309
      %v4374 = vunpack.c.l.b16 %v4310
      %v4375 = vunpack.c.l.b16 %v4311
      %v4376 = vunpack.c.l.b16 %v4312
      %v4377 = vunpack.c.l.b16 %v4313
      %v4378 = vunpack.c.l.b16 %v4314
      %v4379 = vunpack.c.l.b16 %v4315
      %v4380 = vunpack.c.l.b16 %v4316
      %v4381 = vunpack.c.l.b16 %v4317
      %v4382 = vunpack.c.l.b16 %v4318
      %v4383 = vunpack.c.l.b16 %v4319
      %v4384 = vunpack.c.l.b16 %v4320
      %v4385 = vunpack.c.l.b16 %v4321
      %v4386 = vunpack.c.l.b16 %v4322
      %v4387 = vpack.c.b16 %v4356, %v4355
      %v4388 = vpack.c.b16 %v4358, %v4357
      %v4389 = vpack.c.b16 %v4360, %v4359
      %v4390 = vpack.c.b16 %v4362, %v4361
      %v4391 = vpack.c.b16 %v4364, %v4363
      %v4392 = vpack.c.b16 %v4366, %v4365
      %v4393 = vpack.c.b16 %v4368, %v4367
      %v4394 = vpack.c.b16 %v4370, %v4369
      %v4395 = vpack.c.b16 %v4372, %v4371
      %v4396 = vpack.c.b16 %v4374, %v4373
      %v4397 = vpack.c.b16 %v4376, %v4375
      %v4398 = vpack.c.b16 %v4378, %v4377
      %v4399 = vpack.c.b16 %v4380, %v4379
      %v4400 = vpack.c.b16 %v4382, %v4381
      %v4401 = vpack.c.b16 %v4384, %v4383
      %v4402 = vpack.c.b16 %v4386, %v4385
      %4419 = vmatpush.bf16.msra.mxu0 %v4394
      %4420 = vmatpush.bf16.msra.mxu0 %v4393
      %4421 = vmatpush.bf16.msra.mxu0 %v4392
      %4422 = vmatpush.bf16.msra.mxu0 %v4391
      %4423 = vmatpush.bf16.msra.mxu0 %v4390
      %4424 = vmatpush.bf16.msra.mxu0 %v4389
      %4425 = vmatpush.bf16.msra.mxu0 %v4388
      %4426 = vmatpush.bf16.msra.mxu0 %v4387
      %4427 = vmatmul.bf16.gmra.mxu0 %v4282
      %v4428 = vpop.f32.mrf.mxu0
      %v4429 = vadd.f32 0.0, %v4428
      %v4430 = vpop.f32.mrf.mxu0
      %v4431 = vadd.f32 0.0, %v4430
      %4432 = vmatmul.bf16.gmra.mxu0 %v4283
      %v4433 = vpop.f32.mrf.mxu0
      %v4434 = vadd.f32 0.0, %v4433
      %v4435 = vpop.f32.mrf.mxu0
      %v4436 = vadd.f32 0.0, %v4435
      %4437 = vmatmul.bf16.gmra.mxu0 %v4284
      %v4438 = vpop.f32.mrf.mxu0
      %v4439 = vadd.f32 0.0, %v4438
      %v4440 = vpop.f32.mrf.mxu0
      %v4441 = vadd.f32 0.0, %v4440
      %4442 = vmatmul.bf16.gmra.mxu0 %v4285
      %v4443 = vpop.f32.mrf.mxu0
      %v4444 = vadd.f32 0.0, %v4443
      %v4445 = vpop.f32.mrf.mxu0
      %v4446 = vadd.f32 0.0, %v4445
      %4447 = vdwg.mxu0
      %4448 = vmatpush.bf16.msra.mxu0 %v4402
      %4449 = vmatpush.bf16.msra.mxu0 %v4401
      %4450 = vmatpush.bf16.msra.mxu0 %v4400
      %4451 = vmatpush.bf16.msra.mxu0 %v4399
      %4452 = vmatpush.bf16.msra.mxu0 %v4398
      %4453 = vmatpush.bf16.msra.mxu0 %v4397
      %4454 = vmatpush.bf16.msra.mxu0 %v4396
      %4455 = vmatpush.bf16.msra.mxu0 %v4395
      %4456 = vmatmul.bf16.gmra.mxu0 %v1697
      %v4457 = vpop.f32.mrf.mxu0
      %v4458 = vadd.f32 %v4429, %v4457
      %v4459 = vpop.f32.mrf.mxu0
      %v4460 = vadd.f32 %v4431, %v4459
      %4461 = vmatmul.bf16.gmra.mxu0 %v1698
      %v4462 = vpop.f32.mrf.mxu0
      %v4463 = vadd.f32 %v4434, %v4462
      %v4464 = vpop.f32.mrf.mxu0
      %v4465 = vadd.f32 %v4436, %v4464
      %4466 = vmatmul.bf16.gmra.mxu0 %v1699
      %v4467 = vpop.f32.mrf.mxu0
      %v4468 = vadd.f32 %v4439, %v4467
      %v4469 = vpop.f32.mrf.mxu0
      %v4470 = vadd.f32 %v4441, %v4469
      %4471 = vmatmul.bf16.gmra.mxu0 %v1700
      %v4472 = vpop.f32.mrf.mxu0
      %v4473 = vadd.f32 %v4444, %v4472
      %v4474 = vpop.f32.mrf.mxu0
      %v4475 = vadd.f32 %v4446, %v4474
      %4476 = vdwg.mxu0
      %v4477 = vadd.f32 %v3773, %v4458
      %v4478 = vadd.f32 %v3774, %v4460
      %v4479 = vadd.f32 %v3775, %v4463
      %v4480 = vadd.f32 %v3776, %v4465
      %v4481 = vadd.f32 %v3777, %v4468
      %v4482 = vadd.f32 %v3778, %v4470
      %v4483 = vadd.f32 %v3779, %v4473
      %v4484 = vadd.f32 %v3780, %v4475
      %v4486 = vperm.slane %v256, 0
      %v4488 = vadd.f32 %v4477, %v4486
      %v4489 = vadd.f32 %v4478, %v4486
      %v4490 = vadd.f32 %v4479, %v4486
      %v4491 = vadd.f32 %v4480, %v4486
      %v4492 = vadd.f32 %v4481, %v4486
      %v4493 = vadd.f32 %v4482, %v4486
      %v4494 = vadd.f32 %v4483, %v4486
      %v4495 = vadd.f32 %v4484, %v4486
      %v4496 = vmax.f32 %v4488, 0.0
      %v4497 = vmax.f32 %v4489, 0.0
      %v4498 = vmax.f32 %v4490, 0.0
      %v4499 = vmax.f32 %v4491, 0.0
      %v4500 = vmax.f32 %v4492, 0.0
      %v4501 = vmax.f32 %v4493, 0.0
      %v4502 = vmax.f32 %v4494, 0.0
      %v4503 = vmax.f32 %v4495, 0.0
      %4504 = vst [vmem:[%s253] sm:$0xff] %v4496
      %4505 = vst [vmem:[%s253 + $0x8] sm:$0xff] %v4497
      %4506 = vst [vmem:[%s253 + $0x10] sm:$0xff] %v4498
      %4507 = vst [vmem:[%s253 + $0x18] sm:$0xff] %v4499
      %4508 = vst [vmem:[%s253 + $0x20] sm:$0xff] %v4500
      %4509 = vst [vmem:[%s253 + $0x28] sm:$0xff] %v4501
      %4510 = vst [vmem:[%s253 + $0x30] sm:$0xff] %v4502
      %4511 = vst [vmem:[%s253 + $0x38] sm:$0xff] %v4503
      %s4512 = smul.u32 8, %s21
      %p4513 = scmp.lt.s32.totalorder %s20, 1
      %s4514 = scalar_select %p4513, %s20, 1
      %p4515 = scmp.lt.s32.totalorder %s4512, 7
      %s4516 = scalar_select %p4515, %s4512, 7
      %s4517 = smul.addr %s4514, 8
      %s4518 = sadd.s32 %s4516, %s4517
      %s4519 = smul.addr %s4518, 8
      %s4520 = scalar_lea.vmem %s5, %s4519
      // Predicated region
      $region41: #{bottle_neck_forward.1} parent=39 // pred_check
        %p4521 = pneg %p160
      $region42: #{bottle_neck_forward.1} parent=39 // pred_check_branch
        %4523 = sbr.rel (%p4521) target = $region44
      $region43: #{bottle_neck_forward.1} parent=39 // pred_region
        %s4524 = smul.u32 8, %s21
      $region44: #{bottle_neck_forward.1} parent=39 // pred_fallthru
        _
    $region40: #{bottle_neck_forward.1} parent=5 // pred_fallthru
      _
    %p4525 = scmp.le.s32.totalorder 2, %s11
    // Predicated region
    $region45: #{bottle_neck_forward.1} parent=5 // pred_check
      %p4526 = pneg %p4525
    $region46: #{bottle_neck_forward.1} parent=5 // pred_check_branch
      %4528 = sbr.rel (%p4526) target = $region48
    $region47: #{bottle_neck_forward.1} parent=5 // pred_region
      %s4529 = ssub.s32 %s11, 2
      // Predicated region
      $region49: #{bottle_neck_forward.1} parent=47 // pred_check
        %p4530 = pneg %p166
      $region50: #{bottle_neck_forward.1} parent=47 // pred_check_branch
        %4532 = sbr.rel (%p4530) target = $region52
      $region51: #{bottle_neck_forward.1} parent=47 // pred_region
        %s4533 = smul.u32 8, %s23
        %p4534 = scmp.lt.s32.totalorder %s22, 1
        %s4535 = scalar_select %p4534, %s22, 1
        %p4536 = scmp.lt.s32.totalorder %s4533, 7
        %s4537 = scalar_select %p4536, %s4533, 7
        %s4538 = smul.addr %s4535, 8
        %s4539 = sadd.s32 %s4537, %s4538
        %s4540 = smul.addr %s4539, 8
        %s4541 = scalar_lea.vmem %s5, %s4540
      $region52: #{bottle_neck_forward.1} parent=47 // pred_fallthru
        _
    $region48: #{bottle_neck_forward.1} parent=5 // pred_fallthru
      _
  $region6: #{bottle_neck_forward.1} parent=0 // loop_footer
    %s15 = sadd.s32 1, %s11
  $region7: #{bottle_neck_forward.1} parent=0 // loop_footer_branch
    %10 = sbr.rel target = $region3
  $region8: #{bottle_neck_forward.1} parent=0 // loop_exit
    _

</llo_original>
